<compile_context>
chip_gen: v6e
topology: v6e:2x2x1
jax: 0.10.0
libtpu: 0.0.40
codegen_flags: <defaults>
</compile_context>

<pallas_src>
import functools

import jax
import jax.numpy as jnp
from jax.experimental import pallas as pl
from jax.experimental.pallas import tpu as pltpu


# --------------------------------------------------------------------------
# Kernel 1: fused 1x1 qkv conv + single-head attention (channels-first).
# grid = (N, Nh); program (i, h) handles batch item i, head h.
#   x_ref   : (1, Cin, HW)
#   wq/wk   : (1, dkh, Cin)   wv_ref : (1, dvh, Cin)
#   bq/bk   : (1, dkh, 1)     bv_ref : (1, dvh, 1)
#   o_ref   : (1, dvh, HW)   rows = head channels, lanes = spatial (dense)
# Stored value o[d, p] == torch attn_out[n, h, p, d]  (attn_h transposed).
# --------------------------------------------------------------------------
def _attn_head_kernel(x_ref, wq_ref, wk_ref, wv_ref, bq_ref, bk_ref, bv_ref,
                      o_ref, *, scale):
    x = x_ref[0]                                                    # (Cin, HW)
    q = (jnp.dot(wq_ref[0], x, preferred_element_type=jnp.float32)
         + bq_ref[0]) * scale                                       # (dkh, HW)
    k = jnp.dot(wk_ref[0], x, preferred_element_type=jnp.float32) + bk_ref[0]
    v = jnp.dot(wv_ref[0], x, preferred_element_type=jnp.float32) + bv_ref[0]

    logits = jnp.dot(q.T, k, preferred_element_type=jnp.float32)    # (HW, HW)
    m = jnp.max(logits, axis=-1, keepdims=True)
    p = jnp.exp(logits - m)
    denom = jnp.sum(p, axis=-1, keepdims=True)
    w = p * pl.reciprocal(denom, approx=True)                       # softmax (EUP recip)

    # attn_h = w @ v.T  (HW, dvh); store its transpose (dvh, HW) = v @ w.T so
    # the store is lane-dense (last dim = HW).
    o_ref[0] = jnp.dot(v, w.T,
                       preferred_element_type=jnp.float32).astype(o_ref.dtype)


def attention_heads(x_cf, wq, wk, wv, bq, bk, bv):
    n, cin, hw = x_cf.shape
    nh, dkh, _ = wq.shape
    dvh = wv.shape[1]
    kernel = functools.partial(_attn_head_kernel, scale=float(dkh) ** -0.5)
    return pl.pallas_call(
        kernel,
        out_shape=jax.ShapeDtypeStruct((n, nh * dvh, hw), jnp.float32),
        grid=(n, nh),
        in_specs=[
            pl.BlockSpec((1, cin, hw), lambda i, h: (i, 0, 0)),
            pl.BlockSpec((1, dkh, cin), lambda i, h: (h, 0, 0)),
            pl.BlockSpec((1, dkh, cin), lambda i, h: (h, 0, 0)),
            pl.BlockSpec((1, dvh, cin), lambda i, h: (h, 0, 0)),
            pl.BlockSpec((1, dkh, 1), lambda i, h: (h, 0, 0)),
            pl.BlockSpec((1, dkh, 1), lambda i, h: (h, 0, 0)),
            pl.BlockSpec((1, dvh, 1), lambda i, h: (h, 0, 0)),
        ],
        out_specs=pl.BlockSpec((1, dvh, hw), lambda i, h: (i, h, 0)),
        compiler_params=pltpu.CompilerParams(
            dimension_semantics=("parallel", "parallel")),
    )(x_cf, wq, wk, wv, bq, bk, bv)


# --------------------------------------------------------------------------
# Kernel 2: fused 3x3 conv (in-kernel im2col) + 1x1 attn_out projection,
# single channels-first output block per batch item.
#   xpad_ref : (1, H+2, W+2, Cin)   padded NHWC input
#   wconv    : (9, Cin, Co_conv)    bconv : (Co_conv, 1)
#   attn_ref : (1, dv, HW)          scrambled+combined heads, channels-first
#   wattn    : (dv, dv)             battn : (dv, 1)
#   o_ref    : (1, Co_conv + dv, HW)
# --------------------------------------------------------------------------
def _conv_proj_kernel(xpad_ref, wconv_ref, bconv_ref, attn_ref, wattn_ref,
                      battn_ref, o_ref):
    hp, wp, cin = xpad_ref.shape[1], xpad_ref.shape[2], xpad_ref.shape[3]
    h, w = hp - 2, wp - 2
    hw = h * w
    co_conv = wconv_ref.shape[2]

    # 3x3 conv, padding=1: nine shifted (HW, Cin) x (Cin, Co) dots accumulated
    # in registers/VMEM; the padded input is read from HBM exactly once.
    acc = jnp.zeros((hw, co_conv), jnp.float32)
    for kh in range(3):
        for kw in range(3):
            tap = xpad_ref[0, pl.ds(kh, h), pl.ds(kw, w), :].reshape(hw, cin)
            acc = acc + jnp.dot(tap, wconv_ref[kh * 3 + kw],
                                preferred_element_type=jnp.float32)
    conv_cf = acc.T + bconv_ref[...]                                # (Co, HW)

    # 1x1 attn_out projection, channels-first: (dv, dv) @ (dv, HW).
    proj = jnp.dot(wattn_ref[...], attn_ref[0],
                   preferred_element_type=jnp.float32) + battn_ref[...]

    # Two sublane-aligned, lane-dense (HW-wide) stores into the single
    # channels-first output block: no XLA concat / transpose needed afterwards.
    o_ref[0, 0:co_conv, :] = conv_cf.astype(o_ref.dtype)
    o_ref[0, co_conv:, :] = proj.astype(o_ref.dtype)


def conv_attn_out(xpad, wconv, bconv, attn_cf, wattn, battn):
    n, hp, wp, cin = xpad.shape
    h, w = hp - 2, wp - 2
    hw = h * w
    co_conv = wconv.shape[2]
    dv = wattn.shape[0]
    out_c = co_conv + dv
    return pl.pallas_call(
        _conv_proj_kernel,
        out_shape=jax.ShapeDtypeStruct((n, out_c, hw), jnp.float32),
        grid=(n,),
        in_specs=[
            pl.BlockSpec((1, hp, wp, cin), lambda i: (i, 0, 0, 0)),
            pl.BlockSpec((9, cin, co_conv), lambda i: (0, 0, 0)),
            pl.BlockSpec((co_conv, 1), lambda i: (0, 0)),
            pl.BlockSpec((1, dv, hw), lambda i: (i, 0, 0)),
            pl.BlockSpec((dv, dv), lambda i: (0, 0)),
            pl.BlockSpec((dv, 1), lambda i: (0, 0)),
        ],
        out_specs=pl.BlockSpec((1, out_c, hw), lambda i: (i, 0, 0)),
        compiler_params=pltpu.CompilerParams(dimension_semantics=("parallel",)),
    )(xpad, wconv, bconv, attn_cf, wattn, battn)


# --------------------------------------------------------------------------
# Forward pass (thin JAX glue + the two Pallas kernels)
# --------------------------------------------------------------------------
def augmented_conv_forward(x, params, *, kernel_size, dk, dv, Nh, relative=False):
    # TODO(synk): relative=True creates fresh nn.Parameter(torch.randn(...))
    # inside forward (nondeterministic each call); not reproduced — run with
    # relative=False, which exactly matches the PyTorch forward in that config.
    assert not relative
    assert kernel_size == 3, "module hardcodes padding=1; only k=3 keeps spatial size"
    N, Cin, H, W = x.shape
    HW = H * W
    dkh, dvh = dk // Nh, dv // Nh

    # ---- fused qkv (1x1 conv) + attention, channels-first ----
    x_cf = x.reshape(N, Cin, HW)                                    # free reshape
    w2 = params["w_qkv"][:, :, 0, 0]                                # (2dk+dv, Cin)
    b2 = params["b_qkv"]
    wq = w2[:dk].reshape(Nh, dkh, Cin)
    wk = w2[dk:2 * dk].reshape(Nh, dkh, Cin)
    wv = w2[2 * dk:].reshape(Nh, dvh, Cin)
    bq = b2[:dk].reshape(Nh, dkh, 1)
    bk = b2[dk:2 * dk].reshape(Nh, dkh, 1)
    bv = b2[2 * dk:].reshape(Nh, dvh, 1)
    heads_t = attention_heads(x_cf, wq, wk, wv, bq, bk, bv)         # (N, dv, HW)

    # Exact torch semantics: undo the in-kernel head transpose, then the
    # row-major "scramble" reshape + combine_heads (small tensor; XLA glue).
    attn_t = jnp.transpose(heads_t.reshape(N, Nh, dvh, HW), (0, 1, 3, 2))
    attn_cf = attn_t.reshape(N, Nh, dvh, HW).reshape(N, dv, HW)     # channels-first

    # ---- fused 3x3 conv + 1x1 attn_out projection + channel concat ----
    x_nhwc = jnp.transpose(x, (0, 2, 3, 1))
    xpad = jnp.pad(x_nhwc, ((0, 0), (1, 1), (1, 1), (0, 0)))
    w_conv = params["w_conv"]                                       # (Co, Cin, 3, 3)
    Co_conv = w_conv.shape[0]
    wconv = jnp.transpose(w_conv, (2, 3, 1, 0)).reshape(9, Cin, Co_conv)
    bconv = params["b_conv"].reshape(Co_conv, 1)
    wattn = params["w_attn"][:, :, 0, 0]                            # (dv_out, dv_in)
    battn = params["b_attn"].reshape(dv, 1)

    out_cf = conv_attn_out(xpad, wconv, bconv, attn_cf, wattn, battn)
    return out_cf.reshape(N, Co_conv + dv, H, W)                    # NCHW, free


# --------------------------------------------------------------------------
# Pure-JAX reference (mirrors the PyTorch math) for self-checking
# --------------------------------------------------------------------------
def reference_forward(x, params, *, dk, dv, Nh):
    N, Cin, H, W = x.shape
    dn = ("NCHW", "OIHW", "NCHW")
    conv_out = jax.lax.conv_general_dilated(
        x, params["w_conv"], (1, 1), ((1, 1), (1, 1)),
        dimension_numbers=dn) + params["b_conv"][None, :, None, None]
    qkv = jax.lax.conv_general_dilated(
        x, params["w_qkv"], (1, 1), "VALID",
        dimension_numbers=dn) + params["b_qkv"][None, :, None, None]
    q, k, v = qkv[:, :dk], qkv[:, dk:2 * dk], qkv[:, 2 * dk:]
    dkh, dvh = dk // Nh, dv // Nh
    q = q.reshape(N, Nh, dkh, H, W) * (dkh ** -0.5)
    k = k.reshape(N, Nh, dkh, H, W)
    v = v.reshape(N, Nh, dvh, H, W)
    flat_q = q.reshape(N, Nh, dkh, H * W)
    flat_k = k.reshape(N, Nh, dkh, H * W)
    flat_v = v.reshape(N, Nh, dvh, H * W)
    logits = jnp.einsum("bhdp,bhdq->bhpq", flat_q, flat_k)
    weights = jax.nn.softmax(logits, axis=-1)
    attn = jnp.einsum("bhpq,bhdq->bhpd", weights, flat_v)
    attn = attn.reshape(N, Nh, dvh, H, W).reshape(N, dv, H, W)
    attn = jax.lax.conv_general_dilated(
        attn, params["w_attn"], (1, 1), "VALID",
        dimension_numbers=dn) + params["b_attn"][None, :, None, None]
    return jnp.concatenate([conv_out, attn], axis=1)


# --------------------------------------------------------------------------
if __name__ == "__main__":
    # AugmentedConv(in_channels=8, out_channels=32, kernel_size=3,
    #               dk=16, dv=16, Nh=2, relative=False)
    N, Cin, H, W = 2, 8, 16, 16
    out_channels, kernel_size, dk, dv, Nh = 32, 3, 16, 16, 2
    Co_conv = out_channels - dv

    key = jax.random.PRNGKey(0)
    ks = jax.random.split(key, 7)
    x = jax.random.normal(ks[0], (N, Cin, H, W), jnp.float32)
    params = {
        "w_conv": 0.1 * jax.random.normal(
            ks[1], (Co_conv, Cin, kernel_size, kernel_size), jnp.float32),
        "b_conv": 0.1 * jax.random.normal(ks[2], (Co_conv,), jnp.float32),
        "w_qkv": 0.1 * jax.random.normal(
            ks[3], (2 * dk + dv, Cin, 1, 1), jnp.float32),
        "b_qkv": 0.1 * jax.random.normal(ks[4], (2 * dk + dv,), jnp.float32),
        "w_attn": 0.1 * jax.random.normal(ks[5], (dv, dv, 1, 1), jnp.float32),
        "b_attn": 0.1 * jax.random.normal(ks[6], (dv,), jnp.float32),
    }

    fwd = jax.jit(functools.partial(
        augmented_conv_forward, kernel_size=kernel_size, dk=dk, dv=dv, Nh=Nh,
        relative=False))
    out = jax.block_until_ready(fwd(x, params))
    assert out.shape == (N, out_channels, H, W), out.shape

    ref = jax.block_until_ready(
        reference_forward(x, params, dk=dk, dv=dv, Nh=Nh))
    max_err = float(jnp.max(jnp.abs(out - ref)))
    if max_err > 2e-3:
        raise AssertionError(f"mismatch vs reference: max_err={max_err}")

    print("KERNEL_OK")
</pallas_src>

<mosaic_0001>
module attributes {stable_mosaic.version = 11 : i64} {
  func.func @_attn_head_kernel(%arg0: i32, %arg1: i32, %arg2: memref<1x8x256xf32, #tpu.memory_space<vmem>>, %arg3: memref<1x8x8xf32, #tpu.memory_space<vmem>>, %arg4: memref<1x8x8xf32, #tpu.memory_space<vmem>>, %arg5: memref<1x8x8xf32, #tpu.memory_space<vmem>>, %arg6: memref<1x8x1xf32, #tpu.memory_space<vmem>>, %arg7: memref<1x8x1xf32, #tpu.memory_space<vmem>>, %arg8: memref<1x8x1xf32, #tpu.memory_space<vmem>>, %arg9: memref<1x8x256xf32, #tpu.memory_space<vmem>>) attributes {dimension_semantics = [#tpu.dimension_semantics<parallel>, #tpu.dimension_semantics<parallel>], iteration_bounds = array<i64: 2, 2>, scalar_prefetch = 0 : i64, scratch_operands = 0 : i64, tpu.core_type = #tpu.core_type<tc>, window_params = [{transform_indices = @transform_0, window_bounds = array<i64: 1, 8, 256>}, {transform_indices = @transform_1, window_bounds = array<i64: 1, 8, 8>}, {transform_indices = @transform_2, window_bounds = array<i64: 1, 8, 8>}, {transform_indices = @transform_3, window_bounds = array<i64: 1, 8, 8>}, {transform_indices = @transform_4, window_bounds = array<i64: 1, 8, 1>}, {transform_indices = @transform_5, window_bounds = array<i64: 1, 8, 1>}, {transform_indices = @transform_6, window_bounds = array<i64: 1, 8, 1>}, {transform_indices = @transform_7, window_bounds = array<i64: 1, 8, 256>}]} {
    %c0 = arith.constant 0 : index
    %c0_0 = arith.constant 0 : index
    %c0_1 = arith.constant 0 : index
    %0 = vector.load %arg2[%c0, %c0_0, %c0_1] : memref<1x8x256xf32, #tpu.memory_space<vmem>>, vector<1x8x256xf32>
    %1 = vector.shape_cast %0 : vector<1x8x256xf32> to vector<8x256xf32>
    %c0_2 = arith.constant 0 : index
    %c0_3 = arith.constant 0 : index
    %c0_4 = arith.constant 0 : index
    %2 = vector.load %arg3[%c0_2, %c0_3, %c0_4] : memref<1x8x8xf32, #tpu.memory_space<vmem>>, vector<1x8x8xf32>
    %3 = vector.shape_cast %2 : vector<1x8x8xf32> to vector<8x8xf32>
    %cst = arith.constant dense<0.000000e+00> : vector<8x256xf32>
    %4 = tpu.matmul %3, %1, %cst {dimension_numbers = #tpu.dot_dimension_numbers<[1], [0], [0], [1], [0, 0, 1, 1], [], []>} : vector<8x8xf32>, vector<8x256xf32>, vector<8x256xf32> -> vector<8x256xf32>
    %c0_5 = arith.constant 0 : index
    %c0_6 = arith.constant 0 : index
    %c0_7 = arith.constant 0 : index
    %5 = vector.load %arg6[%c0_5, %c0_6, %c0_7] : memref<1x8x1xf32, #tpu.memory_space<vmem>>, vector<1x8x1xf32>
    %6 = vector.shape_cast %5 : vector<1x8x1xf32> to vector<8x1xf32>
    %7 = vector.broadcast %6 : vector<8x1xf32> to vector<8x256xf32>
    %8 = arith.addf %4, %7 : vector<8x256xf32>
    %cst_8 = arith.constant 0.353553385 : f32
    %9 = vector.broadcast %cst_8 : f32 to vector<8x256xf32>
    %10 = arith.mulf %8, %9 : vector<8x256xf32>
    %c0_9 = arith.constant 0 : index
    %c0_10 = arith.constant 0 : index
    %c0_11 = arith.constant 0 : index
    %11 = vector.load %arg4[%c0_9, %c0_10, %c0_11] : memref<1x8x8xf32, #tpu.memory_space<vmem>>, vector<1x8x8xf32>
    %12 = vector.shape_cast %11 : vector<1x8x8xf32> to vector<8x8xf32>
    %cst_12 = arith.constant dense<0.000000e+00> : vector<8x256xf32>
    %13 = tpu.matmul %12, %1, %cst_12 {dimension_numbers = #tpu.dot_dimension_numbers<[1], [0], [0], [1], [0, 0, 1, 1], [], []>} : vector<8x8xf32>, vector<8x256xf32>, vector<8x256xf32> -> vector<8x256xf32>
    %c0_13 = arith.constant 0 : index
    %c0_14 = arith.constant 0 : index
    %c0_15 = arith.constant 0 : index
    %14 = vector.load %arg7[%c0_13, %c0_14, %c0_15] : memref<1x8x1xf32, #tpu.memory_space<vmem>>, vector<1x8x1xf32>
    %15 = vector.shape_cast %14 : vector<1x8x1xf32> to vector<8x1xf32>
    %16 = vector.broadcast %15 : vector<8x1xf32> to vector<8x256xf32>
    %17 = arith.addf %13, %16 : vector<8x256xf32>
    %c0_16 = arith.constant 0 : index
    %c0_17 = arith.constant 0 : index
    %c0_18 = arith.constant 0 : index
    %18 = vector.load %arg5[%c0_16, %c0_17, %c0_18] : memref<1x8x8xf32, #tpu.memory_space<vmem>>, vector<1x8x8xf32>
    %19 = vector.shape_cast %18 : vector<1x8x8xf32> to vector<8x8xf32>
    %cst_19 = arith.constant dense<0.000000e+00> : vector<8x256xf32>
    %20 = tpu.matmul %19, %1, %cst_19 {dimension_numbers = #tpu.dot_dimension_numbers<[1], [0], [0], [1], [0, 0, 1, 1], [], []>} : vector<8x8xf32>, vector<8x256xf32>, vector<8x256xf32> -> vector<8x256xf32>
    %c0_20 = arith.constant 0 : index
    %c0_21 = arith.constant 0 : index
    %c0_22 = arith.constant 0 : index
    %21 = vector.load %arg8[%c0_20, %c0_21, %c0_22] : memref<1x8x1xf32, #tpu.memory_space<vmem>>, vector<1x8x1xf32>
    %22 = vector.shape_cast %21 : vector<1x8x1xf32> to vector<8x1xf32>
    %23 = vector.broadcast %22 : vector<8x1xf32> to vector<8x256xf32>
    %24 = arith.addf %20, %23 : vector<8x256xf32>
    %25 = tpu.transpose %10, [1, 0] : vector<8x256xf32> -> vector<256x8xf32>
    %cst_23 = arith.constant dense<0.000000e+00> : vector<256x256xf32>
    %26 = tpu.matmul %25, %17, %cst_23 {dimension_numbers = #tpu.dot_dimension_numbers<[1], [0], [0], [1], [0, 0, 1, 1], [], []>} : vector<256x8xf32>, vector<8x256xf32>, vector<256x256xf32> -> vector<256x256xf32>
    %cst_24 = arith.constant dense<0xFF800000> : vector<256xf32>
    %27 = vector.multi_reduction <maximumf>, %26, %cst_24 [1] : vector<256x256xf32> to vector<256xf32>
    %28 = vector.shape_cast %27 : vector<256xf32> to vector<256x1xf32>
    %29 = vector.broadcast %28 : vector<256x1xf32> to vector<256x256xf32>
    %30 = arith.subf %26, %29 : vector<256x256xf32>
    %31 = math.exp %30 : vector<256x256xf32>
    %cst_25 = arith.constant dense<0.000000e+00> : vector<256xf32>
    %32 = vector.multi_reduction <add>, %31, %cst_25 [1] : vector<256x256xf32> to vector<256xf32>
    %33 = vector.shape_cast %32 : vector<256xf32> to vector<256x1xf32>
    %34 = tpu.reciprocal %33 {approx = true} : vector<256x1xf32> -> vector<256x1xf32>
    %35 = vector.broadcast %34 : vector<256x1xf32> to vector<256x256xf32>
    %36 = arith.mulf %31, %35 : vector<256x256xf32>
    %37 = tpu.transpose %36, [1, 0] : vector<256x256xf32> -> vector<256x256xf32>
    %cst_26 = arith.constant dense<0.000000e+00> : vector<8x256xf32>
    %38 = tpu.matmul %24, %37, %cst_26 {dimension_numbers = #tpu.dot_dimension_numbers<[1], [0], [0], [1], [0, 0, 1, 1], [], []>} : vector<8x256xf32>, vector<256x256xf32>, vector<8x256xf32> -> vector<8x256xf32>
    %c0_27 = arith.constant 0 : index
    %c0_28 = arith.constant 0 : index
    %c0_29 = arith.constant 0 : index
    %39 = vector.load %arg9[%c0_27, %c0_28, %c0_29] : memref<1x8x256xf32, #tpu.memory_space<vmem>>, vector<1x8x256xf32>
    %40 = vector.shape_cast %39 : vector<1x8x256xf32> to vector<8x256xf32>
    %41 = vector.shape_cast %38 : vector<8x256xf32> to vector<1x8x256xf32>
    tpu.vector_store %arg9[%c0_27, %c0_28, %c0_29], %41 {strides = array<i32>} : memref<1x8x256xf32, #tpu.memory_space<vmem>>, vector<1x8x256xf32>,
    return
  }
  func.func @transform_0(%arg0: i32, %arg1: i32) -> (i32, i32, i32) {
    %c0_i32 = arith.constant 0 : i32
    %c0_i32_0 = arith.constant 0 : i32
    %c0_i32_1 = arith.constant 0 : i32
    return %arg0, %c0_i32, %c0_i32_0 : i32, i32, i32
  }
  func.func @transform_1(%arg0: i32, %arg1: i32) -> (i32, i32, i32) {
    %c0_i32 = arith.constant 0 : i32
    %c0_i32_0 = arith.constant 0 : i32
    %c0_i32_1 = arith.constant 0 : i32
    return %arg1, %c0_i32, %c0_i32_0 : i32, i32, i32
  }
  func.func @transform_2(%arg0: i32, %arg1: i32) -> (i32, i32, i32) {
    %c0_i32 = arith.constant 0 : i32
    %c0_i32_0 = arith.constant 0 : i32
    %c0_i32_1 = arith.constant 0 : i32
    return %arg1, %c0_i32, %c0_i32_0 : i32, i32, i32
  }
  func.func @transform_3(%arg0: i32, %arg1: i32) -> (i32, i32, i32) {
    %c0_i32 = arith.constant 0 : i32
    %c0_i32_0 = arith.constant 0 : i32
    %c0_i32_1 = arith.constant 0 : i32
    return %arg1, %c0_i32, %c0_i32_0 : i32, i32, i32
  }
  func.func @transform_4(%arg0: i32, %arg1: i32) -> (i32, i32, i32) {
    %c0_i32 = arith.constant 0 : i32
    %c0_i32_0 = arith.constant 0 : i32
    %c0_i32_1 = arith.constant 0 : i32
    return %arg1, %c0_i32, %c0_i32_0 : i32, i32, i32
  }
  func.func @transform_5(%arg0: i32, %arg1: i32) -> (i32, i32, i32) {
    %c0_i32 = arith.constant 0 : i32
    %c0_i32_0 = arith.constant 0 : i32
    %c0_i32_1 = arith.constant 0 : i32
    return %arg1, %c0_i32, %c0_i32_0 : i32, i32, i32
  }
  func.func @transform_6(%arg0: i32, %arg1: i32) -> (i32, i32, i32) {
    %c0_i32 = arith.constant 0 : i32
    %c0_i32_0 = arith.constant 0 : i32
    %c0_i32_1 = arith.constant 0 : i32
    return %arg1, %c0_i32, %c0_i32_0 : i32, i32, i32
  }
  func.func @transform_7(%arg0: i32, %arg1: i32) -> (i32, i32, i32) {
    %c0_i32 = arith.constant 0 : i32
    %c0_i32_0 = arith.constant 0 : i32
    return %arg0, %arg1, %c0_i32 : i32, i32, i32
  }
}

module attributes {stable_mosaic.version = 11 : i64} {
  func.func @_conv_proj_kernel(%arg0: i32, %arg1: memref<1x18x18x8xf32, #tpu.memory_space<vmem>>, %arg2: memref<9x8x16xf32, #tpu.memory_space<vmem>>, %arg3: memref<16x1xf32, #tpu.memory_space<vmem>>, %arg4: memref<1x16x256xf32, #tpu.memory_space<vmem>>, %arg5: memref<16x16xf32, #tpu.memory_space<vmem>>, %arg6: memref<16x1xf32, #tpu.memory_space<vmem>>, %arg7: memref<1x32x256xf32, #tpu.memory_space<vmem>>) attributes {dimension_semantics = [#tpu.dimension_semantics<parallel>], iteration_bounds = array<i64: 2>, scalar_prefetch = 0 : i64, scratch_operands = 0 : i64, tpu.core_type = #tpu.core_type<tc>, window_params = [{transform_indices = @transform_0, window_bounds = array<i64: 1, 18, 18, 8>}, {pipeline_mode = #tpu.pipeline_mode<synchronous>, transform_indices = @transform_1, window_bounds = array<i64: 9, 8, 16>}, {pipeline_mode = #tpu.pipeline_mode<synchronous>, transform_indices = @transform_2, window_bounds = array<i64: 16, 1>}, {transform_indices = @transform_3, window_bounds = array<i64: 1, 16, 256>}, {pipeline_mode = #tpu.pipeline_mode<synchronous>, transform_indices = @transform_4, window_bounds = array<i64: 16, 16>}, {pipeline_mode = #tpu.pipeline_mode<synchronous>, transform_indices = @transform_5, window_bounds = array<i64: 16, 1>}, {transform_indices = @transform_6, window_bounds = array<i64: 1, 32, 256>}]} {
    %cst = arith.constant 0.000000e+00 : f32
    %0 = vector.broadcast %cst : f32 to vector<256x16xf32>
    %c0 = arith.constant 0 : index
    %c0_0 = arith.constant 0 : index
    %c0_1 = arith.constant 0 : index
    %c0_2 = arith.constant 0 : index
    %1 = vector.load %arg1[%c0, %c0_0, %c0_1, %c0_2] : memref<1x18x18x8xf32, #tpu.memory_space<vmem>>, vector<1x16x16x8xf32>
    %2 = vector.shape_cast %1 : vector<1x16x16x8xf32> to vector<16x16x8xf32>
    %3 = vector.shape_cast %2 : vector<16x16x8xf32> to vector<256x8xf32>
    %c0_3 = arith.constant 0 : index
    %c0_4 = arith.constant 0 : index
    %c0_5 = arith.constant 0 : index
    %4 = vector.load %arg2[%c0_3, %c0_4, %c0_5] : memref<9x8x16xf32, #tpu.memory_space<vmem>>, vector<1x8x16xf32>
    %5 = vector.shape_cast %4 : vector<1x8x16xf32> to vector<8x16xf32>
    %cst_6 = arith.constant dense<0.000000e+00> : vector<256x16xf32>
    %6 = tpu.matmul %3, %5, %cst_6 {dimension_numbers = #tpu.dot_dimension_numbers<[1], [0], [0], [1], [0, 0, 1, 1], [], []>} : vector<256x8xf32>, vector<8x16xf32>, vector<256x16xf32> -> vector<256x16xf32>
    %7 = arith.addf %0, %6 : vector<256x16xf32>
    %c0_7 = arith.constant 0 : index
    %c0_8 = arith.constant 0 : index
    %c1 = arith.constant 1 : index
    %c0_9 = arith.constant 0 : index
    %8 = vector.load %arg1[%c0_7, %c0_8, %c1, %c0_9] : memref<1x18x18x8xf32, #tpu.memory_space<vmem>>, vector<1x16x16x8xf32>
    %9 = vector.shape_cast %8 : vector<1x16x16x8xf32> to vector<16x16x8xf32>
    %10 = vector.shape_cast %9 : vector<16x16x8xf32> to vector<256x8xf32>
    %c1_10 = arith.constant 1 : index
    %c0_11 = arith.constant 0 : index
    %c0_12 = arith.constant 0 : index
    %11 = vector.load %arg2[%c1_10, %c0_11, %c0_12] : memref<9x8x16xf32, #tpu.memory_space<vmem>>, vector<1x8x16xf32>
    %12 = vector.shape_cast %11 : vector<1x8x16xf32> to vector<8x16xf32>
    %cst_13 = arith.constant dense<0.000000e+00> : vector<256x16xf32>
    %13 = tpu.matmul %10, %12, %cst_13 {dimension_numbers = #tpu.dot_dimension_numbers<[1], [0], [0], [1], [0, 0, 1, 1], [], []>} : vector<256x8xf32>, vector<8x16xf32>, vector<256x16xf32> -> vector<256x16xf32>
    %14 = arith.addf %7, %13 : vector<256x16xf32>
    %c0_14 = arith.constant 0 : index
    %c0_15 = arith.constant 0 : index
    %c2 = arith.constant 2 : index
    %c0_16 = arith.constant 0 : index
    %15 = vector.load %arg1[%c0_14, %c0_15, %c2, %c0_16] : memref<1x18x18x8xf32, #tpu.memory_space<vmem>>, vector<1x16x16x8xf32>
    %16 = vector.shape_cast %15 : vector<1x16x16x8xf32> to vector<16x16x8xf32>
    %17 = vector.shape_cast %16 : vector<16x16x8xf32> to vector<256x8xf32>
    %c2_17 = arith.constant 2 : index
    %c0_18 = arith.constant 0 : index
    %c0_19 = arith.constant 0 : index
    %18 = vector.load %arg2[%c2_17, %c0_18, %c0_19] : memref<9x8x16xf32, #tpu.memory_space<vmem>>, vector<1x8x16xf32>
    %19 = vector.shape_cast %18 : vector<1x8x16xf32> to vector<8x16xf32>
    %cst_20 = arith.constant dense<0.000000e+00> : vector<256x16xf32>
    %20 = tpu.matmul %17, %19, %cst_20 {dimension_numbers = #tpu.dot_dimension_numbers<[1], [0], [0], [1], [0, 0, 1, 1], [], []>} : vector<256x8xf32>, vector<8x16xf32>, vector<256x16xf32> -> vector<256x16xf32>
    %21 = arith.addf %14, %20 : vector<256x16xf32>
    %c0_21 = arith.constant 0 : index
    %c1_22 = arith.constant 1 : index
    %c0_23 = arith.constant 0 : index
    %c0_24 = arith.constant 0 : index
    %22 = vector.load %arg1[%c0_21, %c1_22, %c0_23, %c0_24] : memref<1x18x18x8xf32, #tpu.memory_space<vmem>>, vector<1x16x16x8xf32>
    %23 = vector.shape_cast %22 : vector<1x16x16x8xf32> to vector<16x16x8xf32>
    %24 = vector.shape_cast %23 : vector<16x16x8xf32> to vector<256x8xf32>
    %c3 = arith.constant 3 : index
    %c0_25 = arith.constant 0 : index
    %c0_26 = arith.constant 0 : index
    %25 = vector.load %arg2[%c3, %c0_25, %c0_26] : memref<9x8x16xf32, #tpu.memory_space<vmem>>, vector<1x8x16xf32>
    %26 = vector.shape_cast %25 : vector<1x8x16xf32> to vector<8x16xf32>
    %cst_27 = arith.constant dense<0.000000e+00> : vector<256x16xf32>
    %27 = tpu.matmul %24, %26, %cst_27 {dimension_numbers = #tpu.dot_dimension_numbers<[1], [0], [0], [1], [0, 0, 1, 1], [], []>} : vector<256x8xf32>, vector<8x16xf32>, vector<256x16xf32> -> vector<256x16xf32>
    %28 = arith.addf %21, %27 : vector<256x16xf32>
    %c0_28 = arith.constant 0 : index
    %c1_29 = arith.constant 1 : index
    %c1_30 = arith.constant 1 : index
    %c0_31 = arith.constant 0 : index
    %29 = vector.load %arg1[%c0_28, %c1_29, %c1_30, %c0_31] : memref<1x18x18x8xf32, #tpu.memory_space<vmem>>, vector<1x16x16x8xf32>
    %30 = vector.shape_cast %29 : vector<1x16x16x8xf32> to vector<16x16x8xf32>
    %31 = vector.shape_cast %30 : vector<16x16x8xf32> to vector<256x8xf32>
    %c4 = arith.constant 4 : index
    %c0_32 = arith.constant 0 : index
    %c0_33 = arith.constant 0 : index
    %32 = vector.load %arg2[%c4, %c0_32, %c0_33] : memref<9x8x16xf32, #tpu.memory_space<vmem>>, vector<1x8x16xf32>
    %33 = vector.shape_cast %32 : vector<1x8x16xf32> to vector<8x16xf32>
    %cst_34 = arith.constant dense<0.000000e+00> : vector<256x16xf32>
    %34 = tpu.matmul %31, %33, %cst_34 {dimension_numbers = #tpu.dot_dimension_numbers<[1], [0], [0], [1], [0, 0, 1, 1], [], []>} : vector<256x8xf32>, vector<8x16xf32>, vector<256x16xf32> -> vector<256x16xf32>
    %35 = arith.addf %28, %34 : vector<256x16xf32>
    %c0_35 = arith.constant 0 : index
    %c1_36 = arith.constant 1 : index
    %c2_37 = arith.constant 2 : index
    %c0_38 = arith.constant 0 : index
    %36 = vector.load %arg1[%c0_35, %c1_36, %c2_37, %c0_38] : memref<1x18x18x8xf32, #tpu.memory_space<vmem>>, vector<1x16x16x8xf32>
    %37 = vector.shape_cast %36 : vector<1x16x16x8xf32> to vector<16x16x8xf32>
    %38 = vector.shape_cast %37 : vector<16x16x8xf32> to vector<256x8xf32>
    %c5 = arith.constant 5 : index
    %c0_39 = arith.constant 0 : index
    %c0_40 = arith.constant 0 : index
    %39 = vector.load %arg2[%c5, %c0_39, %c0_40] : memref<9x8x16xf32, #tpu.memory_space<vmem>>, vector<1x8x16xf32>
    %40 = vector.shape_cast %39 : vector<1x8x16xf32> to vector<8x16xf32>
    %cst_41 = arith.constant dense<0.000000e+00> : vector<256x16xf32>
    %41 = tpu.matmul %38, %40, %cst_41 {dimension_numbers = #tpu.dot_dimension_numbers<[1], [0], [0], [1], [0, 0, 1, 1], [], []>} : vector<256x8xf32>, vector<8x16xf32>, vector<256x16xf32> -> vector<256x16xf32>
    %42 = arith.addf %35, %41 : vector<256x16xf32>
    %c0_42 = arith.constant 0 : index
    %c2_43 = arith.constant 2 : index
    %c0_44 = arith.constant 0 : index
    %c0_45 = arith.constant 0 : index
    %43 = vector.load %arg1[%c0_42, %c2_43, %c0_44, %c0_45] : memref<1x18x18x8xf32, #tpu.memory_space<vmem>>, vector<1x16x16x8xf32>
    %44 = vector.shape_cast %43 : vector<1x16x16x8xf32> to vector<16x16x8xf32>
    %45 = vector.shape_cast %44 : vector<16x16x8xf32> to vector<256x8xf32>
    %c6 = arith.constant 6 : index
    %c0_46 = arith.constant 0 : index
    %c0_47 = arith.constant 0 : index
    %46 = vector.load %arg2[%c6, %c0_46, %c0_47] : memref<9x8x16xf32, #tpu.memory_space<vmem>>, vector<1x8x16xf32>
    %47 = vector.shape_cast %46 : vector<1x8x16xf32> to vector<8x16xf32>
    %cst_48 = arith.constant dense<0.000000e+00> : vector<256x16xf32>
    %48 = tpu.matmul %45, %47, %cst_48 {dimension_numbers = #tpu.dot_dimension_numbers<[1], [0], [0], [1], [0, 0, 1, 1], [], []>} : vector<256x8xf32>, vector<8x16xf32>, vector<256x16xf32> -> vector<256x16xf32>
    %49 = arith.addf %42, %48 : vector<256x16xf32>
    %c0_49 = arith.constant 0 : index
    %c2_50 = arith.constant 2 : index
    %c1_51 = arith.constant 1 : index
    %c0_52 = arith.constant 0 : index
    %50 = vector.load %arg1[%c0_49, %c2_50, %c1_51, %c0_52] : memref<1x18x18x8xf32, #tpu.memory_space<vmem>>, vector<1x16x16x8xf32>
    %51 = vector.shape_cast %50 : vector<1x16x16x8xf32> to vector<16x16x8xf32>
    %52 = vector.shape_cast %51 : vector<16x16x8xf32> to vector<256x8xf32>
    %c7 = arith.constant 7 : index
    %c0_53 = arith.constant 0 : index
    %c0_54 = arith.constant 0 : index
    %53 = vector.load %arg2[%c7, %c0_53, %c0_54] : memref<9x8x16xf32, #tpu.memory_space<vmem>>, vector<1x8x16xf32>
    %54 = vector.shape_cast %53 : vector<1x8x16xf32> to vector<8x16xf32>
    %cst_55 = arith.constant dense<0.000000e+00> : vector<256x16xf32>
    %55 = tpu.matmul %52, %54, %cst_55 {dimension_numbers = #tpu.dot_dimension_numbers<[1], [0], [0], [1], [0, 0, 1, 1], [], []>} : vector<256x8xf32>, vector<8x16xf32>, vector<256x16xf32> -> vector<256x16xf32>
    %56 = arith.addf %49, %55 : vector<256x16xf32>
    %c0_56 = arith.constant 0 : index
    %c2_57 = arith.constant 2 : index
    %c2_58 = arith.constant 2 : index
    %c0_59 = arith.constant 0 : index
    %57 = vector.load %arg1[%c0_56, %c2_57, %c2_58, %c0_59] : memref<1x18x18x8xf32, #tpu.memory_space<vmem>>, vector<1x16x16x8xf32>
    %58 = vector.shape_cast %57 : vector<1x16x16x8xf32> to vector<16x16x8xf32>
    %59 = vector.shape_cast %58 : vector<16x16x8xf32> to vector<256x8xf32>
    %c8 = arith.constant 8 : index
    %c0_60 = arith.constant 0 : index
    %c0_61 = arith.constant 0 : index
    %60 = vector.load %arg2[%c8, %c0_60, %c0_61] : memref<9x8x16xf32, #tpu.memory_space<vmem>>, vector<1x8x16xf32>
    %61 = vector.shape_cast %60 : vector<1x8x16xf32> to vector<8x16xf32>
    %cst_62 = arith.constant dense<0.000000e+00> : vector<256x16xf32>
    %62 = tpu.matmul %59, %61, %cst_62 {dimension_numbers = #tpu.dot_dimension_numbers<[1], [0], [0], [1], [0, 0, 1, 1], [], []>} : vector<256x8xf32>, vector<8x16xf32>, vector<256x16xf32> -> vector<256x16xf32>
    %63 = arith.addf %56, %62 : vector<256x16xf32>
    %64 = tpu.transpose %63, [1, 0] : vector<256x16xf32> -> vector<16x256xf32>
    %c0_63 = arith.constant 0 : index
    %c0_64 = arith.constant 0 : index
    %65 = vector.load %arg3[%c0_63, %c0_64] : memref<16x1xf32, #tpu.memory_space<vmem>>, vector<16x1xf32>
    %66 = vector.broadcast %65 : vector<16x1xf32> to vector<16x256xf32>
    %67 = arith.addf %64, %66 : vector<16x256xf32>
    %c0_65 = arith.constant 0 : index
    %c0_66 = arith.constant 0 : index
    %68 = vector.load %arg5[%c0_65, %c0_66] : memref<16x16xf32, #tpu.memory_space<vmem>>, vector<16x16xf32>
    %c0_67 = arith.constant 0 : index
    %c0_68 = arith.constant 0 : index
    %c0_69 = arith.constant 0 : index
    %69 = vector.load %arg4[%c0_67, %c0_68, %c0_69] : memref<1x16x256xf32, #tpu.memory_space<vmem>>, vector<1x16x256xf32>
    %70 = vector.shape_cast %69 : vector<1x16x256xf32> to vector<16x256xf32>
    %cst_70 = arith.constant dense<0.000000e+00> : vector<16x256xf32>
    %71 = tpu.matmul %68, %70, %cst_70 {dimension_numbers = #tpu.dot_dimension_numbers<[1], [0], [0], [1], [0, 0, 1, 1], [], []>} : vector<16x16xf32>, vector<16x256xf32>, vector<16x256xf32> -> vector<16x256xf32>
    %c0_71 = arith.constant 0 : index
    %c0_72 = arith.constant 0 : index
    %72 = vector.load %arg6[%c0_71, %c0_72] : memref<16x1xf32, #tpu.memory_space<vmem>>, vector<16x1xf32>
    %73 = vector.broadcast %72 : vector<16x1xf32> to vector<16x256xf32>
    %74 = arith.addf %71, %73 : vector<16x256xf32>
    %c0_73 = arith.constant 0 : index
    %c0_74 = arith.constant 0 : index
    %c0_75 = arith.constant 0 : index
    %75 = vector.load %arg7[%c0_73, %c0_74, %c0_75] : memref<1x32x256xf32, #tpu.memory_space<vmem>>, vector<1x16x256xf32>
    %76 = vector.shape_cast %75 : vector<1x16x256xf32> to vector<16x256xf32>
    %77 = vector.shape_cast %67 : vector<16x256xf32> to vector<1x16x256xf32>
    tpu.vector_store %arg7[%c0_73, %c0_74, %c0_75], %77 {strides = array<i32>} : memref<1x32x256xf32, #tpu.memory_space<vmem>>, vector<1x16x256xf32>,
    %c0_76 = arith.constant 0 : index
    %c16 = arith.constant 16 : index
    %c0_77 = arith.constant 0 : index
    %78 = vector.load %arg7[%c0_76, %c16, %c0_77] : memref<1x32x256xf32, #tpu.memory_space<vmem>>, vector<1x16x256xf32>
    %79 = vector.shape_cast %78 : vector<1x16x256xf32> to vector<16x256xf32>
    %80 = vector.shape_cast %74 : vector<16x256xf32> to vector<1x16x256xf32>
    tpu.vector_store %arg7[%c0_76, %c16, %c0_77], %80 {strides = array<i32>} : memref<1x32x256xf32, #tpu.memory_space<vmem>>, vector<1x16x256xf32>,
    return
  }
  func.func @transform_0(%arg0: i32) -> (i32, i32, i32, i32) {
    %c0_i32 = arith.constant 0 : i32
    %c0_i32_0 = arith.constant 0 : i32
    %c0_i32_1 = arith.constant 0 : i32
    %c0_i32_2 = arith.constant 0 : i32
    return %arg0, %c0_i32, %c0_i32_0, %c0_i32_1 : i32, i32, i32, i32
  }
  func.func @transform_1(%arg0: i32) -> (i32, i32, i32) {
    %c0_i32 = arith.constant 0 : i32
    %c0_i32_0 = arith.constant 0 : i32
    %c0_i32_1 = arith.constant 0 : i32
    %c0_i32_2 = arith.constant 0 : i32
    return %c0_i32, %c0_i32_0, %c0_i32_1 : i32, i32, i32
  }
  func.func @transform_2(%arg0: i32) -> (i32, i32) {
    %c0_i32 = arith.constant 0 : i32
    %c0_i32_0 = arith.constant 0 : i32
    %c0_i32_1 = arith.constant 0 : i32
    return %c0_i32, %c0_i32_0 : i32, i32
  }
  func.func @transform_3(%arg0: i32) -> (i32, i32, i32) {
    %c0_i32 = arith.constant 0 : i32
    %c0_i32_0 = arith.constant 0 : i32
    %c0_i32_1 = arith.constant 0 : i32
    return %arg0, %c0_i32, %c0_i32_0 : i32, i32, i32
  }
  func.func @transform_4(%arg0: i32) -> (i32, i32) {
    %c0_i32 = arith.constant 0 : i32
    %c0_i32_0 = arith.constant 0 : i32
    %c0_i32_1 = arith.constant 0 : i32
    return %c0_i32, %c0_i32_0 : i32, i32
  }
  func.func @transform_5(%arg0: i32) -> (i32, i32) {
    %c0_i32 = arith.constant 0 : i32
    %c0_i32_0 = arith.constant 0 : i32
    %c0_i32_1 = arith.constant 0 : i32
    return %c0_i32, %c0_i32_0 : i32, i32
  }
  func.func @transform_6(%arg0: i32) -> (i32, i32, i32) {
    %c0_i32 = arith.constant 0 : i32
    %c0_i32_0 = arith.constant 0 : i32
    %c0_i32_1 = arith.constant 0 : i32
    return %arg0, %c0_i32, %c0_i32_0 : i32, i32, i32
  }
}

</mosaic_0001>

<llo_original>
// kernel: augmented_conv_forward.2
$region0: #{augmented_conv_forward.2}
  #allocation0 [shape = 'u32[]', space=smem, size = 0x4, offset = 0x4, fixed_abs, tag = 'smem constant byte address 0x4 - core index']
  #allocation1 [shape = 'u32[144,128]{1,0:T(1,128)}', space=vmem, size = 0x12000, scoped, tag = 'internal scratch']
  %s0 = inlined_call_operand.vmem [shape: f32[2,8,256], index: 0, kind: input, shape index: {}]
  %s1 = inlined_call_operand.vmem [shape: f32[2,8,8], index: 1, kind: input, shape index: {}]
  %s2 = inlined_call_operand.vmem [shape: f32[2,8,8], index: 2, kind: input, shape index: {}]
  %s3 = inlined_call_operand.vmem [shape: f32[2,8,8], index: 3, kind: input, shape index: {}]
  %s4 = inlined_call_operand.vmem [shape: f32[2,8,1], index: 4, kind: input, shape index: {}]
  %s5 = inlined_call_operand.vmem [shape: f32[2,8,1], index: 5, kind: input, shape index: {}]
  %s6 = inlined_call_operand.vmem [shape: f32[2,8,1], index: 6, kind: input, shape index: {}]
  %s7 = inlined_call_operand.vmem [shape: f32[2,16,256], index: 7, kind: output, shape index: {}]
  %s8 = sld [smem:[#allocation0]]
  $region61: #{augmented_conv_forward.2} parent=0
    _
  %s10 = ssub.s32 1, %s8
  %s11 = scalar_select 0, %s10, %s8
  loop: start=0, step=1, limit=6
  $region2: #{augmented_conv_forward.2} parent=0 // loop_pre_header
    _
  $region3: #{augmented_conv_forward.2} parent=0 // loop_header
    %s13 = sphi 0, %s17
    %p14 = scmp.ge.s32.totalorder %s13, 6
    %s20 = sphi 0, %s32
    %s21 = sphi 0, %s28
    %s22 = sphi 0, %s20
    %s23 = sphi 0, %s21
    %s24 = sphi 0, %s22
    %s25 = sphi 0, %s23
    %s35 = sphi 0, %s37
    %s38 = sphi 0, %s35
    %s39 = sphi 0, %s38
    %s55 = sphi 0, %s39
    %s61 = sphi 0, %s63
    %s64 = sphi 0, %s61
    %s65 = sphi 0, %s64
    %s81 = sphi 0, %s65
    %s87 = sphi 0, %s89
    %s90 = sphi 0, %s87
    %s91 = sphi 0, %s90
    %s107 = sphi 0, %s91
    %s113 = sphi 0, %s115
    %s116 = sphi 0, %s113
    %s117 = sphi 0, %s116
    %s133 = sphi 0, %s117
    %s139 = sphi 0, %s141
    %s142 = sphi 0, %s139
    %s143 = sphi 0, %s142
    %s159 = sphi 0, %s143
    %s165 = sphi 0, %s167
    %s168 = sphi 0, %s165
    %s169 = sphi 0, %s168
    %s185 = sphi 0, %s169
    %s191 = sphi 0, %s193
    %s194 = sphi 0, %s191
    %s195 = sphi 0, %s194
    %s211 = sphi 0, %s195
    %s219 = sphi 0, %s221
    %s222 = sphi 0, %s219
    %s223 = sphi 0, %s222
    %s239 = sphi 0, %s223
  $region4: #{augmented_conv_forward.2} parent=0 // loop_header_branch
    %16 = sbr.rel (%p14) target = $region8
  $region5: #{augmented_conv_forward.2} parent=0 // loop_body
    %s18 = ssub.s32 %s13, 1
    %s19 = ssub.s32 %s13, 2
    %s26 = sadd.s32 1, %s21
    %p27 = scmp.ge.s32.totalorder %s26, 2
    %s28 = scalar_select %p27, 0, %s26
    %s29 = sadd.s32 1, %s20
    %s30 = scalar_select %p27, %s29, %s20
    %p31 = scmp.ge.s32.totalorder %s30, 2
    %s32 = scalar_select %p31, 0, %s30
    %s33 = ssub.s32 %s20, %s32
    %p34 = scmp.eq.s32.totalorder %s33, 0
    %s36 = sadd.s32 %s35, 1
    %s37 = scalar_select %p34, %s35, %s36
    %p40 = pneg %p34
    %p41 = scmp.eq.s32.totalorder %s13, 3
    %p42 = por %p40, %p41
    %p43 = scmp.ne.s32.totalorder %s35, %s38
    %p44 = scmp.eq.s32.totalorder %s13, 0
    %p45 = por %p43, %p44
    %p46 = scmp.ne.s32.totalorder %s35, %s38
    %p47 = scmp.eq.s32.totalorder %s18, 3
    %p48 = por %p46, %p47
    %p49 = scmp.ne.s32.totalorder %s38, %s39
    %p50 = scmp.eq.s32.totalorder %s18, 0
    %p51 = por %p49, %p50
    %p52 = scmp.ne.s32.totalorder %s38, %s39
    %p53 = scmp.eq.s32.totalorder %s19, 3
    %p54 = por %p52, %p53
    %p56 = scmp.ne.s32.totalorder %s39, %s55
    %p57 = scmp.eq.s32.totalorder %s19, 0
    %p58 = por %p56, %p57
    %s59 = ssub.s32 %s21, %s28
    %p60 = scmp.eq.s32.totalorder %s59, 0
    %s62 = sadd.s32 %s61, 1
    %s63 = scalar_select %p60, %s61, %s62
    %p66 = pneg %p60
    %p67 = scmp.eq.s32.totalorder %s13, 3
    %p68 = por %p66, %p67
    %p69 = scmp.ne.s32.totalorder %s61, %s64
    %p70 = scmp.eq.s32.totalorder %s13, 0
    %p71 = por %p69, %p70
    %p72 = scmp.ne.s32.totalorder %s61, %s64
    %p73 = scmp.eq.s32.totalorder %s18, 3
    %p74 = por %p72, %p73
    %p75 = scmp.ne.s32.totalorder %s64, %s65
    %p76 = scmp.eq.s32.totalorder %s18, 0
    %p77 = por %p75, %p76
    %p78 = scmp.ne.s32.totalorder %s64, %s65
    %p79 = scmp.eq.s32.totalorder %s19, 3
    %p80 = por %p78, %p79
    %p82 = scmp.ne.s32.totalorder %s65, %s81
    %p83 = scmp.eq.s32.totalorder %s19, 0
    %p84 = por %p82, %p83
    %s85 = ssub.s32 %s21, %s28
    %p86 = scmp.eq.s32.totalorder %s85, 0
    %s88 = sadd.s32 %s87, 1
    %s89 = scalar_select %p86, %s87, %s88
    %p92 = pneg %p86
    %p93 = scmp.eq.s32.totalorder %s13, 3
    %p94 = por %p92, %p93
    %p95 = scmp.ne.s32.totalorder %s87, %s90
    %p96 = scmp.eq.s32.totalorder %s13, 0
    %p97 = por %p95, %p96
    %p98 = scmp.ne.s32.totalorder %s87, %s90
    %p99 = scmp.eq.s32.totalorder %s18, 3
    %p100 = por %p98, %p99
    %p101 = scmp.ne.s32.totalorder %s90, %s91
    %p102 = scmp.eq.s32.totalorder %s18, 0
    %p103 = por %p101, %p102
    %p104 = scmp.ne.s32.totalorder %s90, %s91
    %p105 = scmp.eq.s32.totalorder %s19, 3
    %p106 = por %p104, %p105
    %p108 = scmp.ne.s32.totalorder %s91, %s107
    %p109 = scmp.eq.s32.totalorder %s19, 0
    %p110 = por %p108, %p109
    %s111 = ssub.s32 %s21, %s28
    %p112 = scmp.eq.s32.totalorder %s111, 0
    %s114 = sadd.s32 %s113, 1
    %s115 = scalar_select %p112, %s113, %s114
    %p118 = pneg %p112
    %p119 = scmp.eq.s32.totalorder %s13, 3
    %p120 = por %p118, %p119
    %p121 = scmp.ne.s32.totalorder %s113, %s116
    %p122 = scmp.eq.s32.totalorder %s13, 0
    %p123 = por %p121, %p122
    %p124 = scmp.ne.s32.totalorder %s113, %s116
    %p125 = scmp.eq.s32.totalorder %s18, 3
    %p126 = por %p124, %p125
    %p127 = scmp.ne.s32.totalorder %s116, %s117
    %p128 = scmp.eq.s32.totalorder %s18, 0
    %p129 = por %p127, %p128
    %p130 = scmp.ne.s32.totalorder %s116, %s117
    %p131 = scmp.eq.s32.totalorder %s19, 3
    %p132 = por %p130, %p131
    %p134 = scmp.ne.s32.totalorder %s117, %s133
    %p135 = scmp.eq.s32.totalorder %s19, 0
    %p136 = por %p134, %p135
    %s137 = ssub.s32 %s21, %s28
    %p138 = scmp.eq.s32.totalorder %s137, 0
    %s140 = sadd.s32 %s139, 1
    %s141 = scalar_select %p138, %s139, %s140
    %p144 = pneg %p138
    %p145 = scmp.eq.s32.totalorder %s13, 3
    %p146 = por %p144, %p145
    %p147 = scmp.ne.s32.totalorder %s139, %s142
    %p148 = scmp.eq.s32.totalorder %s13, 0
    %p149 = por %p147, %p148
    %p150 = scmp.ne.s32.totalorder %s139, %s142
    %p151 = scmp.eq.s32.totalorder %s18, 3
    %p152 = por %p150, %p151
    %p153 = scmp.ne.s32.totalorder %s142, %s143
    %p154 = scmp.eq.s32.totalorder %s18, 0
    %p155 = por %p153, %p154
    %p156 = scmp.ne.s32.totalorder %s142, %s143
    %p157 = scmp.eq.s32.totalorder %s19, 3
    %p158 = por %p156, %p157
    %p160 = scmp.ne.s32.totalorder %s143, %s159
    %p161 = scmp.eq.s32.totalorder %s19, 0
    %p162 = por %p160, %p161
    %s163 = ssub.s32 %s21, %s28
    %p164 = scmp.eq.s32.totalorder %s163, 0
    %s166 = sadd.s32 %s165, 1
    %s167 = scalar_select %p164, %s165, %s166
    %p170 = pneg %p164
    %p171 = scmp.eq.s32.totalorder %s13, 3
    %p172 = por %p170, %p171
    %p173 = scmp.ne.s32.totalorder %s165, %s168
    %p174 = scmp.eq.s32.totalorder %s13, 0
    %p175 = por %p173, %p174
    %p176 = scmp.ne.s32.totalorder %s165, %s168
    %p177 = scmp.eq.s32.totalorder %s18, 3
    %p178 = por %p176, %p177
    %p179 = scmp.ne.s32.totalorder %s168, %s169
    %p180 = scmp.eq.s32.totalorder %s18, 0
    %p181 = por %p179, %p180
    %p182 = scmp.ne.s32.totalorder %s168, %s169
    %p183 = scmp.eq.s32.totalorder %s19, 3
    %p184 = por %p182, %p183
    %p186 = scmp.ne.s32.totalorder %s169, %s185
    %p187 = scmp.eq.s32.totalorder %s19, 0
    %p188 = por %p186, %p187
    %s189 = ssub.s32 %s21, %s28
    %p190 = scmp.eq.s32.totalorder %s189, 0
    %s192 = sadd.s32 %s191, 1
    %s193 = scalar_select %p190, %s191, %s192
    %p196 = pneg %p190
    %p197 = scmp.eq.s32.totalorder %s13, 3
    %p198 = por %p196, %p197
    %p199 = scmp.ne.s32.totalorder %s191, %s194
    %p200 = scmp.eq.s32.totalorder %s13, 0
    %p201 = por %p199, %p200
    %p202 = scmp.ne.s32.totalorder %s191, %s194
    %p203 = scmp.eq.s32.totalorder %s18, 3
    %p204 = por %p202, %p203
    %p205 = scmp.ne.s32.totalorder %s194, %s195
    %p206 = scmp.eq.s32.totalorder %s18, 0
    %p207 = por %p205, %p206
    %p208 = scmp.ne.s32.totalorder %s194, %s195
    %p209 = scmp.eq.s32.totalorder %s19, 3
    %p210 = por %p208, %p209
    %p212 = scmp.ne.s32.totalorder %s195, %s211
    %p213 = scmp.eq.s32.totalorder %s19, 0
    %p214 = por %p212, %p213
    %s215 = ssub.s32 %s20, %s32
    %s216 = ssub.s32 %s21, %s28
    %s217 = sor.u32 %s215, %s216
    %p218 = scmp.eq.s32.totalorder %s217, 0
    %s220 = sadd.s32 %s219, 1
    %s221 = scalar_select %p218, %s219, %s220
    %p224 = pneg %p218
    %p225 = scmp.eq.s32.totalorder %s13, 3
    %p226 = por %p224, %p225
    %p227 = scmp.ne.s32.totalorder %s219, %s222
    %p228 = scmp.eq.s32.totalorder %s13, 0
    %p229 = por %p227, %p228
    %p230 = scmp.ne.s32.totalorder %s219, %s222
    %p231 = scmp.eq.s32.totalorder %s18, 3
    %p232 = por %p230, %p231
    %p233 = scmp.ne.s32.totalorder %s222, %s223
    %p234 = scmp.eq.s32.totalorder %s18, 0
    %p235 = por %p233, %p234
    %p236 = scmp.ne.s32.totalorder %s222, %s223
    %p237 = scmp.eq.s32.totalorder %s19, 3
    %p238 = por %p236, %p237
    %p240 = scmp.ne.s32.totalorder %s223, %s239
    %p241 = scmp.eq.s32.totalorder %s19, 0
    %p242 = por %p240, %p241
    %p243 = scmp.le.s32.totalorder 1, %s13
    %p244 = scmp.lt.s32.totalorder %s13, 5
    %p245 = pnand %p243, %p244
    %p246 = pneg %p245
    // Predicated region
    $region9: #{augmented_conv_forward.2} parent=5 // pred_check
      _
    $region10: #{augmented_conv_forward.2} parent=5 // pred_check_branch
      %248 = sbr.rel (%p245) target = $region12
    $region11: #{augmented_conv_forward.2} parent=5 // pred_region
      %s249 = ssub.s32 %s13, 1
    $region12: #{augmented_conv_forward.2} parent=5 // pred_fallthru
      _
    %p250 = scmp.lt.s32.totalorder %s13, 4
    // Predicated region
    $region13: #{augmented_conv_forward.2} parent=5 // pred_check
      %p251 = pneg %p250
    $region14: #{augmented_conv_forward.2} parent=5 // pred_check_branch
      %253 = sbr.rel (%p251) target = $region16
    $region15: #{augmented_conv_forward.2} parent=5 // pred_region
      // Predicated region
      $region17: #{augmented_conv_forward.2} parent=15 // pred_check
        %p254 = pneg %p45
      $region18: #{augmented_conv_forward.2} parent=15 // pred_check_branch
        %256 = sbr.rel (%p254) target = $region20
      $region19: #{augmented_conv_forward.2} parent=15 // pred_region
        %p257 = scmp.lt.s32.totalorder %s20, 1
        %s258 = scalar_select %p257, %s20, 1
        %s259 = smul.addr %s258, 2
        %s260 = smul.addr %s259, 8
        %s261 = scalar_lea.vmem %s0, %s260
      $region20: #{augmented_conv_forward.2} parent=15 // pred_fallthru
        _
      // Predicated region
      $region21: #{augmented_conv_forward.2} parent=15 // pred_check
        %p262 = pneg %p71
      $region22: #{augmented_conv_forward.2} parent=15 // pred_check_branch
        %264 = sbr.rel (%p262) target = $region24
      $region23: #{augmented_conv_forward.2} parent=15 // pred_region
        %p265 = scmp.lt.s32.totalorder %s21, 1
        %s266 = scalar_select %p265, %s21, 1
        %s267 = smul.addr %s266, 8
        %s268 = scalar_lea.vmem %s1, %s267
      $region24: #{augmented_conv_forward.2} parent=15 // pred_fallthru
        _
      // Predicated region
      $region25: #{augmented_conv_forward.2} parent=15 // pred_check
        %p269 = pneg %p97
      $region26: #{augmented_conv_forward.2} parent=15 // pred_check_branch
        %271 = sbr.rel (%p269) target = $region28
      $region27: #{augmented_conv_forward.2} parent=15 // pred_region
        %p272 = scmp.lt.s32.totalorder %s21, 1
        %s273 = scalar_select %p272, %s21, 1
        %s274 = smul.addr %s273, 8
        %s275 = scalar_lea.vmem %s2, %s274
      $region28: #{augmented_conv_forward.2} parent=15 // pred_fallthru
        _
      // Predicated region
      $region29: #{augmented_conv_forward.2} parent=15 // pred_check
        %p276 = pneg %p123
      $region30: #{augmented_conv_forward.2} parent=15 // pred_check_branch
        %278 = sbr.rel (%p276) target = $region32
      $region31: #{augmented_conv_forward.2} parent=15 // pred_region
        %p279 = scmp.lt.s32.totalorder %s21, 1
        %s280 = scalar_select %p279, %s21, 1
        %s281 = smul.addr %s280, 8
        %s282 = scalar_lea.vmem %s3, %s281
      $region32: #{augmented_conv_forward.2} parent=15 // pred_fallthru
        _
      // Predicated region
      $region33: #{augmented_conv_forward.2} parent=15 // pred_check
        %p283 = pneg %p149
      $region34: #{augmented_conv_forward.2} parent=15 // pred_check_branch
        %285 = sbr.rel (%p283) target = $region36
      $region35: #{augmented_conv_forward.2} parent=15 // pred_region
        %p286 = scmp.lt.s32.totalorder %s21, 1
        %s287 = scalar_select %p286, %s21, 1
        %s288 = smul.addr %s287, 8
        %s289 = scalar_lea.vmem %s4, %s288
      $region36: #{augmented_conv_forward.2} parent=15 // pred_fallthru
        _
      // Predicated region
      $region37: #{augmented_conv_forward.2} parent=15 // pred_check
        %p290 = pneg %p175
      $region38: #{augmented_conv_forward.2} parent=15 // pred_check_branch
        %292 = sbr.rel (%p290) target = $region40
      $region39: #{augmented_conv_forward.2} parent=15 // pred_region
        %p293 = scmp.lt.s32.totalorder %s21, 1
        %s294 = scalar_select %p293, %s21, 1
        %s295 = smul.addr %s294, 8
        %s296 = scalar_lea.vmem %s5, %s295
      $region40: #{augmented_conv_forward.2} parent=15 // pred_fallthru
        _
      // Predicated region
      $region41: #{augmented_conv_forward.2} parent=15 // pred_check
        %p297 = pneg %p201
      $region42: #{augmented_conv_forward.2} parent=15 // pred_check_branch
        %299 = sbr.rel (%p297) target = $region44
      $region43: #{augmented_conv_forward.2} parent=15 // pred_region
        %p300 = scmp.lt.s32.totalorder %s21, 1
        %s301 = scalar_select %p300, %s21, 1
        %s302 = smul.addr %s301, 8
        %s303 = scalar_lea.vmem %s6, %s302
      $region44: #{augmented_conv_forward.2} parent=15 // pred_fallthru
        _
    $region16: #{augmented_conv_forward.2} parent=5 // pred_fallthru
      _
    %p304 = scmp.le.s32.totalorder 1, %s13
    %p305 = scmp.lt.s32.totalorder %s13, 5
    %p306 = pnand %p304, %p305
    %p307 = pneg %p306
    // Predicated region
    $region45: #{augmented_conv_forward.2} parent=5 // pred_check
      _
    $region46: #{augmented_conv_forward.2} parent=5 // pred_check_branch
      %309 = sbr.rel (%p306) target = $region48
    $region47: #{augmented_conv_forward.2} parent=5 // pred_region
      %s310 = ssub.s32 %s13, 1
      %p311 = scmp.lt.s32.totalorder %s22, 1
      %s312 = scalar_select %p311, %s22, 1
      %s313 = smul.addr %s312, 2
      %s314 = smul.addr %s313, 8
      %s315 = scalar_lea.vmem %s0, %s314
      %p316 = pneg %p51
      %p317 = pneg %p48
      %p318 = scmp.lt.s32.totalorder %s23, 1
      %s319 = scalar_select %p318, %s23, 1
      %s320 = smul.addr %s319, 8
      %s321 = scalar_lea.vmem %s1, %s320
      %p322 = pneg %p77
      %p323 = pneg %p74
      %p324 = scmp.lt.s32.totalorder %s23, 1
      %s325 = scalar_select %p324, %s23, 1
      %s326 = smul.addr %s325, 8
      %s327 = scalar_lea.vmem %s2, %s326
      %p328 = pneg %p103
      %p329 = pneg %p100
      %p330 = scmp.lt.s32.totalorder %s23, 1
      %s331 = scalar_select %p330, %s23, 1
      %s332 = smul.addr %s331, 8
      %s333 = scalar_lea.vmem %s3, %s332
      %p334 = pneg %p129
      %p335 = pneg %p126
      %p336 = scmp.lt.s32.totalorder %s23, 1
      %s337 = scalar_select %p336, %s23, 1
      %s338 = smul.addr %s337, 8
      %s339 = scalar_lea.vmem %s4, %s338
      %p340 = pneg %p155
      %p341 = pneg %p152
      %p342 = scmp.lt.s32.totalorder %s23, 1
      %s343 = scalar_select %p342, %s23, 1
      %s344 = smul.addr %s343, 8
      %s345 = scalar_lea.vmem %s5, %s344
      %p346 = pneg %p181
      %p347 = pneg %p178
      %p348 = scmp.lt.s32.totalorder %s23, 1
      %s349 = scalar_select %p348, %s23, 1
      %s350 = smul.addr %s349, 8
      %s351 = scalar_lea.vmem %s6, %s350
      %p352 = pneg %p207
      %p353 = pneg %p204
      %p354 = pneg %p235
      %p355 = pneg %p232
      %p356 = scmp.lt.s32.totalorder %s22, 1
      %s357 = scalar_select %p356, %s22, 1
      %p358 = scmp.lt.s32.totalorder %s23, 1
      %s359 = scalar_select %p358, %s23, 1
      %s360 = smul.addr %s359, 2
      %s361 = smul.addr %s357, 4
      %s362 = sadd.s32 %s360, %s361
      %s363 = smul.addr %s362, 8
      %s364 = scalar_lea.vmem %s7, %s363
      %p365 = scmp.lt.s32.totalorder %s22, 1
      %s366 = scalar_select %p365, %s22, 1
      %s367 = smul.addr %s366, 2
      %s368 = smul.addr %s367, 8
      %s369 = scalar_lea.vmem %s0, %s368
      %p370 = scmp.lt.s32.totalorder %s23, 1
      %s371 = scalar_select %p370, %s23, 1
      %s372 = smul.addr %s371, 8
      %s373 = scalar_lea.vmem %s1, %s372
      %p374 = scmp.lt.s32.totalorder %s23, 1
      %s375 = scalar_select %p374, %s23, 1
      %s376 = smul.addr %s375, 8
      %s377 = scalar_lea.vmem %s2, %s376
      %p378 = scmp.lt.s32.totalorder %s23, 1
      %s379 = scalar_select %p378, %s23, 1
      %s380 = smul.addr %s379, 8
      %s381 = scalar_lea.vmem %s3, %s380
      %p382 = scmp.lt.s32.totalorder %s23, 1
      %s383 = scalar_select %p382, %s23, 1
      %s384 = smul.addr %s383, 8
      %s385 = scalar_lea.vmem %s4, %s384
      %p386 = scmp.lt.s32.totalorder %s23, 1
      %s387 = scalar_select %p386, %s23, 1
      %s388 = smul.addr %s387, 8
      %s389 = scalar_lea.vmem %s5, %s388
      %p390 = scmp.lt.s32.totalorder %s23, 1
      %s391 = scalar_select %p390, %s23, 1
      %s392 = smul.addr %s391, 8
      %s393 = scalar_lea.vmem %s6, %s392
      %p394 = scmp.lt.s32.totalorder %s22, 1
      %s395 = scalar_select %p394, %s22, 1
      %p396 = scmp.lt.s32.totalorder %s23, 1
      %s397 = scalar_select %p396, %s23, 1
      %s398 = smul.addr %s397, 2
      %s399 = smul.addr %s395, 4
      %s400 = sadd.s32 %s398, %s399
      %s401 = smul.addr %s400, 8
      %s402 = scalar_lea.vmem %s7, %s401
      %v403 = vld [vmem:[%s369] sm:$0xff]
      %v404 = vld [vmem:[%s369 + $0x8] sm:$0xff]
      %v405 = vld [vmem:[%s373] sm:$0xff]
      %v406 = vld [vmem:[%s385] sm:$0xff]
      %408 = vset.pattern.permute.xlu0 0
      %409 = vperm.xlu0 %408, %v406
      %v410 = vpop.permute.xlu0 %409
      %vm412 = vcmask 64512
      %v414 = vsel %vm412, %v405, 0
      %416 = vmatprep.subr.mxu0 0.0
      %417 = vmatpush1.msra.mxu0 0.0
      %418 = vmatprep.subr.mxu0 0.0
      %419 = vmatpush1.msra.mxu0 0.0
      %420 = vmatprep.subr.mxu0 0.0
      %421 = vmatpush1.msra.mxu0 0.0
      %422 = vmatprep.subr.mxu0 0.0
      %423 = vmatpush1.msra.mxu0 0.0
      %424 = vmatprep.subr.mxu0 0.0
      %425 = vmatpush1.msra.mxu0 0.0
      %426 = vmatprep.subr.mxu0 0.0
      %427 = vmatpush1.msra.mxu0 0.0
      %428 = vmatprep.subr.mxu0 0.0
      %429 = vmatpush1.msra.mxu0 0.0
      %430 = vmatprep.subr.mxu0 0.0
      %431 = vmatpush1.msra.mxu0 0.0
      %432 = vmatprep.subr.mxu0 0.0
      %433 = vmatpush1.msra.mxu0 0.0
      %434 = vmatprep.subr.mxu0 0.0
      %435 = vmatpush1.msra.mxu0 0.0
      %436 = vmatprep.subr.mxu0 0.0
      %437 = vmatpush1.msra.mxu0 0.0
      %438 = vmatprep.subr.mxu0 0.0
      %439 = vmatpush1.msra.mxu0 0.0
      %440 = vmatprep.subr.mxu0 0.0
      %441 = vmatpush1.msra.mxu0 0.0
      %442 = vmatprep.subr.mxu0 0.0
      %443 = vmatpush1.msra.mxu0 0.0
      %444 = vmatprep.subr.mxu0 0.0
      %445 = vmatpush1.msra.mxu0 0.0
      %446 = vmatprep.subr.mxu0 %v404
      %447 = vmatpush1.msra.mxu0 %v403
      %448 = vmatprep.subr.mxu0 0.0
      %449 = vmatpush2.msra.mxu0 0.0
      %450 = vmatprep.subr.mxu0 0.0
      %451 = vmatpush2.msra.mxu0 0.0
      %452 = vmatprep.subr.mxu0 0.0
      %453 = vmatpush2.msra.mxu0 0.0
      %454 = vmatprep.subr.mxu0 0.0
      %455 = vmatpush2.msra.mxu0 0.0
      %456 = vmatprep.subr.mxu0 0.0
      %457 = vmatpush2.msra.mxu0 0.0
      %458 = vmatprep.subr.mxu0 0.0
      %459 = vmatpush2.msra.mxu0 0.0
      %460 = vmatprep.subr.mxu0 0.0
      %461 = vmatpush2.msra.mxu0 0.0
      %462 = vmatprep.subr.mxu0 0.0
      %463 = vmatpush2.msra.mxu0 0.0
      %464 = vmatprep.subr.mxu0 0.0
      %465 = vmatpush2.msra.mxu0 0.0
      %466 = vmatprep.subr.mxu0 0.0
      %467 = vmatpush2.msra.mxu0 0.0
      %468 = vmatprep.subr.mxu0 0.0
      %469 = vmatpush2.msra.mxu0 0.0
      %470 = vmatprep.subr.mxu0 0.0
      %471 = vmatpush2.msra.mxu0 0.0
      %472 = vmatprep.subr.mxu0 0.0
      %473 = vmatpush2.msra.mxu0 0.0
      %474 = vmatprep.subr.mxu0 0.0
      %475 = vmatpush2.msra.mxu0 0.0
      %476 = vmatprep.subr.mxu0 0.0
      %477 = vmatpush2.msra.mxu0 0.0
      %478 = vmatprep.subr.mxu0 0.0
      %479 = vmatpush2.msra.mxu0 0.0
      %480 = vmatprep.mubr.f32.mxu0 0.0
      %481 = vmatmul.mubr.f32.gmra.mxu0 %v414
      %v482 = vpop.f32.mrf.mxu0
      %v483 = vadd.f32 %v410, %v482
      %v484 = vpop.f32.mrf.mxu0
      %v485 = vadd.f32 %v410, %v484
      %486 = vdwg.mxu0
      %v487 = vmul.f32 %v483, 0.35355338
      %v488 = vmul.f32 %v485, 0.35355338
      %v489 = vld [vmem:[%s377] sm:$0xff]
      %v490 = vld [vmem:[%s389] sm:$0xff]
      %492 = vset.pattern.permute.xlu0 0
      %493 = vperm.xlu0 %492, %v490
      %v494 = vpop.permute.xlu0 %493
      %v497 = vsel %vm412, %v489, 0
      %499 = vmatprep.subr.mxu0 0.0
      %500 = vmatpush1.msra.mxu0 0.0
      %501 = vmatprep.subr.mxu0 0.0
      %502 = vmatpush1.msra.mxu0 0.0
      %503 = vmatprep.subr.mxu0 0.0
      %504 = vmatpush1.msra.mxu0 0.0
      %505 = vmatprep.subr.mxu0 0.0
      %506 = vmatpush1.msra.mxu0 0.0
      %507 = vmatprep.subr.mxu0 0.0
      %508 = vmatpush1.msra.mxu0 0.0
      %509 = vmatprep.subr.mxu0 0.0
      %510 = vmatpush1.msra.mxu0 0.0
      %511 = vmatprep.subr.mxu0 0.0
      %512 = vmatpush1.msra.mxu0 0.0
      %513 = vmatprep.subr.mxu0 0.0
      %514 = vmatpush1.msra.mxu0 0.0
      %515 = vmatprep.subr.mxu0 0.0
      %516 = vmatpush1.msra.mxu0 0.0
      %517 = vmatprep.subr.mxu0 0.0
      %518 = vmatpush1.msra.mxu0 0.0
      %519 = vmatprep.subr.mxu0 0.0
      %520 = vmatpush1.msra.mxu0 0.0
      %521 = vmatprep.subr.mxu0 0.0
      %522 = vmatpush1.msra.mxu0 0.0
      %523 = vmatprep.subr.mxu0 0.0
      %524 = vmatpush1.msra.mxu0 0.0
      %525 = vmatprep.subr.mxu0 0.0
      %526 = vmatpush1.msra.mxu0 0.0
      %527 = vmatprep.subr.mxu0 0.0
      %528 = vmatpush1.msra.mxu0 0.0
      %529 = vmatprep.subr.mxu0 %v404
      %530 = vmatpush1.msra.mxu0 %v403
      %531 = vmatprep.subr.mxu0 0.0
      %532 = vmatpush2.msra.mxu0 0.0
      %533 = vmatprep.subr.mxu0 0.0
      %534 = vmatpush2.msra.mxu0 0.0
      %535 = vmatprep.subr.mxu0 0.0
      %536 = vmatpush2.msra.mxu0 0.0
      %537 = vmatprep.subr.mxu0 0.0
      %538 = vmatpush2.msra.mxu0 0.0
      %539 = vmatprep.subr.mxu0 0.0
      %540 = vmatpush2.msra.mxu0 0.0
      %541 = vmatprep.subr.mxu0 0.0
      %542 = vmatpush2.msra.mxu0 0.0
      %543 = vmatprep.subr.mxu0 0.0
      %544 = vmatpush2.msra.mxu0 0.0
      %545 = vmatprep.subr.mxu0 0.0
      %546 = vmatpush2.msra.mxu0 0.0
      %547 = vmatprep.subr.mxu0 0.0
      %548 = vmatpush2.msra.mxu0 0.0
      %549 = vmatprep.subr.mxu0 0.0
      %550 = vmatpush2.msra.mxu0 0.0
      %551 = vmatprep.subr.mxu0 0.0
      %552 = vmatpush2.msra.mxu0 0.0
      %553 = vmatprep.subr.mxu0 0.0
      %554 = vmatpush2.msra.mxu0 0.0
      %555 = vmatprep.subr.mxu0 0.0
      %556 = vmatpush2.msra.mxu0 0.0
      %557 = vmatprep.subr.mxu0 0.0
      %558 = vmatpush2.msra.mxu0 0.0
      %559 = vmatprep.subr.mxu0 0.0
      %560 = vmatpush2.msra.mxu0 0.0
      %561 = vmatprep.subr.mxu0 0.0
      %562 = vmatpush2.msra.mxu0 0.0
      %563 = vmatprep.mubr.f32.mxu0 0.0
      %564 = vmatmul.mubr.f32.gmra.mxu0 %v497
      %v565 = vpop.f32.mrf.mxu0
      %v566 = vadd.f32 %v494, %v565
      %v567 = vpop.f32.mrf.mxu0
      %v568 = vadd.f32 %v494, %v567
      %569 = vdwg.mxu0
      %v570 = vld [vmem:[%s381] sm:$0xff]
      %v571 = vld [vmem:[%s393] sm:$0xff]
      %573 = vset.pattern.permute.xlu0 0
      %574 = vperm.xlu0 %573, %v571
      %v575 = vpop.permute.xlu0 %574
      %v578 = vsel %vm412, %v570, 0
      %580 = vmatprep.subr.mxu0 0.0
      %581 = vmatpush1.msra.mxu0 0.0
      %582 = vmatprep.subr.mxu0 0.0
      %583 = vmatpush1.msra.mxu0 0.0
      %584 = vmatprep.subr.mxu0 0.0
      %585 = vmatpush1.msra.mxu0 0.0
      %586 = vmatprep.subr.mxu0 0.0
      %587 = vmatpush1.msra.mxu0 0.0
      %588 = vmatprep.subr.mxu0 0.0
      %589 = vmatpush1.msra.mxu0 0.0
      %590 = vmatprep.subr.mxu0 0.0
      %591 = vmatpush1.msra.mxu0 0.0
      %592 = vmatprep.subr.mxu0 0.0
      %593 = vmatpush1.msra.mxu0 0.0
      %594 = vmatprep.subr.mxu0 0.0
      %595 = vmatpush1.msra.mxu0 0.0
      %596 = vmatprep.subr.mxu0 0.0
      %597 = vmatpush1.msra.mxu0 0.0
      %598 = vmatprep.subr.mxu0 0.0
      %599 = vmatpush1.msra.mxu0 0.0
      %600 = vmatprep.subr.mxu0 0.0
      %601 = vmatpush1.msra.mxu0 0.0
      %602 = vmatprep.subr.mxu0 0.0
      %603 = vmatpush1.msra.mxu0 0.0
      %604 = vmatprep.subr.mxu0 0.0
      %605 = vmatpush1.msra.mxu0 0.0
      %606 = vmatprep.subr.mxu0 0.0
      %607 = vmatpush1.msra.mxu0 0.0
      %608 = vmatprep.subr.mxu0 0.0
      %609 = vmatpush1.msra.mxu0 0.0
      %610 = vmatprep.subr.mxu0 %v404
      %611 = vmatpush1.msra.mxu0 %v403
      %612 = vmatprep.subr.mxu0 0.0
      %613 = vmatpush2.msra.mxu0 0.0
      %614 = vmatprep.subr.mxu0 0.0
      %615 = vmatpush2.msra.mxu0 0.0
      %616 = vmatprep.subr.mxu0 0.0
      %617 = vmatpush2.msra.mxu0 0.0
      %618 = vmatprep.subr.mxu0 0.0
      %619 = vmatpush2.msra.mxu0 0.0
      %620 = vmatprep.subr.mxu0 0.0
      %621 = vmatpush2.msra.mxu0 0.0
      %622 = vmatprep.subr.mxu0 0.0
      %623 = vmatpush2.msra.mxu0 0.0
      %624 = vmatprep.subr.mxu0 0.0
      %625 = vmatpush2.msra.mxu0 0.0
      %626 = vmatprep.subr.mxu0 0.0
      %627 = vmatpush2.msra.mxu0 0.0
      %628 = vmatprep.subr.mxu0 0.0
      %629 = vmatpush2.msra.mxu0 0.0
      %630 = vmatprep.subr.mxu0 0.0
      %631 = vmatpush2.msra.mxu0 0.0
      %632 = vmatprep.subr.mxu0 0.0
      %633 = vmatpush2.msra.mxu0 0.0
      %634 = vmatprep.subr.mxu0 0.0
      %635 = vmatpush2.msra.mxu0 0.0
      %636 = vmatprep.subr.mxu0 0.0
      %637 = vmatpush2.msra.mxu0 0.0
      %638 = vmatprep.subr.mxu0 0.0
      %639 = vmatpush2.msra.mxu0 0.0
      %640 = vmatprep.subr.mxu0 0.0
      %641 = vmatpush2.msra.mxu0 0.0
      %642 = vmatprep.subr.mxu0 0.0
      %643 = vmatpush2.msra.mxu0 0.0
      %644 = vmatprep.mubr.f32.mxu0 0.0
      %645 = vmatmul.mubr.f32.gmra.mxu0 %v578
      %v646 = vpop.f32.mrf.mxu0
      %v647 = vadd.f32 %v575, %v646
      %v648 = vpop.f32.mrf.mxu0
      %v649 = vadd.f32 %v575, %v648
      %650 = vdwg.mxu0
      %651 = vxpose.xlu0.b32.start [1/16] %v487, 128
      %652 = vxpose.xlu0.b32.cont [2/16] 0.0, 128
      %653 = vxpose.xlu0.b32.cont [3/16] 0.0, 128
      %654 = vxpose.xlu0.b32.cont [4/16] 0.0, 128
      %655 = vxpose.xlu0.b32.cont [5/16] 0.0, 128
      %656 = vxpose.xlu0.b32.cont [6/16] 0.0, 128
      %657 = vxpose.xlu0.b32.cont [7/16] 0.0, 128
      %658 = vxpose.xlu0.b32.cont [8/16] 0.0, 128
      %659 = vxpose.xlu0.b32.cont [9/16] 0.0, 128
      %660 = vxpose.xlu0.b32.cont [10/16] 0.0, 128
      %661 = vxpose.xlu0.b32.cont [11/16] 0.0, 128
      %662 = vxpose.xlu0.b32.cont [12/16] 0.0, 128
      %663 = vxpose.xlu0.b32.cont [13/16] 0.0, 128
      %664 = vxpose.xlu0.b32.cont [14/16] 0.0, 128
      %665 = vxpose.xlu0.b32.cont [15/16] 0.0, 128
      %666 = vxpose.xlu0.b32.end [16/16] 0.0, 128
      %v667 = vpop.trf.xlu0
      %v668 = vpop.trf.xlu0
      %v669 = vpop.trf.xlu0
      %v670 = vpop.trf.xlu0
      %v671 = vpop.trf.xlu0
      %v672 = vpop.trf.xlu0
      %v673 = vpop.trf.xlu0
      %v674 = vpop.trf.xlu0
      %v675 = vpop.trf.xlu0
      %v676 = vpop.trf.xlu0
      %v677 = vpop.trf.xlu0
      %v678 = vpop.trf.xlu0
      %v679 = vpop.trf.xlu0
      %v680 = vpop.trf.xlu0
      %v681 = vpop.trf.xlu0
      %v682 = vpop.trf.xlu0
      %683 = vxpose.xlu0.b32.start [1/16] %v488, 128
      %684 = vxpose.xlu0.b32.cont [2/16] 0.0, 128
      %685 = vxpose.xlu0.b32.cont [3/16] 0.0, 128
      %686 = vxpose.xlu0.b32.cont [4/16] 0.0, 128
      %687 = vxpose.xlu0.b32.cont [5/16] 0.0, 128
      %688 = vxpose.xlu0.b32.cont [6/16] 0.0, 128
      %689 = vxpose.xlu0.b32.cont [7/16] 0.0, 128
      %690 = vxpose.xlu0.b32.cont [8/16] 0.0, 128
      %691 = vxpose.xlu0.b32.cont [9/16] 0.0, 128
      %692 = vxpose.xlu0.b32.cont [10/16] 0.0, 128
      %693 = vxpose.xlu0.b32.cont [11/16] 0.0, 128
      %694 = vxpose.xlu0.b32.cont [12/16] 0.0, 128
      %695 = vxpose.xlu0.b32.cont [13/16] 0.0, 128
      %696 = vxpose.xlu0.b32.cont [14/16] 0.0, 128
      %697 = vxpose.xlu0.b32.cont [15/16] 0.0, 128
      %698 = vxpose.xlu0.b32.end [16/16] 0.0, 128
      %v699 = vpop.trf.xlu0
      %v700 = vpop.trf.xlu0
      %v701 = vpop.trf.xlu0
      %v702 = vpop.trf.xlu0
      %v703 = vpop.trf.xlu0
      %v704 = vpop.trf.xlu0
      %v705 = vpop.trf.xlu0
      %v706 = vpop.trf.xlu0
      %v707 = vpop.trf.xlu0
      %v708 = vpop.trf.xlu0
      %v709 = vpop.trf.xlu0
      %v710 = vpop.trf.xlu0
      %v711 = vpop.trf.xlu0
      %v712 = vpop.trf.xlu0
      %v713 = vpop.trf.xlu0
      %v714 = vpop.trf.xlu0
      %v716 = vsel %vm412, %v667, 0
      %v719 = vsel %vm412, %v668, 0
      %v722 = vsel %vm412, %v669, 0
      %v725 = vsel %vm412, %v670, 0
      %v728 = vsel %vm412, %v671, 0
      %v731 = vsel %vm412, %v672, 0
      %v734 = vsel %vm412, %v673, 0
      %v737 = vsel %vm412, %v674, 0
      %v740 = vsel %vm412, %v675, 0
      %v743 = vsel %vm412, %v676, 0
      %v746 = vsel %vm412, %v677, 0
      %v749 = vsel %vm412, %v678, 0
      %v752 = vsel %vm412, %v679, 0
      %v755 = vsel %vm412, %v680, 0
      %v758 = vsel %vm412, %v681, 0
      %v761 = vsel %vm412, %v682, 0
      %v764 = vsel %vm412, %v699, 0
      %v767 = vsel %vm412, %v700, 0
      %v770 = vsel %vm412, %v701, 0
      %v773 = vsel %vm412, %v702, 0
      %v776 = vsel %vm412, %v703, 0
      %v779 = vsel %vm412, %v704, 0
      %v782 = vsel %vm412, %v705, 0
      %v785 = vsel %vm412, %v706, 0
      %v788 = vsel %vm412, %v707, 0
      %v791 = vsel %vm412, %v708, 0
      %v794 = vsel %vm412, %v709, 0
      %v797 = vsel %vm412, %v710, 0
      %v800 = vsel %vm412, %v711, 0
      %v803 = vsel %vm412, %v712, 0
      %v806 = vsel %vm412, %v713, 0
      %v809 = vsel %vm412, %v714, 0
      %811 = vmatprep.subr.mxu0 0.0
      %812 = vmatpush1.msra.mxu0 0.0
      %813 = vmatprep.subr.mxu0 0.0
      %814 = vmatpush1.msra.mxu0 0.0
      %815 = vmatprep.subr.mxu0 0.0
      %816 = vmatpush1.msra.mxu0 0.0
      %817 = vmatprep.subr.mxu0 0.0
      %818 = vmatpush1.msra.mxu0 0.0
      %819 = vmatprep.subr.mxu0 0.0
      %820 = vmatpush1.msra.mxu0 0.0
      %821 = vmatprep.subr.mxu0 0.0
      %822 = vmatpush1.msra.mxu0 0.0
      %823 = vmatprep.subr.mxu0 0.0
      %824 = vmatpush1.msra.mxu0 0.0
      %825 = vmatprep.subr.mxu0 0.0
      %826 = vmatpush1.msra.mxu0 0.0
      %827 = vmatprep.subr.mxu0 0.0
      %828 = vmatpush1.msra.mxu0 0.0
      %829 = vmatprep.subr.mxu0 0.0
      %830 = vmatpush1.msra.mxu0 0.0
      %831 = vmatprep.subr.mxu0 0.0
      %832 = vmatpush1.msra.mxu0 0.0
      %833 = vmatprep.subr.mxu0 0.0
      %834 = vmatpush1.msra.mxu0 0.0
      %835 = vmatprep.subr.mxu0 0.0
      %836 = vmatpush1.msra.mxu0 0.0
      %837 = vmatprep.subr.mxu0 0.0
      %838 = vmatpush1.msra.mxu0 0.0
      %839 = vmatprep.subr.mxu0 0.0
      %840 = vmatpush1.msra.mxu0 0.0
      %841 = vmatprep.subr.mxu0 %v568
      %842 = vmatpush1.msra.mxu0 %v566
      %843 = vmatprep.subr.mxu0 0.0
      %844 = vmatpush2.msra.mxu0 0.0
      %845 = vmatprep.subr.mxu0 0.0
      %846 = vmatpush2.msra.mxu0 0.0
      %847 = vmatprep.subr.mxu0 0.0
      %848 = vmatpush2.msra.mxu0 0.0
      %849 = vmatprep.subr.mxu0 0.0
      %850 = vmatpush2.msra.mxu0 0.0
      %851 = vmatprep.subr.mxu0 0.0
      %852 = vmatpush2.msra.mxu0 0.0
      %853 = vmatprep.subr.mxu0 0.0
      %854 = vmatpush2.msra.mxu0 0.0
      %855 = vmatprep.subr.mxu0 0.0
      %856 = vmatpush2.msra.mxu0 0.0
      %857 = vmatprep.subr.mxu0 0.0
      %858 = vmatpush2.msra.mxu0 0.0
      %859 = vmatprep.subr.mxu0 0.0
      %860 = vmatpush2.msra.mxu0 0.0
      %861 = vmatprep.subr.mxu0 0.0
      %862 = vmatpush2.msra.mxu0 0.0
      %863 = vmatprep.subr.mxu0 0.0
      %864 = vmatpush2.msra.mxu0 0.0
      %865 = vmatprep.subr.mxu0 0.0
      %866 = vmatpush2.msra.mxu0 0.0
      %867 = vmatprep.subr.mxu0 0.0
      %868 = vmatpush2.msra.mxu0 0.0
      %869 = vmatprep.subr.mxu0 0.0
      %870 = vmatpush2.msra.mxu0 0.0
      %871 = vmatprep.subr.mxu0 0.0
      %872 = vmatpush2.msra.mxu0 0.0
      %873 = vmatprep.subr.mxu0 0.0
      %874 = vmatpush2.msra.mxu0 0.0
      %875 = vmatprep.mubr.f32.mxu0 0.0
      %876 = vmatmul.mubr.f32.gmra.mxu0 %v716
      %v877 = vpop.f32.mrf.mxu0
      %v878 = vadd.f32 0.0, %v877
      %v879 = vpop.f32.mrf.mxu0
      %v880 = vadd.f32 0.0, %v879
      %881 = vmatprep.mubr.f32.mxu0 0.0
      %882 = vmatmul.mubr.f32.gmra.mxu0 %v719
      %v883 = vpop.f32.mrf.mxu0
      %v884 = vadd.f32 0.0, %v883
      %v885 = vpop.f32.mrf.mxu0
      %v886 = vadd.f32 0.0, %v885
      %887 = vmatprep.mubr.f32.mxu0 0.0
      %888 = vmatmul.mubr.f32.gmra.mxu0 %v722
      %v889 = vpop.f32.mrf.mxu0
      %v890 = vadd.f32 0.0, %v889
      %v891 = vpop.f32.mrf.mxu0
      %v892 = vadd.f32 0.0, %v891
      %893 = vmatprep.mubr.f32.mxu0 0.0
      %894 = vmatmul.mubr.f32.gmra.mxu0 %v725
      %v895 = vpop.f32.mrf.mxu0
      %v896 = vadd.f32 0.0, %v895
      %v897 = vpop.f32.mrf.mxu0
      %v898 = vadd.f32 0.0, %v897
      %899 = vmatprep.mubr.f32.mxu0 0.0
      %900 = vmatmul.mubr.f32.gmra.mxu0 %v728
      %v901 = vpop.f32.mrf.mxu0
      %v902 = vadd.f32 0.0, %v901
      %v903 = vpop.f32.mrf.mxu0
      %v904 = vadd.f32 0.0, %v903
      %905 = vmatprep.mubr.f32.mxu0 0.0
      %906 = vmatmul.mubr.f32.gmra.mxu0 %v731
      %v907 = vpop.f32.mrf.mxu0
      %v908 = vadd.f32 0.0, %v907
      %v909 = vpop.f32.mrf.mxu0
      %v910 = vadd.f32 0.0, %v909
      %911 = vmatprep.mubr.f32.mxu0 0.0
      %912 = vmatmul.mubr.f32.gmra.mxu0 %v734
      %v913 = vpop.f32.mrf.mxu0
      %v914 = vadd.f32 0.0, %v913
      %v915 = vpop.f32.mrf.mxu0
      %v916 = vadd.f32 0.0, %v915
      %917 = vmatprep.mubr.f32.mxu0 0.0
      %918 = vmatmul.mubr.f32.gmra.mxu0 %v737
      %v919 = vpop.f32.mrf.mxu0
      %v920 = vadd.f32 0.0, %v919
      %v921 = vpop.f32.mrf.mxu0
      %v922 = vadd.f32 0.0, %v921
      %923 = vmatprep.mubr.f32.mxu0 0.0
      %924 = vmatmul.mubr.f32.gmra.mxu0 %v740
      %v925 = vpop.f32.mrf.mxu0
      %v926 = vadd.f32 0.0, %v925
      %v927 = vpop.f32.mrf.mxu0
      %v928 = vadd.f32 0.0, %v927
      %929 = vmatprep.mubr.f32.mxu0 0.0
      %930 = vmatmul.mubr.f32.gmra.mxu0 %v743
      %v931 = vpop.f32.mrf.mxu0
      %v932 = vadd.f32 0.0, %v931
      %v933 = vpop.f32.mrf.mxu0
      %v934 = vadd.f32 0.0, %v933
      %935 = vmatprep.mubr.f32.mxu0 0.0
      %936 = vmatmul.mubr.f32.gmra.mxu0 %v746
      %v937 = vpop.f32.mrf.mxu0
      %v938 = vadd.f32 0.0, %v937
      %v939 = vpop.f32.mrf.mxu0
      %v940 = vadd.f32 0.0, %v939
      %941 = vmatprep.mubr.f32.mxu0 0.0
      %942 = vmatmul.mubr.f32.gmra.mxu0 %v749
      %v943 = vpop.f32.mrf.mxu0
      %v944 = vadd.f32 0.0, %v943
      %v945 = vpop.f32.mrf.mxu0
      %v946 = vadd.f32 0.0, %v945
      %947 = vmatprep.mubr.f32.mxu0 0.0
      %948 = vmatmul.mubr.f32.gmra.mxu0 %v752
      %v949 = vpop.f32.mrf.mxu0
      %v950 = vadd.f32 0.0, %v949
      %v951 = vpop.f32.mrf.mxu0
      %v952 = vadd.f32 0.0, %v951
      %953 = vmatprep.mubr.f32.mxu0 0.0
      %954 = vmatmul.mubr.f32.gmra.mxu0 %v755
      %v955 = vpop.f32.mrf.mxu0
      %v956 = vadd.f32 0.0, %v955
      %v957 = vpop.f32.mrf.mxu0
      %v958 = vadd.f32 0.0, %v957
      %959 = vmatprep.mubr.f32.mxu0 0.0
      %960 = vmatmul.mubr.f32.gmra.mxu0 %v758
      %v961 = vpop.f32.mrf.mxu0
      %v962 = vadd.f32 0.0, %v961
      %v963 = vpop.f32.mrf.mxu0
      %v964 = vadd.f32 0.0, %v963
      %965 = vmatprep.mubr.f32.mxu0 0.0
      %966 = vmatmul.mubr.f32.gmra.mxu0 %v761
      %v967 = vpop.f32.mrf.mxu0
      %v968 = vadd.f32 0.0, %v967
      %v969 = vpop.f32.mrf.mxu0
      %v970 = vadd.f32 0.0, %v969
      %971 = vmatprep.mubr.f32.mxu0 0.0
      %972 = vmatmul.mubr.f32.gmra.mxu0 %v764
      %v973 = vpop.f32.mrf.mxu0
      %v974 = vadd.f32 0.0, %v973
      %v975 = vpop.f32.mrf.mxu0
      %v976 = vadd.f32 0.0, %v975
      %977 = vmatprep.mubr.f32.mxu0 0.0
      %978 = vmatmul.mubr.f32.gmra.mxu0 %v767
      %v979 = vpop.f32.mrf.mxu0
      %v980 = vadd.f32 0.0, %v979
      %v981 = vpop.f32.mrf.mxu0
      %v982 = vadd.f32 0.0, %v981
      %983 = vmatprep.mubr.f32.mxu0 0.0
      %984 = vmatmul.mubr.f32.gmra.mxu0 %v770
      %v985 = vpop.f32.mrf.mxu0
      %v986 = vadd.f32 0.0, %v985
      %v987 = vpop.f32.mrf.mxu0
      %v988 = vadd.f32 0.0, %v987
      %989 = vmatprep.mubr.f32.mxu0 0.0
      %990 = vmatmul.mubr.f32.gmra.mxu0 %v773
      %v991 = vpop.f32.mrf.mxu0
      %v992 = vadd.f32 0.0, %v991
      %v993 = vpop.f32.mrf.mxu0
      %v994 = vadd.f32 0.0, %v993
      %995 = vmatprep.mubr.f32.mxu0 0.0
      %996 = vmatmul.mubr.f32.gmra.mxu0 %v776
      %v997 = vpop.f32.mrf.mxu0
      %v998 = vadd.f32 0.0, %v997
      %v999 = vpop.f32.mrf.mxu0
      %v1000 = vadd.f32 0.0, %v999
      %1001 = vmatprep.mubr.f32.mxu0 0.0
      %1002 = vmatmul.mubr.f32.gmra.mxu0 %v779
      %v1003 = vpop.f32.mrf.mxu0
      %v1004 = vadd.f32 0.0, %v1003
      %v1005 = vpop.f32.mrf.mxu0
      %v1006 = vadd.f32 0.0, %v1005
      %1007 = vmatprep.mubr.f32.mxu0 0.0
      %1008 = vmatmul.mubr.f32.gmra.mxu0 %v782
      %v1009 = vpop.f32.mrf.mxu0
      %v1010 = vadd.f32 0.0, %v1009
      %v1011 = vpop.f32.mrf.mxu0
      %v1012 = vadd.f32 0.0, %v1011
      %1013 = vmatprep.mubr.f32.mxu0 0.0
      %1014 = vmatmul.mubr.f32.gmra.mxu0 %v785
      %v1015 = vpop.f32.mrf.mxu0
      %v1016 = vadd.f32 0.0, %v1015
      %v1017 = vpop.f32.mrf.mxu0
      %v1018 = vadd.f32 0.0, %v1017
      %1019 = vmatprep.mubr.f32.mxu0 0.0
      %1020 = vmatmul.mubr.f32.gmra.mxu0 %v788
      %v1021 = vpop.f32.mrf.mxu0
      %v1022 = vadd.f32 0.0, %v1021
      %v1023 = vpop.f32.mrf.mxu0
      %v1024 = vadd.f32 0.0, %v1023
      %1025 = vmatprep.mubr.f32.mxu0 0.0
      %1026 = vmatmul.mubr.f32.gmra.mxu0 %v791
      %v1027 = vpop.f32.mrf.mxu0
      %v1028 = vadd.f32 0.0, %v1027
      %v1029 = vpop.f32.mrf.mxu0
      %v1030 = vadd.f32 0.0, %v1029
      %1031 = vmatprep.mubr.f32.mxu0 0.0
      %1032 = vmatmul.mubr.f32.gmra.mxu0 %v794
      %v1033 = vpop.f32.mrf.mxu0
      %v1034 = vadd.f32 0.0, %v1033
      %v1035 = vpop.f32.mrf.mxu0
      %v1036 = vadd.f32 0.0, %v1035
      %1037 = vmatprep.mubr.f32.mxu0 0.0
      %1038 = vmatmul.mubr.f32.gmra.mxu0 %v797
      %v1039 = vpop.f32.mrf.mxu0
      %v1040 = vadd.f32 0.0, %v1039
      %v1041 = vpop.f32.mrf.mxu0
      %v1042 = vadd.f32 0.0, %v1041
      %1043 = vmatprep.mubr.f32.mxu0 0.0
      %1044 = vmatmul.mubr.f32.gmra.mxu0 %v800
      %v1045 = vpop.f32.mrf.mxu0
      %v1046 = vadd.f32 0.0, %v1045
      %v1047 = vpop.f32.mrf.mxu0
      %v1048 = vadd.f32 0.0, %v1047
      %1049 = vmatprep.mubr.f32.mxu0 0.0
      %1050 = vmatmul.mubr.f32.gmra.mxu0 %v803
      %v1051 = vpop.f32.mrf.mxu0
      %v1052 = vadd.f32 0.0, %v1051
      %v1053 = vpop.f32.mrf.mxu0
      %v1054 = vadd.f32 0.0, %v1053
      %1055 = vmatprep.mubr.f32.mxu0 0.0
      %1056 = vmatmul.mubr.f32.gmra.mxu0 %v806
      %v1057 = vpop.f32.mrf.mxu0
      %v1058 = vadd.f32 0.0, %v1057
      %v1059 = vpop.f32.mrf.mxu0
      %v1060 = vadd.f32 0.0, %v1059
      %1061 = vmatprep.mubr.f32.mxu0 0.0
      %1062 = vmatmul.mubr.f32.gmra.mxu0 %v809
      %v1063 = vpop.f32.mrf.mxu0
      %v1064 = vadd.f32 0.0, %v1063
      %v1065 = vpop.f32.mrf.mxu0
      %v1066 = vadd.f32 0.0, %v1065
      %1067 = vdwg.mxu0
      %v1068 = vmax.f32 %v878, %v880
      %1069 = vmax.xlane.f32.xlu0 %v1068
      %v1070 = vpop.xlane.xlu0 %1069
      %v1071 = vmax.f32 %v884, %v886
      %1072 = vmax.xlane.f32.xlu0 %v1071
      %v1073 = vpop.xlane.xlu0 %1072
      %v1074 = vmax.f32 %v890, %v892
      %1075 = vmax.xlane.f32.xlu0 %v1074
      %v1076 = vpop.xlane.xlu0 %1075
      %v1077 = vmax.f32 %v896, %v898
      %1078 = vmax.xlane.f32.xlu0 %v1077
      %v1079 = vpop.xlane.xlu0 %1078
      %v1080 = vmax.f32 %v902, %v904
      %1081 = vmax.xlane.f32.xlu0 %v1080
      %v1082 = vpop.xlane.xlu0 %1081
      %v1083 = vmax.f32 %v908, %v910
      %1084 = vmax.xlane.f32.xlu0 %v1083
      %v1085 = vpop.xlane.xlu0 %1084
      %v1086 = vmax.f32 %v914, %v916
      %1087 = vmax.xlane.f32.xlu0 %v1086
      %v1088 = vpop.xlane.xlu0 %1087
      %v1089 = vmax.f32 %v920, %v922
      %1090 = vmax.xlane.f32.xlu0 %v1089
      %v1091 = vpop.xlane.xlu0 %1090
      %v1092 = vmax.f32 %v926, %v928
      %1093 = vmax.xlane.f32.xlu0 %v1092
      %v1094 = vpop.xlane.xlu0 %1093
      %v1095 = vmax.f32 %v932, %v934
      %1096 = vmax.xlane.f32.xlu0 %v1095
      %v1097 = vpop.xlane.xlu0 %1096
      %v1098 = vmax.f32 %v938, %v940
      %1099 = vmax.xlane.f32.xlu0 %v1098
      %v1100 = vpop.xlane.xlu0 %1099
      %v1101 = vmax.f32 %v944, %v946
      %1102 = vmax.xlane.f32.xlu0 %v1101
      %v1103 = vpop.xlane.xlu0 %1102
      %v1104 = vmax.f32 %v950, %v952
      %1105 = vmax.xlane.f32.xlu0 %v1104
      %v1106 = vpop.xlane.xlu0 %1105
      %v1107 = vmax.f32 %v956, %v958
      %1108 = vmax.xlane.f32.xlu0 %v1107
      %v1109 = vpop.xlane.xlu0 %1108
      %v1110 = vmax.f32 %v962, %v964
      %1111 = vmax.xlane.f32.xlu0 %v1110
      %v1112 = vpop.xlane.xlu0 %1111
      %v1113 = vmax.f32 %v968, %v970
      %1114 = vmax.xlane.f32.xlu0 %v1113
      %v1115 = vpop.xlane.xlu0 %1114
      %v1116 = vmax.f32 %v974, %v976
      %1117 = vmax.xlane.f32.xlu0 %v1116
      %v1118 = vpop.xlane.xlu0 %1117
      %v1119 = vmax.f32 %v980, %v982
      %1120 = vmax.xlane.f32.xlu0 %v1119
      %v1121 = vpop.xlane.xlu0 %1120
      %v1122 = vmax.f32 %v986, %v988
      %1123 = vmax.xlane.f32.xlu0 %v1122
      %v1124 = vpop.xlane.xlu0 %1123
      %v1125 = vmax.f32 %v992, %v994
      %1126 = vmax.xlane.f32.xlu0 %v1125
      %v1127 = vpop.xlane.xlu0 %1126
      %v1128 = vmax.f32 %v998, %v1000
      %1129 = vmax.xlane.f32.xlu0 %v1128
      %v1130 = vpop.xlane.xlu0 %1129
      %v1131 = vmax.f32 %v1004, %v1006
      %1132 = vmax.xlane.f32.xlu0 %v1131
      %v1133 = vpop.xlane.xlu0 %1132
      %v1134 = vmax.f32 %v1010, %v1012
      %1135 = vmax.xlane.f32.xlu0 %v1134
      %v1136 = vpop.xlane.xlu0 %1135
      %v1137 = vmax.f32 %v1016, %v1018
      %1138 = vmax.xlane.f32.xlu0 %v1137
      %v1139 = vpop.xlane.xlu0 %1138
      %v1140 = vmax.f32 %v1022, %v1024
      %1141 = vmax.xlane.f32.xlu0 %v1140
      %v1142 = vpop.xlane.xlu0 %1141
      %v1143 = vmax.f32 %v1028, %v1030
      %1144 = vmax.xlane.f32.xlu0 %v1143
      %v1145 = vpop.xlane.xlu0 %1144
      %v1146 = vmax.f32 %v1034, %v1036
      %1147 = vmax.xlane.f32.xlu0 %v1146
      %v1148 = vpop.xlane.xlu0 %1147
      %v1149 = vmax.f32 %v1040, %v1042
      %1150 = vmax.xlane.f32.xlu0 %v1149
      %v1151 = vpop.xlane.xlu0 %1150
      %v1152 = vmax.f32 %v1046, %v1048
      %1153 = vmax.xlane.f32.xlu0 %v1152
      %v1154 = vpop.xlane.xlu0 %1153
      %v1155 = vmax.f32 %v1052, %v1054
      %1156 = vmax.xlane.f32.xlu0 %v1155
      %v1157 = vpop.xlane.xlu0 %1156
      %v1158 = vmax.f32 %v1058, %v1060
      %1159 = vmax.xlane.f32.xlu0 %v1158
      %v1160 = vpop.xlane.xlu0 %1159
      %v1161 = vmax.f32 %v1064, %v1066
      %1162 = vmax.xlane.f32.xlu0 %v1161
      %v1163 = vpop.xlane.xlu0 %1162
      %v1164 = vsub.f32 %v878, %v1070
      %v1165 = vsub.f32 %v880, %v1070
      %v1166 = vsub.f32 %v884, %v1073
      %v1167 = vsub.f32 %v886, %v1073
      %v1168 = vsub.f32 %v890, %v1076
      %v1169 = vsub.f32 %v892, %v1076
      %v1170 = vsub.f32 %v896, %v1079
      %v1171 = vsub.f32 %v898, %v1079
      %v1172 = vsub.f32 %v902, %v1082
      %v1173 = vsub.f32 %v904, %v1082
      %v1174 = vsub.f32 %v908, %v1085
      %v1175 = vsub.f32 %v910, %v1085
      %v1176 = vsub.f32 %v914, %v1088
      %v1177 = vsub.f32 %v916, %v1088
      %v1178 = vsub.f32 %v920, %v1091
      %v1179 = vsub.f32 %v922, %v1091
      %v1180 = vsub.f32 %v926, %v1094
      %v1181 = vsub.f32 %v928, %v1094
      %v1182 = vsub.f32 %v932, %v1097
      %v1183 = vsub.f32 %v934, %v1097
      %v1184 = vsub.f32 %v938, %v1100
      %v1185 = vsub.f32 %v940, %v1100
      %v1186 = vsub.f32 %v944, %v1103
      %v1187 = vsub.f32 %v946, %v1103
      %v1188 = vsub.f32 %v950, %v1106
      %v1189 = vsub.f32 %v952, %v1106
      %v1190 = vsub.f32 %v956, %v1109
      %v1191 = vsub.f32 %v958, %v1109
      %v1192 = vsub.f32 %v962, %v1112
      %v1193 = vsub.f32 %v964, %v1112
      %v1194 = vsub.f32 %v968, %v1115
      %v1195 = vsub.f32 %v970, %v1115
      %v1196 = vsub.f32 %v974, %v1118
      %v1197 = vsub.f32 %v976, %v1118
      %v1198 = vsub.f32 %v980, %v1121
      %v1199 = vsub.f32 %v982, %v1121
      %v1200 = vsub.f32 %v986, %v1124
      %v1201 = vsub.f32 %v988, %v1124
      %v1202 = vsub.f32 %v992, %v1127
      %v1203 = vsub.f32 %v994, %v1127
      %v1204 = vsub.f32 %v998, %v1130
      %v1205 = vsub.f32 %v1000, %v1130
      %v1206 = vsub.f32 %v1004, %v1133
      %v1207 = vsub.f32 %v1006, %v1133
      %v1208 = vsub.f32 %v1010, %v1136
      %v1209 = vsub.f32 %v1012, %v1136
      %v1210 = vsub.f32 %v1016, %v1139
      %v1211 = vsub.f32 %v1018, %v1139
      %v1212 = vsub.f32 %v1022, %v1142
      %v1213 = vsub.f32 %v1024, %v1142
      %v1214 = vsub.f32 %v1028, %v1145
      %v1215 = vsub.f32 %v1030, %v1145
      %v1216 = vsub.f32 %v1034, %v1148
      %v1217 = vsub.f32 %v1036, %v1148
      %v1218 = vsub.f32 %v1040, %v1151
      %v1219 = vsub.f32 %v1042, %v1151
      %v1220 = vsub.f32 %v1046, %v1154
      %v1221 = vsub.f32 %v1048, %v1154
      %v1222 = vsub.f32 %v1052, %v1157
      %v1223 = vsub.f32 %v1054, %v1157
      %v1224 = vsub.f32 %v1058, %v1160
      %v1225 = vsub.f32 %v1060, %v1160
      %v1226 = vsub.f32 %v1064, %v1163
      %v1227 = vsub.f32 %v1066, %v1163
      %v1228 = vmul.f32 %v1164, 1.442695
      %v1229 = vpow.pop %v1228
      %v1230 = vmul.f32 %v1165, 1.442695
      %v1231 = vpow.pop %v1230
      %v1232 = vmul.f32 %v1166, 1.442695
      %v1233 = vpow.pop %v1232
      %v1234 = vmul.f32 %v1167, 1.442695
      %v1235 = vpow.pop %v1234
      %v1236 = vmul.f32 %v1168, 1.442695
      %v1237 = vpow.pop %v1236
      %v1238 = vmul.f32 %v1169, 1.442695
      %v1239 = vpow.pop %v1238
      %v1240 = vmul.f32 %v1170, 1.442695
      %v1241 = vpow.pop %v1240
      %v1242 = vmul.f32 %v1171, 1.442695
      %v1243 = vpow.pop %v1242
      %v1244 = vmul.f32 %v1172, 1.442695
      %v1245 = vpow.pop %v1244
      %v1246 = vmul.f32 %v1173, 1.442695
      %v1247 = vpow.pop %v1246
      %v1248 = vmul.f32 %v1174, 1.442695
      %v1249 = vpow.pop %v1248
      %v1250 = vmul.f32 %v1175, 1.442695
      %v1251 = vpow.pop %v1250
      %v1252 = vmul.f32 %v1176, 1.442695
      %v1253 = vpow.pop %v1252
      %v1254 = vmul.f32 %v1177, 1.442695
      %v1255 = vpow.pop %v1254
      %v1256 = vmul.f32 %v1178, 1.442695
      %v1257 = vpow.pop %v1256
      %v1258 = vmul.f32 %v1179, 1.442695
      %v1259 = vpow.pop %v1258
      %v1260 = vmul.f32 %v1180, 1.442695
      %v1261 = vpow.pop %v1260
      %v1262 = vmul.f32 %v1181, 1.442695
      %v1263 = vpow.pop %v1262
      %v1264 = vmul.f32 %v1182, 1.442695
      %v1265 = vpow.pop %v1264
      %v1266 = vmul.f32 %v1183, 1.442695
      %v1267 = vpow.pop %v1266
      %v1268 = vmul.f32 %v1184, 1.442695
      %v1269 = vpow.pop %v1268
      %v1270 = vmul.f32 %v1185, 1.442695
      %v1271 = vpow.pop %v1270
      %v1272 = vmul.f32 %v1186, 1.442695
      %v1273 = vpow.pop %v1272
      %v1274 = vmul.f32 %v1187, 1.442695
      %v1275 = vpow.pop %v1274
      %v1276 = vmul.f32 %v1188, 1.442695
      %v1277 = vpow.pop %v1276
      %v1278 = vmul.f32 %v1189, 1.442695
      %v1279 = vpow.pop %v1278
      %v1280 = vmul.f32 %v1190, 1.442695
      %v1281 = vpow.pop %v1280
      %v1282 = vmul.f32 %v1191, 1.442695
      %v1283 = vpow.pop %v1282
      %v1284 = vmul.f32 %v1192, 1.442695
      %v1285 = vpow.pop %v1284
      %v1286 = vmul.f32 %v1193, 1.442695
      %v1287 = vpow.pop %v1286
      %v1288 = vmul.f32 %v1194, 1.442695
      %v1289 = vpow.pop %v1288
      %v1290 = vmul.f32 %v1195, 1.442695
      %v1291 = vpow.pop %v1290
      %v1292 = vmul.f32 %v1196, 1.442695
      %v1293 = vpow.pop %v1292
      %v1294 = vmul.f32 %v1197, 1.442695
      %v1295 = vpow.pop %v1294
      %v1296 = vmul.f32 %v1198, 1.442695
      %v1297 = vpow.pop %v1296
      %v1298 = vmul.f32 %v1199, 1.442695
      %v1299 = vpow.pop %v1298
      %v1300 = vmul.f32 %v1200, 1.442695
      %v1301 = vpow.pop %v1300
      %v1302 = vmul.f32 %v1201, 1.442695
      %v1303 = vpow.pop %v1302
      %v1304 = vmul.f32 %v1202, 1.442695
      %v1305 = vpow.pop %v1304
      %v1306 = vmul.f32 %v1203, 1.442695
      %v1307 = vpow.pop %v1306
      %v1308 = vmul.f32 %v1204, 1.442695
      %v1309 = vpow.pop %v1308
      %v1310 = vmul.f32 %v1205, 1.442695
      %v1311 = vpow.pop %v1310
      %v1312 = vmul.f32 %v1206, 1.442695
      %v1313 = vpow.pop %v1312
      %v1314 = vmul.f32 %v1207, 1.442695
      %v1315 = vpow.pop %v1314
      %v1316 = vmul.f32 %v1208, 1.442695
      %v1317 = vpow.pop %v1316
      %v1318 = vmul.f32 %v1209, 1.442695
      %v1319 = vpow.pop %v1318
      %v1320 = vmul.f32 %v1210, 1.442695
      %v1321 = vpow.pop %v1320
      %v1322 = vmul.f32 %v1211, 1.442695
      %v1323 = vpow.pop %v1322
      %v1324 = vmul.f32 %v1212, 1.442695
      %v1325 = vpow.pop %v1324
      %v1326 = vmul.f32 %v1213, 1.442695
      %v1327 = vpow.pop %v1326
      %v1328 = vmul.f32 %v1214, 1.442695
      %v1329 = vpow.pop %v1328
      %v1330 = vmul.f32 %v1215, 1.442695
      %v1331 = vpow.pop %v1330
      %v1332 = vmul.f32 %v1216, 1.442695
      %v1333 = vpow.pop %v1332
      %v1334 = vmul.f32 %v1217, 1.442695
      %v1335 = vpow.pop %v1334
      %v1336 = vmul.f32 %v1218, 1.442695
      %v1337 = vpow.pop %v1336
      %v1338 = vmul.f32 %v1219, 1.442695
      %v1339 = vpow.pop %v1338
      %v1340 = vmul.f32 %v1220, 1.442695
      %v1341 = vpow.pop %v1340
      %v1342 = vmul.f32 %v1221, 1.442695
      %v1343 = vpow.pop %v1342
      %v1344 = vmul.f32 %v1222, 1.442695
      %v1345 = vpow.pop %v1344
      %v1346 = vmul.f32 %v1223, 1.442695
      %v1347 = vpow.pop %v1346
      %v1348 = vmul.f32 %v1224, 1.442695
      %v1349 = vpow.pop %v1348
      %v1350 = vmul.f32 %v1225, 1.442695
      %v1351 = vpow.pop %v1350
      %v1352 = vmul.f32 %v1226, 1.442695
      %v1353 = vpow.pop %v1352
      %v1354 = vmul.f32 %v1227, 1.442695
      %v1355 = vpow.pop %v1354
      %v1356 = vadd.f32 %v1229, %v1231
      %1357 = vadd.xlane.f32.xlu0 %v1356
      %v1358 = vpop.xlane.xlu0 %1357
      %v1359 = vadd.f32 %v1233, %v1235
      %1360 = vadd.xlane.f32.xlu0 %v1359
      %v1361 = vpop.xlane.xlu0 %1360
      %v1362 = vadd.f32 %v1237, %v1239
      %1363 = vadd.xlane.f32.xlu0 %v1362
      %v1364 = vpop.xlane.xlu0 %1363
      %v1365 = vadd.f32 %v1241, %v1243
      %1366 = vadd.xlane.f32.xlu0 %v1365
      %v1367 = vpop.xlane.xlu0 %1366
      %v1368 = vadd.f32 %v1245, %v1247
      %1369 = vadd.xlane.f32.xlu0 %v1368
      %v1370 = vpop.xlane.xlu0 %1369
      %v1371 = vadd.f32 %v1249, %v1251
      %1372 = vadd.xlane.f32.xlu0 %v1371
      %v1373 = vpop.xlane.xlu0 %1372
      %v1374 = vadd.f32 %v1253, %v1255
      %1375 = vadd.xlane.f32.xlu0 %v1374
      %v1376 = vpop.xlane.xlu0 %1375
      %v1377 = vadd.f32 %v1257, %v1259
      %1378 = vadd.xlane.f32.xlu0 %v1377
      %v1379 = vpop.xlane.xlu0 %1378
      %v1380 = vadd.f32 %v1261, %v1263
      %1381 = vadd.xlane.f32.xlu0 %v1380
      %v1382 = vpop.xlane.xlu0 %1381
      %v1383 = vadd.f32 %v1265, %v1267
      %1384 = vadd.xlane.f32.xlu0 %v1383
      %v1385 = vpop.xlane.xlu0 %1384
      %v1386 = vadd.f32 %v1269, %v1271
      %1387 = vadd.xlane.f32.xlu0 %v1386
      %v1388 = vpop.xlane.xlu0 %1387
      %v1389 = vadd.f32 %v1273, %v1275
      %1390 = vadd.xlane.f32.xlu0 %v1389
      %v1391 = vpop.xlane.xlu0 %1390
      %v1392 = vadd.f32 %v1277, %v1279
      %1393 = vadd.xlane.f32.xlu0 %v1392
      %v1394 = vpop.xlane.xlu0 %1393
      %v1395 = vadd.f32 %v1281, %v1283
      %1396 = vadd.xlane.f32.xlu0 %v1395
      %v1397 = vpop.xlane.xlu0 %1396
      %v1398 = vadd.f32 %v1285, %v1287
      %1399 = vadd.xlane.f32.xlu0 %v1398
      %v1400 = vpop.xlane.xlu0 %1399
      %v1401 = vadd.f32 %v1289, %v1291
      %1402 = vadd.xlane.f32.xlu0 %v1401
      %v1403 = vpop.xlane.xlu0 %1402
      %v1404 = vadd.f32 %v1293, %v1295
      %1405 = vadd.xlane.f32.xlu0 %v1404
      %v1406 = vpop.xlane.xlu0 %1405
      %v1407 = vadd.f32 %v1297, %v1299
      %1408 = vadd.xlane.f32.xlu0 %v1407
      %v1409 = vpop.xlane.xlu0 %1408
      %v1410 = vadd.f32 %v1301, %v1303
      %1411 = vadd.xlane.f32.xlu0 %v1410
      %v1412 = vpop.xlane.xlu0 %1411
      %v1413 = vadd.f32 %v1305, %v1307
      %1414 = vadd.xlane.f32.xlu0 %v1413
      %v1415 = vpop.xlane.xlu0 %1414
      %v1416 = vadd.f32 %v1309, %v1311
      %1417 = vadd.xlane.f32.xlu0 %v1416
      %v1418 = vpop.xlane.xlu0 %1417
      %v1419 = vadd.f32 %v1313, %v1315
      %1420 = vadd.xlane.f32.xlu0 %v1419
      %v1421 = vpop.xlane.xlu0 %1420
      %v1422 = vadd.f32 %v1317, %v1319
      %1423 = vadd.xlane.f32.xlu0 %v1422
      %v1424 = vpop.xlane.xlu0 %1423
      %v1425 = vadd.f32 %v1321, %v1323
      %1426 = vadd.xlane.f32.xlu0 %v1425
      %v1427 = vpop.xlane.xlu0 %1426
      %v1428 = vadd.f32 %v1325, %v1327
      %1429 = vadd.xlane.f32.xlu0 %v1428
      %v1430 = vpop.xlane.xlu0 %1429
      %v1431 = vadd.f32 %v1329, %v1331
      %1432 = vadd.xlane.f32.xlu0 %v1431
      %v1433 = vpop.xlane.xlu0 %1432
      %v1434 = vadd.f32 %v1333, %v1335
      %1435 = vadd.xlane.f32.xlu0 %v1434
      %v1436 = vpop.xlane.xlu0 %1435
      %v1437 = vadd.f32 %v1337, %v1339
      %1438 = vadd.xlane.f32.xlu0 %v1437
      %v1439 = vpop.xlane.xlu0 %1438
      %v1440 = vadd.f32 %v1341, %v1343
      %1441 = vadd.xlane.f32.xlu0 %v1440
      %v1442 = vpop.xlane.xlu0 %1441
      %v1443 = vadd.f32 %v1345, %v1347
      %1444 = vadd.xlane.f32.xlu0 %v1443
      %v1445 = vpop.xlane.xlu0 %1444
      %v1446 = vadd.f32 %v1349, %v1351
      %1447 = vadd.xlane.f32.xlu0 %v1446
      %v1448 = vpop.xlane.xlu0 %1447
      %v1449 = vadd.f32 %v1353, %v1355
      %1450 = vadd.xlane.f32.xlu0 %v1449
      %v1451 = vpop.xlane.xlu0 %1450
      %v1452 = vrcp.pop %v1358
      %v1453 = vrcp.pop %v1361
      %v1454 = vrcp.pop %v1364
      %v1455 = vrcp.pop %v1367
      %v1456 = vrcp.pop %v1370
      %v1457 = vrcp.pop %v1373
      %v1458 = vrcp.pop %v1376
      %v1459 = vrcp.pop %v1379
      %v1460 = vrcp.pop %v1382
      %v1461 = vrcp.pop %v1385
      %v1462 = vrcp.pop %v1388
      %v1463 = vrcp.pop %v1391
      %v1464 = vrcp.pop %v1394
      %v1465 = vrcp.pop %v1397
      %v1466 = vrcp.pop %v1400
      %v1467 = vrcp.pop %v1403
      %v1468 = vrcp.pop %v1406
      %v1469 = vrcp.pop %v1409
      %v1470 = vrcp.pop %v1412
      %v1471 = vrcp.pop %v1415
      %v1472 = vrcp.pop %v1418
      %v1473 = vrcp.pop %v1421
      %v1474 = vrcp.pop %v1424
      %v1475 = vrcp.pop %v1427
      %v1476 = vrcp.pop %v1430
      %v1477 = vrcp.pop %v1433
      %v1478 = vrcp.pop %v1436
      %v1479 = vrcp.pop %v1439
      %v1480 = vrcp.pop %v1442
      %v1481 = vrcp.pop %v1445
      %v1482 = vrcp.pop %v1448
      %v1483 = vrcp.pop %v1451
      %v1484 = vmul.f32 %v1229, %v1452
      %v1485 = vmul.f32 %v1231, %v1452
      %v1486 = vmul.f32 %v1233, %v1453
      %v1487 = vmul.f32 %v1235, %v1453
      %v1488 = vmul.f32 %v1237, %v1454
      %v1489 = vmul.f32 %v1239, %v1454
      %v1490 = vmul.f32 %v1241, %v1455
      %v1491 = vmul.f32 %v1243, %v1455
      %v1492 = vmul.f32 %v1245, %v1456
      %v1493 = vmul.f32 %v1247, %v1456
      %v1494 = vmul.f32 %v1249, %v1457
      %v1495 = vmul.f32 %v1251, %v1457
      %v1496 = vmul.f32 %v1253, %v1458
      %v1497 = vmul.f32 %v1255, %v1458
      %v1498 = vmul.f32 %v1257, %v1459
      %v1499 = vmul.f32 %v1259, %v1459
      %v1500 = vmul.f32 %v1261, %v1460
      %v1501 = vmul.f32 %v1263, %v1460
      %v1502 = vmul.f32 %v1265, %v1461
      %v1503 = vmul.f32 %v1267, %v1461
      %v1504 = vmul.f32 %v1269, %v1462
      %v1505 = vmul.f32 %v1271, %v1462
      %v1506 = vmul.f32 %v1273, %v1463
      %v1507 = vmul.f32 %v1275, %v1463
      %v1508 = vmul.f32 %v1277, %v1464
      %v1509 = vmul.f32 %v1279, %v1464
      %v1510 = vmul.f32 %v1281, %v1465
      %v1511 = vmul.f32 %v1283, %v1465
      %v1512 = vmul.f32 %v1285, %v1466
      %v1513 = vmul.f32 %v1287, %v1466
      %v1514 = vmul.f32 %v1289, %v1467
      %v1515 = vmul.f32 %v1291, %v1467
      %v1516 = vmul.f32 %v1293, %v1468
      %v1517 = vmul.f32 %v1295, %v1468
      %v1518 = vmul.f32 %v1297, %v1469
      %v1519 = vmul.f32 %v1299, %v1469
      %v1520 = vmul.f32 %v1301, %v1470
      %v1521 = vmul.f32 %v1303, %v1470
      %v1522 = vmul.f32 %v1305, %v1471
      %v1523 = vmul.f32 %v1307, %v1471
      %v1524 = vmul.f32 %v1309, %v1472
      %v1525 = vmul.f32 %v1311, %v1472
      %v1526 = vmul.f32 %v1313, %v1473
      %v1527 = vmul.f32 %v1315, %v1473
      %v1528 = vmul.f32 %v1317, %v1474
      %v1529 = vmul.f32 %v1319, %v1474
      %v1530 = vmul.f32 %v1321, %v1475
      %v1531 = vmul.f32 %v1323, %v1475
      %v1532 = vmul.f32 %v1325, %v1476
      %v1533 = vmul.f32 %v1327, %v1476
      %v1534 = vmul.f32 %v1329, %v1477
      %v1535 = vmul.f32 %v1331, %v1477
      %v1536 = vmul.f32 %v1333, %v1478
      %v1537 = vmul.f32 %v1335, %v1478
      %v1538 = vmul.f32 %v1337, %v1479
      %v1539 = vmul.f32 %v1339, %v1479
      %v1540 = vmul.f32 %v1341, %v1480
      %v1541 = vmul.f32 %v1343, %v1480
      %v1542 = vmul.f32 %v1345, %v1481
      %v1543 = vmul.f32 %v1347, %v1481
      %v1544 = vmul.f32 %v1349, %v1482
      %v1545 = vmul.f32 %v1351, %v1482
      %v1546 = vmul.f32 %v1353, %v1483
      %v1547 = vmul.f32 %v1355, %v1483
      %1548 = vmatprep.subr.mxu0 %v1515
      %1549 = vmatpush1.xpose.msra.mxu0 %v1514
      %1550 = vmatprep.subr.mxu0 %v1513
      %1551 = vmatpush1.xpose.msra.mxu0 %v1512
      %1552 = vmatprep.subr.mxu0 %v1511
      %1553 = vmatpush1.xpose.msra.mxu0 %v1510
      %1554 = vmatprep.subr.mxu0 %v1509
      %1555 = vmatpush1.xpose.msra.mxu0 %v1508
      %1556 = vmatprep.subr.mxu0 %v1507
      %1557 = vmatpush1.xpose.msra.mxu0 %v1506
      %1558 = vmatprep.subr.mxu0 %v1505
      %1559 = vmatpush1.xpose.msra.mxu0 %v1504
      %1560 = vmatprep.subr.mxu0 %v1503
      %1561 = vmatpush1.xpose.msra.mxu0 %v1502
      %1562 = vmatprep.subr.mxu0 %v1501
      %1563 = vmatpush1.xpose.msra.mxu0 %v1500
      %1564 = vmatprep.subr.mxu0 %v1499
      %1565 = vmatpush1.xpose.msra.mxu0 %v1498
      %1566 = vmatprep.subr.mxu0 %v1497
      %1567 = vmatpush1.xpose.msra.mxu0 %v1496
      %1568 = vmatprep.subr.mxu0 %v1495
      %1569 = vmatpush1.xpose.msra.mxu0 %v1494
      %1570 = vmatprep.subr.mxu0 %v1493
      %1571 = vmatpush1.xpose.msra.mxu0 %v1492
      %1572 = vmatprep.subr.mxu0 %v1491
      %1573 = vmatpush1.xpose.msra.mxu0 %v1490
      %1574 = vmatprep.subr.mxu0 %v1489
      %1575 = vmatpush1.xpose.msra.mxu0 %v1488
      %1576 = vmatprep.subr.mxu0 %v1487
      %1577 = vmatpush1.xpose.msra.mxu0 %v1486
      %1578 = vmatprep.subr.mxu0 %v1485
      %1579 = vmatpush1.xpose.msra.mxu0 %v1484
      %1580 = vmatprep.subr.mxu0 %v1547
      %1581 = vmatpush2.xpose.msra.mxu0 %v1546
      %1582 = vmatprep.subr.mxu0 %v1545
      %1583 = vmatpush2.xpose.msra.mxu0 %v1544
      %1584 = vmatprep.subr.mxu0 %v1543
      %1585 = vmatpush2.xpose.msra.mxu0 %v1542
      %1586 = vmatprep.subr.mxu0 %v1541
      %1587 = vmatpush2.xpose.msra.mxu0 %v1540
      %1588 = vmatprep.subr.mxu0 %v1539
      %1589 = vmatpush2.xpose.msra.mxu0 %v1538
      %1590 = vmatprep.subr.mxu0 %v1537
      %1591 = vmatpush2.xpose.msra.mxu0 %v1536
      %1592 = vmatprep.subr.mxu0 %v1535
      %1593 = vmatpush2.xpose.msra.mxu0 %v1534
      %1594 = vmatprep.subr.mxu0 %v1533
      %1595 = vmatpush2.xpose.msra.mxu0 %v1532
      %1596 = vmatprep.subr.mxu0 %v1531
      %1597 = vmatpush2.xpose.msra.mxu0 %v1530
      %1598 = vmatprep.subr.mxu0 %v1529
      %1599 = vmatpush2.xpose.msra.mxu0 %v1528
      %1600 = vmatprep.subr.mxu0 %v1527
      %1601 = vmatpush2.xpose.msra.mxu0 %v1526
      %1602 = vmatprep.subr.mxu0 %v1525
      %1603 = vmatpush2.xpose.msra.mxu0 %v1524
      %1604 = vmatprep.subr.mxu0 %v1523
      %1605 = vmatpush2.xpose.msra.mxu0 %v1522
      %1606 = vmatprep.subr.mxu0 %v1521
      %1607 = vmatpush2.xpose.msra.mxu0 %v1520
      %1608 = vmatprep.subr.mxu0 %v1519
      %1609 = vmatpush2.xpose.msra.mxu0 %v1518
      %1610 = vmatprep.subr.mxu0 %v1517
      %1611 = vmatpush2.xpose.msra.mxu0 %v1516
      %1612 = vmatprep.mubr.f32.mxu0 %v649
      %1613 = vmatmul.mubr.f32.gmra.mxu0 %v647
      %v1614 = vpop.f32.mrf.mxu0
      %v1615 = vadd.f32 0.0, %v1614
      %v1616 = vpop.f32.mrf.mxu0
      %v1617 = vadd.f32 0.0, %v1616
      %1618 = vdwg.mxu0
      %1619 = vst [vmem:[%s402] sm:$0xff] %v1615
      %1620 = vst [vmem:[%s402 + $0x8] sm:$0xff] %v1617
      %p1621 = scmp.lt.s32.totalorder %s22, 1
      %s1622 = scalar_select %p1621, %s22, 1
      %p1623 = scmp.lt.s32.totalorder %s23, 1
      %s1624 = scalar_select %p1623, %s23, 1
      %s1625 = smul.addr %s1624, 2
      %s1626 = smul.addr %s1622, 4
      %s1627 = sadd.s32 %s1625, %s1626
      %s1628 = smul.addr %s1627, 8
      %s1629 = scalar_lea.vmem %s7, %s1628
      // Predicated region
      $region49: #{augmented_conv_forward.2} parent=47 // pred_check
        %p1630 = pneg %p232
      $region50: #{augmented_conv_forward.2} parent=47 // pred_check_branch
        %1632 = sbr.rel (%p1630) target = $region52
      $region51: #{augmented_conv_forward.2} parent=47 // pred_region
        _
      $region52: #{augmented_conv_forward.2} parent=47 // pred_fallthru
        _
    $region48: #{augmented_conv_forward.2} parent=5 // pred_fallthru
      _
    %p1633 = scmp.le.s32.totalorder 2, %s13
    // Predicated region
    $region53: #{augmented_conv_forward.2} parent=5 // pred_check
      %p1634 = pneg %p1633
    $region54: #{augmented_conv_forward.2} parent=5 // pred_check_branch
      %1636 = sbr.rel (%p1634) target = $region56
    $region55: #{augmented_conv_forward.2} parent=5 // pred_region
      %s1637 = ssub.s32 %s13, 2
      // Predicated region
      $region57: #{augmented_conv_forward.2} parent=55 // pred_check
        %p1638 = pneg %p238
      $region58: #{augmented_conv_forward.2} parent=55 // pred_check_branch
        %1640 = sbr.rel (%p1638) target = $region60
      $region59: #{augmented_conv_forward.2} parent=55 // pred_region
        %p1641 = scmp.lt.s32.totalorder %s24, 1
        %s1642 = scalar_select %p1641, %s24, 1
        %p1643 = scmp.lt.s32.totalorder %s25, 1
        %s1644 = scalar_select %p1643, %s25, 1
        %s1645 = smul.addr %s1644, 2
        %s1646 = smul.addr %s1642, 4
        %s1647 = sadd.s32 %s1645, %s1646
        %s1648 = smul.addr %s1647, 8
        %s1649 = scalar_lea.vmem %s7, %s1648
      $region60: #{augmented_conv_forward.2} parent=55 // pred_fallthru
        _
    $region56: #{augmented_conv_forward.2} parent=5 // pred_fallthru
      _
  $region6: #{augmented_conv_forward.2} parent=0 // loop_footer
    %s17 = sadd.s32 1, %s13
  $region7: #{augmented_conv_forward.2} parent=0 // loop_footer_branch
    %12 = sbr.rel target = $region3
  $region8: #{augmented_conv_forward.2} parent=0 // loop_exit
    _

// kernel: augmented_conv_forward.3
$region0: #{augmented_conv_forward.3}
  #allocation0 [shape = 'u32[]', space=smem, size = 0x4, offset = 0x4, fixed_abs, tag = 'smem constant byte address 0x4 - core index']
  #allocation1 [shape = 'u32[144,128]{1,0:T(1,128)}', space=vmem, size = 0x12000, scoped, tag = 'internal scratch']
  %s0 = inlined_call_operand.vmem [shape: f32[2,18,18,8], index: 0, kind: input, shape index: {}]
  %s1 = inlined_call_operand.vmem [shape: f32[9,8,16], index: 1, kind: input, shape index: {}]
  %s2 = inlined_call_operand.vmem [shape: f32[16,1], index: 2, kind: input, shape index: {}]
  %s3 = inlined_call_operand.vmem [shape: f32[2,16,256], index: 3, kind: input, shape index: {}]
  %s4 = inlined_call_operand.vmem [shape: f32[16,16], index: 4, kind: input, shape index: {}]
  %s5 = inlined_call_operand.vmem [shape: f32[16,1], index: 5, kind: input, shape index: {}]
  %s6 = inlined_call_operand.vmem [shape: f32[2,32,256], index: 6, kind: output, shape index: {}]
  %s7 = sld [smem:[#allocation0]]
  $region57: #{augmented_conv_forward.3} parent=0
    _
  %s9 = ssub.s32 1, %s7
  %s10 = scalar_select 0, %s9, %s7
  loop: start=0, step=1, limit=4
  $region2: #{augmented_conv_forward.3} parent=0 // loop_pre_header
    _
  $region3: #{augmented_conv_forward.3} parent=0 // loop_header
    %s12 = sphi 0, %s16
    %p13 = scmp.ge.s32.totalorder %s12, 4
    %s22 = sphi 0, %s24
    %s25 = sphi 0, %s22
    %s26 = sphi 0, %s25
    %s42 = sphi 0, %s26
    %s46 = sphi 0, %s46
    %s48 = sphi 0, %s46
    %s49 = sphi 0, %s48
    %s63 = sphi 0, %s49
    %s67 = sphi 0, %s67
    %s69 = sphi 0, %s67
    %s70 = sphi 0, %s69
    %s84 = sphi 0, %s70
    %s90 = sphi 0, %s92
    %s93 = sphi 0, %s90
    %s94 = sphi 0, %s93
    %s110 = sphi 0, %s94
    %s114 = sphi 0, %s114
    %s116 = sphi 0, %s114
    %s117 = sphi 0, %s116
    %s131 = sphi 0, %s117
    %s135 = sphi 0, %s135
    %s137 = sphi 0, %s135
    %s138 = sphi 0, %s137
    %s152 = sphi 0, %s138
    %s158 = sphi 0, %s160
    %s161 = sphi 0, %s158
    %s162 = sphi 0, %s161
    %s178 = sphi 0, %s162
  $region4: #{augmented_conv_forward.3} parent=0 // loop_header_branch
    %15 = sbr.rel (%p13) target = $region8
  $region5: #{augmented_conv_forward.3} parent=0 // loop_body
    %s17 = ssub.s32 %s12, 1
    %s18 = ssub.s32 %s12, 2
    %s19 = sadd.s32 %s12, 1
    %s20 = ssub.s32 %s12, %s19
    %p21 = scmp.eq.s32.totalorder %s20, 0
    %s23 = sadd.s32 %s22, 1
    %s24 = scalar_select %p21, %s22, %s23
    %p27 = pneg %p21
    %p28 = scmp.eq.s32.totalorder %s12, 1
    %p29 = por %p27, %p28
    %p30 = scmp.ne.s32.totalorder %s22, %s25
    %p31 = scmp.eq.s32.totalorder %s12, 0
    %p32 = por %p30, %p31
    %p33 = scmp.ne.s32.totalorder %s22, %s25
    %p34 = scmp.eq.s32.totalorder %s17, 1
    %p35 = por %p33, %p34
    %p36 = scmp.ne.s32.totalorder %s25, %s26
    %p37 = scmp.eq.s32.totalorder %s17, 0
    %p38 = por %p36, %p37
    %p39 = scmp.ne.s32.totalorder %s25, %s26
    %p40 = scmp.eq.s32.totalorder %s18, 1
    %p41 = por %p39, %p40
    %p43 = scmp.ne.s32.totalorder %s26, %s42
    %p44 = scmp.eq.s32.totalorder %s18, 0
    %p45 = por %p43, %p44
    %s47 = sadd.s32 %s46, 1
    %p50 = scmp.eq.s32.totalorder %s12, 1
    %p51 = scmp.ne.s32.totalorder %s46, %s48
    %p52 = scmp.eq.s32.totalorder %s12, 0
    %p53 = por %p51, %p52
    %p54 = scmp.ne.s32.totalorder %s46, %s48
    %p55 = scmp.eq.s32.totalorder %s17, 1
    %p56 = por %p54, %p55
    %p57 = scmp.ne.s32.totalorder %s48, %s49
    %p58 = scmp.eq.s32.totalorder %s17, 0
    %p59 = por %p57, %p58
    %p60 = scmp.ne.s32.totalorder %s48, %s49
    %p61 = scmp.eq.s32.totalorder %s18, 1
    %p62 = por %p60, %p61
    %p64 = scmp.ne.s32.totalorder %s49, %s63
    %p65 = scmp.eq.s32.totalorder %s18, 0
    %p66 = por %p64, %p65
    %s68 = sadd.s32 %s67, 1
    %p71 = scmp.eq.s32.totalorder %s12, 1
    %p72 = scmp.ne.s32.totalorder %s67, %s69
    %p73 = scmp.eq.s32.totalorder %s12, 0
    %p74 = por %p72, %p73
    %p75 = scmp.ne.s32.totalorder %s67, %s69
    %p76 = scmp.eq.s32.totalorder %s17, 1
    %p77 = por %p75, %p76
    %p78 = scmp.ne.s32.totalorder %s69, %s70
    %p79 = scmp.eq.s32.totalorder %s17, 0
    %p80 = por %p78, %p79
    %p81 = scmp.ne.s32.totalorder %s69, %s70
    %p82 = scmp.eq.s32.totalorder %s18, 1
    %p83 = por %p81, %p82
    %p85 = scmp.ne.s32.totalorder %s70, %s84
    %p86 = scmp.eq.s32.totalorder %s18, 0
    %p87 = por %p85, %p86
    %s88 = ssub.s32 %s12, %s19
    %p89 = scmp.eq.s32.totalorder %s88, 0
    %s91 = sadd.s32 %s90, 1
    %s92 = scalar_select %p89, %s90, %s91
    %p95 = pneg %p89
    %p96 = scmp.eq.s32.totalorder %s12, 1
    %p97 = por %p95, %p96
    %p98 = scmp.ne.s32.totalorder %s90, %s93
    %p99 = scmp.eq.s32.totalorder %s12, 0
    %p100 = por %p98, %p99
    %p101 = scmp.ne.s32.totalorder %s90, %s93
    %p102 = scmp.eq.s32.totalorder %s17, 1
    %p103 = por %p101, %p102
    %p104 = scmp.ne.s32.totalorder %s93, %s94
    %p105 = scmp.eq.s32.totalorder %s17, 0
    %p106 = por %p104, %p105
    %p107 = scmp.ne.s32.totalorder %s93, %s94
    %p108 = scmp.eq.s32.totalorder %s18, 1
    %p109 = por %p107, %p108
    %p111 = scmp.ne.s32.totalorder %s94, %s110
    %p112 = scmp.eq.s32.totalorder %s18, 0
    %p113 = por %p111, %p112
    %s115 = sadd.s32 %s114, 1
    %p118 = scmp.eq.s32.totalorder %s12, 1
    %p119 = scmp.ne.s32.totalorder %s114, %s116
    %p120 = scmp.eq.s32.totalorder %s12, 0
    %p121 = por %p119, %p120
    %p122 = scmp.ne.s32.totalorder %s114, %s116
    %p123 = scmp.eq.s32.totalorder %s17, 1
    %p124 = por %p122, %p123
    %p125 = scmp.ne.s32.totalorder %s116, %s117
    %p126 = scmp.eq.s32.totalorder %s17, 0
    %p127 = por %p125, %p126
    %p128 = scmp.ne.s32.totalorder %s116, %s117
    %p129 = scmp.eq.s32.totalorder %s18, 1
    %p130 = por %p128, %p129
    %p132 = scmp.ne.s32.totalorder %s117, %s131
    %p133 = scmp.eq.s32.totalorder %s18, 0
    %p134 = por %p132, %p133
    %s136 = sadd.s32 %s135, 1
    %p139 = scmp.eq.s32.totalorder %s12, 1
    %p140 = scmp.ne.s32.totalorder %s135, %s137
    %p141 = scmp.eq.s32.totalorder %s12, 0
    %p142 = por %p140, %p141
    %p143 = scmp.ne.s32.totalorder %s135, %s137
    %p144 = scmp.eq.s32.totalorder %s17, 1
    %p145 = por %p143, %p144
    %p146 = scmp.ne.s32.totalorder %s137, %s138
    %p147 = scmp.eq.s32.totalorder %s17, 0
    %p148 = por %p146, %p147
    %p149 = scmp.ne.s32.totalorder %s137, %s138
    %p150 = scmp.eq.s32.totalorder %s18, 1
    %p151 = por %p149, %p150
    %p153 = scmp.ne.s32.totalorder %s138, %s152
    %p154 = scmp.eq.s32.totalorder %s18, 0
    %p155 = por %p153, %p154
    %s156 = ssub.s32 %s12, %s19
    %p157 = scmp.eq.s32.totalorder %s156, 0
    %s159 = sadd.s32 %s158, 1
    %s160 = scalar_select %p157, %s158, %s159
    %p163 = pneg %p157
    %p164 = scmp.eq.s32.totalorder %s12, 1
    %p165 = por %p163, %p164
    %p166 = scmp.ne.s32.totalorder %s158, %s161
    %p167 = scmp.eq.s32.totalorder %s12, 0
    %p168 = por %p166, %p167
    %p169 = scmp.ne.s32.totalorder %s158, %s161
    %p170 = scmp.eq.s32.totalorder %s17, 1
    %p171 = por %p169, %p170
    %p172 = scmp.ne.s32.totalorder %s161, %s162
    %p173 = scmp.eq.s32.totalorder %s17, 0
    %p174 = por %p172, %p173
    %p175 = scmp.ne.s32.totalorder %s161, %s162
    %p176 = scmp.eq.s32.totalorder %s18, 1
    %p177 = por %p175, %p176
    %p179 = scmp.ne.s32.totalorder %s162, %s178
    %p180 = scmp.eq.s32.totalorder %s18, 0
    %p181 = por %p179, %p180
    %p182 = scmp.le.s32.totalorder 1, %s12
    %p183 = scmp.lt.s32.totalorder %s12, 3
    %p184 = pnand %p182, %p183
    %p185 = pneg %p184
    // Predicated region
    $region9: #{augmented_conv_forward.3} parent=5 // pred_check
      _
    $region10: #{augmented_conv_forward.3} parent=5 // pred_check_branch
      %187 = sbr.rel (%p184) target = $region12
    $region11: #{augmented_conv_forward.3} parent=5 // pred_region
      %s188 = ssub.s32 %s12, 1
      // Predicated region
      $region13: #{augmented_conv_forward.3} parent=11 // pred_check
        %p189 = pneg %p59
      $region14: #{augmented_conv_forward.3} parent=11 // pred_check_branch
        %191 = sbr.rel (%p189) target = $region16
      $region15: #{augmented_conv_forward.3} parent=11 // pred_region
        _
      $region16: #{augmented_conv_forward.3} parent=11 // pred_fallthru
        _
      // Predicated region
      $region17: #{augmented_conv_forward.3} parent=11 // pred_check
        %p192 = pneg %p80
      $region18: #{augmented_conv_forward.3} parent=11 // pred_check_branch
        %194 = sbr.rel (%p192) target = $region20
      $region19: #{augmented_conv_forward.3} parent=11 // pred_region
        _
      $region20: #{augmented_conv_forward.3} parent=11 // pred_fallthru
        _
      // Predicated region
      $region21: #{augmented_conv_forward.3} parent=11 // pred_check
        %p195 = pneg %p127
      $region22: #{augmented_conv_forward.3} parent=11 // pred_check_branch
        %197 = sbr.rel (%p195) target = $region24
      $region23: #{augmented_conv_forward.3} parent=11 // pred_region
        _
      $region24: #{augmented_conv_forward.3} parent=11 // pred_fallthru
        _
      // Predicated region
      $region25: #{augmented_conv_forward.3} parent=11 // pred_check
        %p198 = pneg %p148
      $region26: #{augmented_conv_forward.3} parent=11 // pred_check_branch
        %200 = sbr.rel (%p198) target = $region28
      $region27: #{augmented_conv_forward.3} parent=11 // pred_region
        _
      $region28: #{augmented_conv_forward.3} parent=11 // pred_fallthru
        _
    $region12: #{augmented_conv_forward.3} parent=5 // pred_fallthru
      _
    %p201 = scmp.lt.s32.totalorder %s12, 2
    // Predicated region
    $region29: #{augmented_conv_forward.3} parent=5 // pred_check
      %p202 = pneg %p201
    $region30: #{augmented_conv_forward.3} parent=5 // pred_check_branch
      %204 = sbr.rel (%p202) target = $region32
    $region31: #{augmented_conv_forward.3} parent=5 // pred_region
      // Predicated region
      $region33: #{augmented_conv_forward.3} parent=31 // pred_check
        %p205 = pneg %p32
      $region34: #{augmented_conv_forward.3} parent=31 // pred_check_branch
        %207 = sbr.rel (%p205) target = $region36
      $region35: #{augmented_conv_forward.3} parent=31 // pred_region
        %p208 = scmp.lt.s32.totalorder %s12, 1
        %s209 = scalar_select %p208, %s12, 1
        %s210 = smul.addr %s209, 54
        %s211 = smul.addr %s210, 8
        %s212 = scalar_lea.vmem %s0, %s211
      $region36: #{augmented_conv_forward.3} parent=31 // pred_fallthru
        _
      // Predicated region
      $region37: #{augmented_conv_forward.3} parent=31 // pred_check
        %p213 = pneg %p100
      $region38: #{augmented_conv_forward.3} parent=31 // pred_check_branch
        %215 = sbr.rel (%p213) target = $region40
      $region39: #{augmented_conv_forward.3} parent=31 // pred_region
        %p216 = scmp.lt.s32.totalorder %s12, 1
        %s217 = scalar_select %p216, %s12, 1
        %s218 = smul.addr %s217, 4
        %s219 = smul.addr %s218, 8
        %s220 = scalar_lea.vmem %s3, %s219
      $region40: #{augmented_conv_forward.3} parent=31 // pred_fallthru
        _
    $region32: #{augmented_conv_forward.3} parent=5 // pred_fallthru
      _
    %p221 = scmp.le.s32.totalorder 1, %s12
    %p222 = scmp.lt.s32.totalorder %s12, 3
    %p223 = pnand %p221, %p222
    %p224 = pneg %p223
    // Predicated region
    $region41: #{augmented_conv_forward.3} parent=5 // pred_check
      _
    $region42: #{augmented_conv_forward.3} parent=5 // pred_check_branch
      %226 = sbr.rel (%p223) target = $region44
    $region43: #{augmented_conv_forward.3} parent=5 // pred_region
      %s227 = ssub.s32 %s12, 1
      %p228 = scmp.lt.s32.totalorder %s17, 1
      %s229 = scalar_select %p228, %s17, 1
      %s230 = smul.addr %s229, 54
      %s231 = smul.addr %s230, 8
      %s232 = scalar_lea.vmem %s0, %s231
      %p233 = pneg %p38
      %p234 = pneg %p35
      %p235 = pneg %p59
      %p236 = pneg %p56
      %p237 = pneg %p80
      %p238 = pneg %p77
      %p239 = scmp.lt.s32.totalorder %s17, 1
      %s240 = scalar_select %p239, %s17, 1
      %s241 = smul.addr %s240, 4
      %s242 = smul.addr %s241, 8
      %s243 = scalar_lea.vmem %s3, %s242
      %p244 = pneg %p106
      %p245 = pneg %p103
      %p246 = pneg %p127
      %p247 = pneg %p124
      %p248 = pneg %p148
      %p249 = pneg %p145
      %p250 = pneg %p174
      %p251 = pneg %p171
      %p252 = scmp.lt.s32.totalorder %s17, 1
      %s253 = scalar_select %p252, %s17, 1
      %s254 = smul.addr %s253, 8
      %s255 = smul.addr %s254, 8
      %s256 = scalar_lea.vmem %s6, %s255
      %p257 = scmp.lt.s32.totalorder %s17, 1
      %s258 = scalar_select %p257, %s17, 1
      %s259 = smul.addr %s258, 54
      %s260 = smul.addr %s259, 8
      %s261 = scalar_lea.vmem %s0, %s260
      %p262 = scmp.lt.s32.totalorder %s17, 1
      %s263 = scalar_select %p262, %s17, 1
      %s264 = smul.addr %s263, 4
      %s265 = smul.addr %s264, 8
      %s266 = scalar_lea.vmem %s3, %s265
      %p267 = scmp.lt.s32.totalorder %s17, 1
      %s268 = scalar_select %p267, %s17, 1
      %s269 = smul.addr %s268, 8
      %s270 = smul.addr %s269, 8
      %s271 = scalar_lea.vmem %s6, %s270
      %v272 = vld [vmem:[%s261] sm:$0xff]
      %v273 = vld [vmem:[%s261 + $0x8] sm:$0xff]
      %v274 = vld [vmem:[%s261 + $0x18] sm:$0xff]
      %v275 = vld [vmem:[%s261 + $0x20] sm:$0xff]
      %v276 = vld [vmem:[%s261 + $0x30] sm:$0xff]
      %v277 = vld [vmem:[%s261 + $0x38] sm:$0xff]
      %v278 = vld [vmem:[%s261 + $0x48] sm:$0xff]
      %v279 = vld [vmem:[%s261 + $0x50] sm:$0xff]
      %v280 = vld [vmem:[%s261 + $0x60] sm:$0xff]
      %v281 = vld [vmem:[%s261 + $0x68] sm:$0xff]
      %v282 = vld [vmem:[%s261 + $0x78] sm:$0xff]
      %v283 = vld [vmem:[%s261 + $0x80] sm:$0xff]
      %v284 = vld [vmem:[%s261 + $0x90] sm:$0xff]
      %v285 = vld [vmem:[%s261 + $0x98] sm:$0xff]
      %v286 = vld [vmem:[%s261 + $0xa8] sm:$0xff]
      %v287 = vld [vmem:[%s261 + $0xb0] sm:$0xff]
      %v288 = vld [vmem:[%s261 + $0xc0] sm:$0xff]
      %v289 = vld [vmem:[%s261 + $0xc8] sm:$0xff]
      %v290 = vld [vmem:[%s261 + $0xd8] sm:$0xff]
      %v291 = vld [vmem:[%s261 + $0xe0] sm:$0xff]
      %v292 = vld [vmem:[%s261 + $0xf0] sm:$0xff]
      %v293 = vld [vmem:[%s261 + $0xf8] sm:$0xff]
      %v294 = vld [vmem:[%s261 + $0x108] sm:$0xff]
      %v295 = vld [vmem:[%s261 + $0x110] sm:$0xff]
      %v296 = vld [vmem:[%s261 + $0x120] sm:$0xff]
      %v297 = vld [vmem:[%s261 + $0x128] sm:$0xff]
      %v298 = vld [vmem:[%s261 + $0x138] sm:$0xff]
      %v299 = vld [vmem:[%s261 + $0x140] sm:$0xff]
      %v300 = vld [vmem:[%s261 + $0x150] sm:$0xff]
      %v301 = vld [vmem:[%s261 + $0x158] sm:$0xff]
      %v302 = vld [vmem:[%s261 + $0x168] sm:$0xff]
      %v303 = vld [vmem:[%s261 + $0x170] sm:$0xff]
      %v304 = vld [vmem:[%s1] sm:$0xff]
      %v305 = vld [vmem:[%s261 + $0x1] sm:$0xff]
      %v306 = vld [vmem:[%s261 + $0x9] sm:$0xff]
      %v307 = vld [vmem:[%s261 + $0x19] sm:$0xff]
      %v308 = vld [vmem:[%s261 + $0x21] sm:$0xff]
      %v309 = vld [vmem:[%s261 + $0x31] sm:$0xff]
      %v310 = vld [vmem:[%s261 + $0x39] sm:$0xff]
      %v311 = vld [vmem:[%s261 + $0x49] sm:$0xff]
      %v312 = vld [vmem:[%s261 + $0x51] sm:$0xff]
      %v313 = vld [vmem:[%s261 + $0x61] sm:$0xff]
      %v314 = vld [vmem:[%s261 + $0x69] sm:$0xff]
      %v315 = vld [vmem:[%s261 + $0x79] sm:$0xff]
      %v316 = vld [vmem:[%s261 + $0x81] sm:$0xff]
      %v317 = vld [vmem:[%s261 + $0x91] sm:$0xff]
      %v318 = vld [vmem:[%s261 + $0x99] sm:$0xff]
      %v319 = vld [vmem:[%s261 + $0xa9] sm:$0xff]
      %v320 = vld [vmem:[%s261 + $0xb1] sm:$0xff]
      %v321 = vld [vmem:[%s261 + $0xc1] sm:$0xff]
      %v322 = vld [vmem:[%s261 + $0xc9] sm:$0xff]
      %v323 = vld [vmem:[%s261 + $0xd9] sm:$0xff]
      %v324 = vld [vmem:[%s261 + $0xe1] sm:$0xff]
      %v325 = vld [vmem:[%s261 + $0xf1] sm:$0xff]
      %v326 = vld [vmem:[%s261 + $0xf9] sm:$0xff]
      %v327 = vld [vmem:[%s261 + $0x109] sm:$0xff]
      %v328 = vld [vmem:[%s261 + $0x111] sm:$0xff]
      %v329 = vld [vmem:[%s261 + $0x121] sm:$0xff]
      %v330 = vld [vmem:[%s261 + $0x129] sm:$0xff]
      %v331 = vld [vmem:[%s261 + $0x139] sm:$0xff]
      %v332 = vld [vmem:[%s261 + $0x141] sm:$0xff]
      %v333 = vld [vmem:[%s261 + $0x151] sm:$0xff]
      %v334 = vld [vmem:[%s261 + $0x159] sm:$0xff]
      %v335 = vld [vmem:[%s261 + $0x169] sm:$0xff]
      %v336 = vld [vmem:[%s261 + $0x171] sm:$0xff]
      %s337 = scalar_lea.vmem %s1, 8
      %v338 = vld [vmem:[%s337] sm:$0xff]
      %vm339 = vcmask 64512
      %v341 = vsel %vm339, %v305, 0
      %v344 = vsel %vm339, %v306, 0
      %v347 = vsel %vm339, %v307, 0
      %v350 = vsel %vm339, %v308, 0
      %v353 = vsel %vm339, %v309, 0
      %v356 = vsel %vm339, %v310, 0
      %v359 = vsel %vm339, %v311, 0
      %v362 = vsel %vm339, %v312, 0
      %v365 = vsel %vm339, %v313, 0
      %v368 = vsel %vm339, %v314, 0
      %v371 = vsel %vm339, %v315, 0
      %v374 = vsel %vm339, %v316, 0
      %v377 = vsel %vm339, %v317, 0
      %v380 = vsel %vm339, %v318, 0
      %v383 = vsel %vm339, %v319, 0
      %v386 = vsel %vm339, %v320, 0
      %v389 = vsel %vm339, %v321, 0
      %v392 = vsel %vm339, %v322, 0
      %v395 = vsel %vm339, %v323, 0
      %v398 = vsel %vm339, %v324, 0
      %v401 = vsel %vm339, %v325, 0
      %v404 = vsel %vm339, %v326, 0
      %v407 = vsel %vm339, %v327, 0
      %v410 = vsel %vm339, %v328, 0
      %v413 = vsel %vm339, %v329, 0
      %v416 = vsel %vm339, %v330, 0
      %v419 = vsel %vm339, %v331, 0
      %v422 = vsel %vm339, %v332, 0
      %v425 = vsel %vm339, %v333, 0
      %v428 = vsel %vm339, %v334, 0
      %v431 = vsel %vm339, %v335, 0
      %v434 = vsel %vm339, %v336, 0
      %436 = vmatprep.subr.mxu0 0.0
      %437 = vmatpush1.msra.mxu0 0.0
      %438 = vmatprep.subr.mxu0 0.0
      %439 = vmatpush1.msra.mxu0 0.0
      %440 = vmatprep.subr.mxu0 0.0
      %441 = vmatpush1.msra.mxu0 0.0
      %442 = vmatprep.subr.mxu0 0.0
      %443 = vmatpush1.msra.mxu0 0.0
      %444 = vmatprep.subr.mxu0 0.0
      %445 = vmatpush1.msra.mxu0 0.0
      %446 = vmatprep.subr.mxu0 0.0
      %447 = vmatpush1.msra.mxu0 0.0
      %448 = vmatprep.subr.mxu0 0.0
      %449 = vmatpush1.msra.mxu0 0.0
      %450 = vmatprep.subr.mxu0 0.0
      %451 = vmatpush1.msra.mxu0 0.0
      %452 = vmatprep.subr.mxu0 0.0
      %453 = vmatpush1.msra.mxu0 0.0
      %454 = vmatprep.subr.mxu0 0.0
      %455 = vmatpush1.msra.mxu0 0.0
      %456 = vmatprep.subr.mxu0 0.0
      %457 = vmatpush1.msra.mxu0 0.0
      %458 = vmatprep.subr.mxu0 0.0
      %459 = vmatpush1.msra.mxu0 0.0
      %460 = vmatprep.subr.mxu0 0.0
      %461 = vmatpush1.msra.mxu0 0.0
      %462 = vmatprep.subr.mxu0 0.0
      %463 = vmatpush1.msra.mxu0 0.0
      %464 = vmatprep.subr.mxu0 0.0
      %465 = vmatpush1.msra.mxu0 0.0
      %466 = vmatprep.subr.mxu0 0.0
      %467 = vmatpush1.msra.mxu0 %v338
      %468 = vmatprep.subr.mxu0 0.0
      %469 = vmatpush2.msra.mxu0 0.0
      %470 = vmatprep.subr.mxu0 0.0
      %471 = vmatpush2.msra.mxu0 0.0
      %472 = vmatprep.subr.mxu0 0.0
      %473 = vmatpush2.msra.mxu0 0.0
      %474 = vmatprep.subr.mxu0 0.0
      %475 = vmatpush2.msra.mxu0 0.0
      %476 = vmatprep.subr.mxu0 0.0
      %477 = vmatpush2.msra.mxu0 0.0
      %478 = vmatprep.subr.mxu0 0.0
      %479 = vmatpush2.msra.mxu0 0.0
      %480 = vmatprep.subr.mxu0 0.0
      %481 = vmatpush2.msra.mxu0 0.0
      %482 = vmatprep.subr.mxu0 0.0
      %483 = vmatpush2.msra.mxu0 0.0
      %484 = vmatprep.subr.mxu0 0.0
      %485 = vmatpush2.msra.mxu0 0.0
      %486 = vmatprep.subr.mxu0 0.0
      %487 = vmatpush2.msra.mxu0 0.0
      %488 = vmatprep.subr.mxu0 0.0
      %489 = vmatpush2.msra.mxu0 0.0
      %490 = vmatprep.subr.mxu0 0.0
      %491 = vmatpush2.msra.mxu0 0.0
      %492 = vmatprep.subr.mxu0 0.0
      %493 = vmatpush2.msra.mxu0 0.0
      %494 = vmatprep.subr.mxu0 0.0
      %495 = vmatpush2.msra.mxu0 0.0
      %496 = vmatprep.subr.mxu0 0.0
      %497 = vmatpush2.msra.mxu0 0.0
      %498 = vmatprep.subr.mxu0 0.0
      %499 = vmatpush2.msra.mxu0 0.0
      %500 = vmatprep.mubr.f32.mxu0 0.0
      %501 = vmatmul.mubr.f32.gmra.mxu0 %v341
      %v502 = vpop.f32.mrf.mxu0
      %v503 = vadd.f32 0.0, %v502
      %v504 = vpop.f32.mrf.mxu0
      %505 = vmatprep.mubr.f32.mxu0 0.0
      %506 = vmatmul.mubr.f32.gmra.mxu0 %v344
      %v507 = vpop.f32.mrf.mxu0
      %v508 = vadd.f32 0.0, %v507
      %v509 = vpop.f32.mrf.mxu0
      %510 = vmatprep.mubr.f32.mxu0 0.0
      %511 = vmatmul.mubr.f32.gmra.mxu0 %v347
      %v512 = vpop.f32.mrf.mxu0
      %v513 = vadd.f32 0.0, %v512
      %v514 = vpop.f32.mrf.mxu0
      %515 = vmatprep.mubr.f32.mxu0 0.0
      %516 = vmatmul.mubr.f32.gmra.mxu0 %v350
      %v517 = vpop.f32.mrf.mxu0
      %v518 = vadd.f32 0.0, %v517
      %v519 = vpop.f32.mrf.mxu0
      %520 = vmatprep.mubr.f32.mxu0 0.0
      %521 = vmatmul.mubr.f32.gmra.mxu0 %v353
      %v522 = vpop.f32.mrf.mxu0
      %v523 = vadd.f32 0.0, %v522
      %v524 = vpop.f32.mrf.mxu0
      %525 = vmatprep.mubr.f32.mxu0 0.0
      %526 = vmatmul.mubr.f32.gmra.mxu0 %v356
      %v527 = vpop.f32.mrf.mxu0
      %v528 = vadd.f32 0.0, %v527
      %v529 = vpop.f32.mrf.mxu0
      %530 = vmatprep.mubr.f32.mxu0 0.0
      %531 = vmatmul.mubr.f32.gmra.mxu0 %v359
      %v532 = vpop.f32.mrf.mxu0
      %v533 = vadd.f32 0.0, %v532
      %v534 = vpop.f32.mrf.mxu0
      %535 = vmatprep.mubr.f32.mxu0 0.0
      %536 = vmatmul.mubr.f32.gmra.mxu0 %v362
      %v537 = vpop.f32.mrf.mxu0
      %v538 = vadd.f32 0.0, %v537
      %v539 = vpop.f32.mrf.mxu0
      %540 = vmatprep.mubr.f32.mxu0 0.0
      %541 = vmatmul.mubr.f32.gmra.mxu0 %v365
      %v542 = vpop.f32.mrf.mxu0
      %v543 = vadd.f32 0.0, %v542
      %v544 = vpop.f32.mrf.mxu0
      %545 = vmatprep.mubr.f32.mxu0 0.0
      %546 = vmatmul.mubr.f32.gmra.mxu0 %v368
      %v547 = vpop.f32.mrf.mxu0
      %v548 = vadd.f32 0.0, %v547
      %v549 = vpop.f32.mrf.mxu0
      %550 = vmatprep.mubr.f32.mxu0 0.0
      %551 = vmatmul.mubr.f32.gmra.mxu0 %v371
      %v552 = vpop.f32.mrf.mxu0
      %v553 = vadd.f32 0.0, %v552
      %v554 = vpop.f32.mrf.mxu0
      %555 = vmatprep.mubr.f32.mxu0 0.0
      %556 = vmatmul.mubr.f32.gmra.mxu0 %v374
      %v557 = vpop.f32.mrf.mxu0
      %v558 = vadd.f32 0.0, %v557
      %v559 = vpop.f32.mrf.mxu0
      %560 = vmatprep.mubr.f32.mxu0 0.0
      %561 = vmatmul.mubr.f32.gmra.mxu0 %v377
      %v562 = vpop.f32.mrf.mxu0
      %v563 = vadd.f32 0.0, %v562
      %v564 = vpop.f32.mrf.mxu0
      %565 = vmatprep.mubr.f32.mxu0 0.0
      %566 = vmatmul.mubr.f32.gmra.mxu0 %v380
      %v567 = vpop.f32.mrf.mxu0
      %v568 = vadd.f32 0.0, %v567
      %v569 = vpop.f32.mrf.mxu0
      %570 = vmatprep.mubr.f32.mxu0 0.0
      %571 = vmatmul.mubr.f32.gmra.mxu0 %v383
      %v572 = vpop.f32.mrf.mxu0
      %v573 = vadd.f32 0.0, %v572
      %v574 = vpop.f32.mrf.mxu0
      %575 = vmatprep.mubr.f32.mxu0 0.0
      %576 = vmatmul.mubr.f32.gmra.mxu0 %v386
      %v577 = vpop.f32.mrf.mxu0
      %v578 = vadd.f32 0.0, %v577
      %v579 = vpop.f32.mrf.mxu0
      %580 = vmatprep.mubr.f32.mxu0 0.0
      %581 = vmatmul.mubr.f32.gmra.mxu0 %v389
      %v582 = vpop.f32.mrf.mxu0
      %v583 = vadd.f32 0.0, %v582
      %v584 = vpop.f32.mrf.mxu0
      %585 = vmatprep.mubr.f32.mxu0 0.0
      %586 = vmatmul.mubr.f32.gmra.mxu0 %v392
      %v587 = vpop.f32.mrf.mxu0
      %v588 = vadd.f32 0.0, %v587
      %v589 = vpop.f32.mrf.mxu0
      %590 = vmatprep.mubr.f32.mxu0 0.0
      %591 = vmatmul.mubr.f32.gmra.mxu0 %v395
      %v592 = vpop.f32.mrf.mxu0
      %v593 = vadd.f32 0.0, %v592
      %v594 = vpop.f32.mrf.mxu0
      %595 = vmatprep.mubr.f32.mxu0 0.0
      %596 = vmatmul.mubr.f32.gmra.mxu0 %v398
      %v597 = vpop.f32.mrf.mxu0
      %v598 = vadd.f32 0.0, %v597
      %v599 = vpop.f32.mrf.mxu0
      %600 = vmatprep.mubr.f32.mxu0 0.0
      %601 = vmatmul.mubr.f32.gmra.mxu0 %v401
      %v602 = vpop.f32.mrf.mxu0
      %v603 = vadd.f32 0.0, %v602
      %v604 = vpop.f32.mrf.mxu0
      %605 = vmatprep.mubr.f32.mxu0 0.0
      %606 = vmatmul.mubr.f32.gmra.mxu0 %v404
      %v607 = vpop.f32.mrf.mxu0
      %v608 = vadd.f32 0.0, %v607
      %v609 = vpop.f32.mrf.mxu0
      %610 = vmatprep.mubr.f32.mxu0 0.0
      %611 = vmatmul.mubr.f32.gmra.mxu0 %v407
      %v612 = vpop.f32.mrf.mxu0
      %v613 = vadd.f32 0.0, %v612
      %v614 = vpop.f32.mrf.mxu0
      %615 = vmatprep.mubr.f32.mxu0 0.0
      %616 = vmatmul.mubr.f32.gmra.mxu0 %v410
      %v617 = vpop.f32.mrf.mxu0
      %v618 = vadd.f32 0.0, %v617
      %v619 = vpop.f32.mrf.mxu0
      %620 = vmatprep.mubr.f32.mxu0 0.0
      %621 = vmatmul.mubr.f32.gmra.mxu0 %v413
      %v622 = vpop.f32.mrf.mxu0
      %v623 = vadd.f32 0.0, %v622
      %v624 = vpop.f32.mrf.mxu0
      %625 = vmatprep.mubr.f32.mxu0 0.0
      %626 = vmatmul.mubr.f32.gmra.mxu0 %v416
      %v627 = vpop.f32.mrf.mxu0
      %v628 = vadd.f32 0.0, %v627
      %v629 = vpop.f32.mrf.mxu0
      %630 = vmatprep.mubr.f32.mxu0 0.0
      %631 = vmatmul.mubr.f32.gmra.mxu0 %v419
      %v632 = vpop.f32.mrf.mxu0
      %v633 = vadd.f32 0.0, %v632
      %v634 = vpop.f32.mrf.mxu0
      %635 = vmatprep.mubr.f32.mxu0 0.0
      %636 = vmatmul.mubr.f32.gmra.mxu0 %v422
      %v637 = vpop.f32.mrf.mxu0
      %v638 = vadd.f32 0.0, %v637
      %v639 = vpop.f32.mrf.mxu0
      %640 = vmatprep.mubr.f32.mxu0 0.0
      %641 = vmatmul.mubr.f32.gmra.mxu0 %v425
      %v642 = vpop.f32.mrf.mxu0
      %v643 = vadd.f32 0.0, %v642
      %v644 = vpop.f32.mrf.mxu0
      %645 = vmatprep.mubr.f32.mxu0 0.0
      %646 = vmatmul.mubr.f32.gmra.mxu0 %v428
      %v647 = vpop.f32.mrf.mxu0
      %v648 = vadd.f32 0.0, %v647
      %v649 = vpop.f32.mrf.mxu0
      %650 = vmatprep.mubr.f32.mxu0 0.0
      %651 = vmatmul.mubr.f32.gmra.mxu0 %v431
      %v652 = vpop.f32.mrf.mxu0
      %v653 = vadd.f32 0.0, %v652
      %v654 = vpop.f32.mrf.mxu0
      %655 = vmatprep.mubr.f32.mxu0 0.0
      %656 = vmatmul.mubr.f32.gmra.mxu0 %v434
      %v657 = vpop.f32.mrf.mxu0
      %v658 = vadd.f32 0.0, %v657
      %v659 = vpop.f32.mrf.mxu0
      %660 = vdwg.mxu0
      %v662 = vsel %vm339, %v272, 0
      %v665 = vsel %vm339, %v273, 0
      %v668 = vsel %vm339, %v274, 0
      %v671 = vsel %vm339, %v275, 0
      %v674 = vsel %vm339, %v276, 0
      %v677 = vsel %vm339, %v277, 0
      %v680 = vsel %vm339, %v278, 0
      %v683 = vsel %vm339, %v279, 0
      %v686 = vsel %vm339, %v280, 0
      %v689 = vsel %vm339, %v281, 0
      %v692 = vsel %vm339, %v282, 0
      %v695 = vsel %vm339, %v283, 0
      %v698 = vsel %vm339, %v284, 0
      %v701 = vsel %vm339, %v285, 0
      %v704 = vsel %vm339, %v286, 0
      %v707 = vsel %vm339, %v287, 0
      %v710 = vsel %vm339, %v288, 0
      %v713 = vsel %vm339, %v289, 0
      %v716 = vsel %vm339, %v290, 0
      %v719 = vsel %vm339, %v291, 0
      %v722 = vsel %vm339, %v292, 0
      %v725 = vsel %vm339, %v293, 0
      %v728 = vsel %vm339, %v294, 0
      %v731 = vsel %vm339, %v295, 0
      %v734 = vsel %vm339, %v296, 0
      %v737 = vsel %vm339, %v297, 0
      %v740 = vsel %vm339, %v298, 0
      %v743 = vsel %vm339, %v299, 0
      %v746 = vsel %vm339, %v300, 0
      %v749 = vsel %vm339, %v301, 0
      %v752 = vsel %vm339, %v302, 0
      %v755 = vsel %vm339, %v303, 0
      %757 = vmatprep.subr.mxu0 0.0
      %758 = vmatpush1.msra.mxu0 0.0
      %759 = vmatprep.subr.mxu0 0.0
      %760 = vmatpush1.msra.mxu0 0.0
      %761 = vmatprep.subr.mxu0 0.0
      %762 = vmatpush1.msra.mxu0 0.0
      %763 = vmatprep.subr.mxu0 0.0
      %764 = vmatpush1.msra.mxu0 0.0
      %765 = vmatprep.subr.mxu0 0.0
      %766 = vmatpush1.msra.mxu0 0.0
      %767 = vmatprep.subr.mxu0 0.0
      %768 = vmatpush1.msra.mxu0 0.0
      %769 = vmatprep.subr.mxu0 0.0
      %770 = vmatpush1.msra.mxu0 0.0
      %771 = vmatprep.subr.mxu0 0.0
      %772 = vmatpush1.msra.mxu0 0.0
      %773 = vmatprep.subr.mxu0 0.0
      %774 = vmatpush1.msra.mxu0 0.0
      %775 = vmatprep.subr.mxu0 0.0
      %776 = vmatpush1.msra.mxu0 0.0
      %777 = vmatprep.subr.mxu0 0.0
      %778 = vmatpush1.msra.mxu0 0.0
      %779 = vmatprep.subr.mxu0 0.0
      %780 = vmatpush1.msra.mxu0 0.0
      %781 = vmatprep.subr.mxu0 0.0
      %782 = vmatpush1.msra.mxu0 0.0
      %783 = vmatprep.subr.mxu0 0.0
      %784 = vmatpush1.msra.mxu0 0.0
      %785 = vmatprep.subr.mxu0 0.0
      %786 = vmatpush1.msra.mxu0 0.0
      %787 = vmatprep.subr.mxu0 0.0
      %788 = vmatpush1.msra.mxu0 %v304
      %789 = vmatprep.subr.mxu0 0.0
      %790 = vmatpush2.msra.mxu0 0.0
      %791 = vmatprep.subr.mxu0 0.0
      %792 = vmatpush2.msra.mxu0 0.0
      %793 = vmatprep.subr.mxu0 0.0
      %794 = vmatpush2.msra.mxu0 0.0
      %795 = vmatprep.subr.mxu0 0.0
      %796 = vmatpush2.msra.mxu0 0.0
      %797 = vmatprep.subr.mxu0 0.0
      %798 = vmatpush2.msra.mxu0 0.0
      %799 = vmatprep.subr.mxu0 0.0
      %800 = vmatpush2.msra.mxu0 0.0
      %801 = vmatprep.subr.mxu0 0.0
      %802 = vmatpush2.msra.mxu0 0.0
      %803 = vmatprep.subr.mxu0 0.0
      %804 = vmatpush2.msra.mxu0 0.0
      %805 = vmatprep.subr.mxu0 0.0
      %806 = vmatpush2.msra.mxu0 0.0
      %807 = vmatprep.subr.mxu0 0.0
      %808 = vmatpush2.msra.mxu0 0.0
      %809 = vmatprep.subr.mxu0 0.0
      %810 = vmatpush2.msra.mxu0 0.0
      %811 = vmatprep.subr.mxu0 0.0
      %812 = vmatpush2.msra.mxu0 0.0
      %813 = vmatprep.subr.mxu0 0.0
      %814 = vmatpush2.msra.mxu0 0.0
      %815 = vmatprep.subr.mxu0 0.0
      %816 = vmatpush2.msra.mxu0 0.0
      %817 = vmatprep.subr.mxu0 0.0
      %818 = vmatpush2.msra.mxu0 0.0
      %819 = vmatprep.subr.mxu0 0.0
      %820 = vmatpush2.msra.mxu0 0.0
      %821 = vmatprep.mubr.f32.mxu0 0.0
      %822 = vmatmul.mubr.f32.gmra.mxu0 %v662
      %v823 = vpop.f32.mrf.mxu0
      %v824 = vadd.f32 %v503, %v823
      %v825 = vpop.f32.mrf.mxu0
      %826 = vmatprep.mubr.f32.mxu0 0.0
      %827 = vmatmul.mubr.f32.gmra.mxu0 %v665
      %v828 = vpop.f32.mrf.mxu0
      %v829 = vadd.f32 %v508, %v828
      %v830 = vpop.f32.mrf.mxu0
      %831 = vmatprep.mubr.f32.mxu0 0.0
      %832 = vmatmul.mubr.f32.gmra.mxu0 %v668
      %v833 = vpop.f32.mrf.mxu0
      %v834 = vadd.f32 %v513, %v833
      %v835 = vpop.f32.mrf.mxu0
      %836 = vmatprep.mubr.f32.mxu0 0.0
      %837 = vmatmul.mubr.f32.gmra.mxu0 %v671
      %v838 = vpop.f32.mrf.mxu0
      %v839 = vadd.f32 %v518, %v838
      %v840 = vpop.f32.mrf.mxu0
      %841 = vmatprep.mubr.f32.mxu0 0.0
      %842 = vmatmul.mubr.f32.gmra.mxu0 %v674
      %v843 = vpop.f32.mrf.mxu0
      %v844 = vadd.f32 %v523, %v843
      %v845 = vpop.f32.mrf.mxu0
      %846 = vmatprep.mubr.f32.mxu0 0.0
      %847 = vmatmul.mubr.f32.gmra.mxu0 %v677
      %v848 = vpop.f32.mrf.mxu0
      %v849 = vadd.f32 %v528, %v848
      %v850 = vpop.f32.mrf.mxu0
      %851 = vmatprep.mubr.f32.mxu0 0.0
      %852 = vmatmul.mubr.f32.gmra.mxu0 %v680
      %v853 = vpop.f32.mrf.mxu0
      %v854 = vadd.f32 %v533, %v853
      %v855 = vpop.f32.mrf.mxu0
      %856 = vmatprep.mubr.f32.mxu0 0.0
      %857 = vmatmul.mubr.f32.gmra.mxu0 %v683
      %v858 = vpop.f32.mrf.mxu0
      %v859 = vadd.f32 %v538, %v858
      %v860 = vpop.f32.mrf.mxu0
      %861 = vmatprep.mubr.f32.mxu0 0.0
      %862 = vmatmul.mubr.f32.gmra.mxu0 %v686
      %v863 = vpop.f32.mrf.mxu0
      %v864 = vadd.f32 %v543, %v863
      %v865 = vpop.f32.mrf.mxu0
      %866 = vmatprep.mubr.f32.mxu0 0.0
      %867 = vmatmul.mubr.f32.gmra.mxu0 %v689
      %v868 = vpop.f32.mrf.mxu0
      %v869 = vadd.f32 %v548, %v868
      %v870 = vpop.f32.mrf.mxu0
      %871 = vmatprep.mubr.f32.mxu0 0.0
      %872 = vmatmul.mubr.f32.gmra.mxu0 %v692
      %v873 = vpop.f32.mrf.mxu0
      %v874 = vadd.f32 %v553, %v873
      %v875 = vpop.f32.mrf.mxu0
      %876 = vmatprep.mubr.f32.mxu0 0.0
      %877 = vmatmul.mubr.f32.gmra.mxu0 %v695
      %v878 = vpop.f32.mrf.mxu0
      %v879 = vadd.f32 %v558, %v878
      %v880 = vpop.f32.mrf.mxu0
      %881 = vmatprep.mubr.f32.mxu0 0.0
      %882 = vmatmul.mubr.f32.gmra.mxu0 %v698
      %v883 = vpop.f32.mrf.mxu0
      %v884 = vadd.f32 %v563, %v883
      %v885 = vpop.f32.mrf.mxu0
      %886 = vmatprep.mubr.f32.mxu0 0.0
      %887 = vmatmul.mubr.f32.gmra.mxu0 %v701
      %v888 = vpop.f32.mrf.mxu0
      %v889 = vadd.f32 %v568, %v888
      %v890 = vpop.f32.mrf.mxu0
      %891 = vmatprep.mubr.f32.mxu0 0.0
      %892 = vmatmul.mubr.f32.gmra.mxu0 %v704
      %v893 = vpop.f32.mrf.mxu0
      %v894 = vadd.f32 %v573, %v893
      %v895 = vpop.f32.mrf.mxu0
      %896 = vmatprep.mubr.f32.mxu0 0.0
      %897 = vmatmul.mubr.f32.gmra.mxu0 %v707
      %v898 = vpop.f32.mrf.mxu0
      %v899 = vadd.f32 %v578, %v898
      %v900 = vpop.f32.mrf.mxu0
      %901 = vmatprep.mubr.f32.mxu0 0.0
      %902 = vmatmul.mubr.f32.gmra.mxu0 %v710
      %v903 = vpop.f32.mrf.mxu0
      %v904 = vadd.f32 %v583, %v903
      %v905 = vpop.f32.mrf.mxu0
      %906 = vmatprep.mubr.f32.mxu0 0.0
      %907 = vmatmul.mubr.f32.gmra.mxu0 %v713
      %v908 = vpop.f32.mrf.mxu0
      %v909 = vadd.f32 %v588, %v908
      %v910 = vpop.f32.mrf.mxu0
      %911 = vmatprep.mubr.f32.mxu0 0.0
      %912 = vmatmul.mubr.f32.gmra.mxu0 %v716
      %v913 = vpop.f32.mrf.mxu0
      %v914 = vadd.f32 %v593, %v913
      %v915 = vpop.f32.mrf.mxu0
      %916 = vmatprep.mubr.f32.mxu0 0.0
      %917 = vmatmul.mubr.f32.gmra.mxu0 %v719
      %v918 = vpop.f32.mrf.mxu0
      %v919 = vadd.f32 %v598, %v918
      %v920 = vpop.f32.mrf.mxu0
      %921 = vmatprep.mubr.f32.mxu0 0.0
      %922 = vmatmul.mubr.f32.gmra.mxu0 %v722
      %v923 = vpop.f32.mrf.mxu0
      %v924 = vadd.f32 %v603, %v923
      %v925 = vpop.f32.mrf.mxu0
      %926 = vmatprep.mubr.f32.mxu0 0.0
      %927 = vmatmul.mubr.f32.gmra.mxu0 %v725
      %v928 = vpop.f32.mrf.mxu0
      %v929 = vadd.f32 %v608, %v928
      %v930 = vpop.f32.mrf.mxu0
      %931 = vmatprep.mubr.f32.mxu0 0.0
      %932 = vmatmul.mubr.f32.gmra.mxu0 %v728
      %v933 = vpop.f32.mrf.mxu0
      %v934 = vadd.f32 %v613, %v933
      %v935 = vpop.f32.mrf.mxu0
      %936 = vmatprep.mubr.f32.mxu0 0.0
      %937 = vmatmul.mubr.f32.gmra.mxu0 %v731
      %v938 = vpop.f32.mrf.mxu0
      %v939 = vadd.f32 %v618, %v938
      %v940 = vpop.f32.mrf.mxu0
      %941 = vmatprep.mubr.f32.mxu0 0.0
      %942 = vmatmul.mubr.f32.gmra.mxu0 %v734
      %v943 = vpop.f32.mrf.mxu0
      %v944 = vadd.f32 %v623, %v943
      %v945 = vpop.f32.mrf.mxu0
      %946 = vmatprep.mubr.f32.mxu0 0.0
      %947 = vmatmul.mubr.f32.gmra.mxu0 %v737
      %v948 = vpop.f32.mrf.mxu0
      %v949 = vadd.f32 %v628, %v948
      %v950 = vpop.f32.mrf.mxu0
      %951 = vmatprep.mubr.f32.mxu0 0.0
      %952 = vmatmul.mubr.f32.gmra.mxu0 %v740
      %v953 = vpop.f32.mrf.mxu0
      %v954 = vadd.f32 %v633, %v953
      %v955 = vpop.f32.mrf.mxu0
      %956 = vmatprep.mubr.f32.mxu0 0.0
      %957 = vmatmul.mubr.f32.gmra.mxu0 %v743
      %v958 = vpop.f32.mrf.mxu0
      %v959 = vadd.f32 %v638, %v958
      %v960 = vpop.f32.mrf.mxu0
      %961 = vmatprep.mubr.f32.mxu0 0.0
      %962 = vmatmul.mubr.f32.gmra.mxu0 %v746
      %v963 = vpop.f32.mrf.mxu0
      %v964 = vadd.f32 %v643, %v963
      %v965 = vpop.f32.mrf.mxu0
      %966 = vmatprep.mubr.f32.mxu0 0.0
      %967 = vmatmul.mubr.f32.gmra.mxu0 %v749
      %v968 = vpop.f32.mrf.mxu0
      %v969 = vadd.f32 %v648, %v968
      %v970 = vpop.f32.mrf.mxu0
      %971 = vmatprep.mubr.f32.mxu0 0.0
      %972 = vmatmul.mubr.f32.gmra.mxu0 %v752
      %v973 = vpop.f32.mrf.mxu0
      %v974 = vadd.f32 %v653, %v973
      %v975 = vpop.f32.mrf.mxu0
      %976 = vmatprep.mubr.f32.mxu0 0.0
      %977 = vmatmul.mubr.f32.gmra.mxu0 %v755
      %v978 = vpop.f32.mrf.mxu0
      %v979 = vadd.f32 %v658, %v978
      %v980 = vpop.f32.mrf.mxu0
      %981 = vdwg.mxu0
      %v982 = vld [vmem:[%s261 + $0x2] sm:$0xff]
      %v983 = vld [vmem:[%s261 + $0xa] sm:$0xff]
      %v984 = vld [vmem:[%s261 + $0x1a] sm:$0xff]
      %v985 = vld [vmem:[%s261 + $0x22] sm:$0xff]
      %v986 = vld [vmem:[%s261 + $0x32] sm:$0xff]
      %v987 = vld [vmem:[%s261 + $0x3a] sm:$0xff]
      %v988 = vld [vmem:[%s261 + $0x4a] sm:$0xff]
      %v989 = vld [vmem:[%s261 + $0x52] sm:$0xff]
      %v990 = vld [vmem:[%s261 + $0x62] sm:$0xff]
      %v991 = vld [vmem:[%s261 + $0x6a] sm:$0xff]
      %v992 = vld [vmem:[%s261 + $0x7a] sm:$0xff]
      %v993 = vld [vmem:[%s261 + $0x82] sm:$0xff]
      %v994 = vld [vmem:[%s261 + $0x92] sm:$0xff]
      %v995 = vld [vmem:[%s261 + $0x9a] sm:$0xff]
      %v996 = vld [vmem:[%s261 + $0xaa] sm:$0xff]
      %v997 = vld [vmem:[%s261 + $0xb2] sm:$0xff]
      %v998 = vld [vmem:[%s261 + $0xc2] sm:$0xff]
      %v999 = vld [vmem:[%s261 + $0xca] sm:$0xff]
      %v1000 = vld [vmem:[%s261 + $0xda] sm:$0xff]
      %v1001 = vld [vmem:[%s261 + $0xe2] sm:$0xff]
      %v1002 = vld [vmem:[%s261 + $0xf2] sm:$0xff]
      %v1003 = vld [vmem:[%s261 + $0xfa] sm:$0xff]
      %v1004 = vld [vmem:[%s261 + $0x10a] sm:$0xff]
      %v1005 = vld [vmem:[%s261 + $0x112] sm:$0xff]
      %v1006 = vld [vmem:[%s261 + $0x122] sm:$0xff]
      %v1007 = vld [vmem:[%s261 + $0x12a] sm:$0xff]
      %v1008 = vld [vmem:[%s261 + $0x13a] sm:$0xff]
      %v1009 = vld [vmem:[%s261 + $0x142] sm:$0xff]
      %v1010 = vld [vmem:[%s261 + $0x152] sm:$0xff]
      %v1011 = vld [vmem:[%s261 + $0x15a] sm:$0xff]
      %v1012 = vld [vmem:[%s261 + $0x16a] sm:$0xff]
      %v1013 = vld [vmem:[%s261 + $0x172] sm:$0xff]
      %s1014 = scalar_lea.vmem %s1, 16
      %v1015 = vld [vmem:[%s1014] sm:$0xff]
      %v1017 = vsel %vm339, %v982, 0
      %v1020 = vsel %vm339, %v983, 0
      %v1023 = vsel %vm339, %v984, 0
      %v1026 = vsel %vm339, %v985, 0
      %v1029 = vsel %vm339, %v986, 0
      %v1032 = vsel %vm339, %v987, 0
      %v1035 = vsel %vm339, %v988, 0
      %v1038 = vsel %vm339, %v989, 0
      %v1041 = vsel %vm339, %v990, 0
      %v1044 = vsel %vm339, %v991, 0
      %v1047 = vsel %vm339, %v992, 0
      %v1050 = vsel %vm339, %v993, 0
      %v1053 = vsel %vm339, %v994, 0
      %v1056 = vsel %vm339, %v995, 0
      %v1059 = vsel %vm339, %v996, 0
      %v1062 = vsel %vm339, %v997, 0
      %v1065 = vsel %vm339, %v998, 0
      %v1068 = vsel %vm339, %v999, 0
      %v1071 = vsel %vm339, %v1000, 0
      %v1074 = vsel %vm339, %v1001, 0
      %v1077 = vsel %vm339, %v1002, 0
      %v1080 = vsel %vm339, %v1003, 0
      %v1083 = vsel %vm339, %v1004, 0
      %v1086 = vsel %vm339, %v1005, 0
      %v1089 = vsel %vm339, %v1006, 0
      %v1092 = vsel %vm339, %v1007, 0
      %v1095 = vsel %vm339, %v1008, 0
      %v1098 = vsel %vm339, %v1009, 0
      %v1101 = vsel %vm339, %v1010, 0
      %v1104 = vsel %vm339, %v1011, 0
      %v1107 = vsel %vm339, %v1012, 0
      %v1110 = vsel %vm339, %v1013, 0
      %1112 = vmatprep.subr.mxu0 0.0
      %1113 = vmatpush1.msra.mxu0 0.0
      %1114 = vmatprep.subr.mxu0 0.0
      %1115 = vmatpush1.msra.mxu0 0.0
      %1116 = vmatprep.subr.mxu0 0.0
      %1117 = vmatpush1.msra.mxu0 0.0
      %1118 = vmatprep.subr.mxu0 0.0
      %1119 = vmatpush1.msra.mxu0 0.0
      %1120 = vmatprep.subr.mxu0 0.0
      %1121 = vmatpush1.msra.mxu0 0.0
      %1122 = vmatprep.subr.mxu0 0.0
      %1123 = vmatpush1.msra.mxu0 0.0
      %1124 = vmatprep.subr.mxu0 0.0
      %1125 = vmatpush1.msra.mxu0 0.0
      %1126 = vmatprep.subr.mxu0 0.0
      %1127 = vmatpush1.msra.mxu0 0.0
      %1128 = vmatprep.subr.mxu0 0.0
      %1129 = vmatpush1.msra.mxu0 0.0
      %1130 = vmatprep.subr.mxu0 0.0
      %1131 = vmatpush1.msra.mxu0 0.0
      %1132 = vmatprep.subr.mxu0 0.0
      %1133 = vmatpush1.msra.mxu0 0.0
      %1134 = vmatprep.subr.mxu0 0.0
      %1135 = vmatpush1.msra.mxu0 0.0
      %1136 = vmatprep.subr.mxu0 0.0
      %1137 = vmatpush1.msra.mxu0 0.0
      %1138 = vmatprep.subr.mxu0 0.0
      %1139 = vmatpush1.msra.mxu0 0.0
      %1140 = vmatprep.subr.mxu0 0.0
      %1141 = vmatpush1.msra.mxu0 0.0
      %1142 = vmatprep.subr.mxu0 0.0
      %1143 = vmatpush1.msra.mxu0 %v1015
      %1144 = vmatprep.subr.mxu0 0.0
      %1145 = vmatpush2.msra.mxu0 0.0
      %1146 = vmatprep.subr.mxu0 0.0
      %1147 = vmatpush2.msra.mxu0 0.0
      %1148 = vmatprep.subr.mxu0 0.0
      %1149 = vmatpush2.msra.mxu0 0.0
      %1150 = vmatprep.subr.mxu0 0.0
      %1151 = vmatpush2.msra.mxu0 0.0
      %1152 = vmatprep.subr.mxu0 0.0
      %1153 = vmatpush2.msra.mxu0 0.0
      %1154 = vmatprep.subr.mxu0 0.0
      %1155 = vmatpush2.msra.mxu0 0.0
      %1156 = vmatprep.subr.mxu0 0.0
      %1157 = vmatpush2.msra.mxu0 0.0
      %1158 = vmatprep.subr.mxu0 0.0
      %1159 = vmatpush2.msra.mxu0 0.0
      %1160 = vmatprep.subr.mxu0 0.0
      %1161 = vmatpush2.msra.mxu0 0.0
      %1162 = vmatprep.subr.mxu0 0.0
      %1163 = vmatpush2.msra.mxu0 0.0
      %1164 = vmatprep.subr.mxu0 0.0
      %1165 = vmatpush2.msra.mxu0 0.0
      %1166 = vmatprep.subr.mxu0 0.0
      %1167 = vmatpush2.msra.mxu0 0.0
      %1168 = vmatprep.subr.mxu0 0.0
      %1169 = vmatpush2.msra.mxu0 0.0
      %1170 = vmatprep.subr.mxu0 0.0
      %1171 = vmatpush2.msra.mxu0 0.0
      %1172 = vmatprep.subr.mxu0 0.0
      %1173 = vmatpush2.msra.mxu0 0.0
      %1174 = vmatprep.subr.mxu0 0.0
      %1175 = vmatpush2.msra.mxu0 0.0
      %1176 = vmatprep.mubr.f32.mxu0 0.0
      %1177 = vmatmul.mubr.f32.gmra.mxu0 %v1017
      %v1178 = vpop.f32.mrf.mxu0
      %v1179 = vadd.f32 0.0, %v1178
      %v1180 = vpop.f32.mrf.mxu0
      %1181 = vmatprep.mubr.f32.mxu0 0.0
      %1182 = vmatmul.mubr.f32.gmra.mxu0 %v1020
      %v1183 = vpop.f32.mrf.mxu0
      %v1184 = vadd.f32 0.0, %v1183
      %v1185 = vpop.f32.mrf.mxu0
      %1186 = vmatprep.mubr.f32.mxu0 0.0
      %1187 = vmatmul.mubr.f32.gmra.mxu0 %v1023
      %v1188 = vpop.f32.mrf.mxu0
      %v1189 = vadd.f32 0.0, %v1188
      %v1190 = vpop.f32.mrf.mxu0
      %1191 = vmatprep.mubr.f32.mxu0 0.0
      %1192 = vmatmul.mubr.f32.gmra.mxu0 %v1026
      %v1193 = vpop.f32.mrf.mxu0
      %v1194 = vadd.f32 0.0, %v1193
      %v1195 = vpop.f32.mrf.mxu0
      %1196 = vmatprep.mubr.f32.mxu0 0.0
      %1197 = vmatmul.mubr.f32.gmra.mxu0 %v1029
      %v1198 = vpop.f32.mrf.mxu0
      %v1199 = vadd.f32 0.0, %v1198
      %v1200 = vpop.f32.mrf.mxu0
      %1201 = vmatprep.mubr.f32.mxu0 0.0
      %1202 = vmatmul.mubr.f32.gmra.mxu0 %v1032
      %v1203 = vpop.f32.mrf.mxu0
      %v1204 = vadd.f32 0.0, %v1203
      %v1205 = vpop.f32.mrf.mxu0
      %1206 = vmatprep.mubr.f32.mxu0 0.0
      %1207 = vmatmul.mubr.f32.gmra.mxu0 %v1035
      %v1208 = vpop.f32.mrf.mxu0
      %v1209 = vadd.f32 0.0, %v1208
      %v1210 = vpop.f32.mrf.mxu0
      %1211 = vmatprep.mubr.f32.mxu0 0.0
      %1212 = vmatmul.mubr.f32.gmra.mxu0 %v1038
      %v1213 = vpop.f32.mrf.mxu0
      %v1214 = vadd.f32 0.0, %v1213
      %v1215 = vpop.f32.mrf.mxu0
      %1216 = vmatprep.mubr.f32.mxu0 0.0
      %1217 = vmatmul.mubr.f32.gmra.mxu0 %v1041
      %v1218 = vpop.f32.mrf.mxu0
      %v1219 = vadd.f32 0.0, %v1218
      %v1220 = vpop.f32.mrf.mxu0
      %1221 = vmatprep.mubr.f32.mxu0 0.0
      %1222 = vmatmul.mubr.f32.gmra.mxu0 %v1044
      %v1223 = vpop.f32.mrf.mxu0
      %v1224 = vadd.f32 0.0, %v1223
      %v1225 = vpop.f32.mrf.mxu0
      %1226 = vmatprep.mubr.f32.mxu0 0.0
      %1227 = vmatmul.mubr.f32.gmra.mxu0 %v1047
      %v1228 = vpop.f32.mrf.mxu0
      %v1229 = vadd.f32 0.0, %v1228
      %v1230 = vpop.f32.mrf.mxu0
      %1231 = vmatprep.mubr.f32.mxu0 0.0
      %1232 = vmatmul.mubr.f32.gmra.mxu0 %v1050
      %v1233 = vpop.f32.mrf.mxu0
      %v1234 = vadd.f32 0.0, %v1233
      %v1235 = vpop.f32.mrf.mxu0
      %1236 = vmatprep.mubr.f32.mxu0 0.0
      %1237 = vmatmul.mubr.f32.gmra.mxu0 %v1053
      %v1238 = vpop.f32.mrf.mxu0
      %v1239 = vadd.f32 0.0, %v1238
      %v1240 = vpop.f32.mrf.mxu0
      %1241 = vmatprep.mubr.f32.mxu0 0.0
      %1242 = vmatmul.mubr.f32.gmra.mxu0 %v1056
      %v1243 = vpop.f32.mrf.mxu0
      %v1244 = vadd.f32 0.0, %v1243
      %v1245 = vpop.f32.mrf.mxu0
      %1246 = vmatprep.mubr.f32.mxu0 0.0
      %1247 = vmatmul.mubr.f32.gmra.mxu0 %v1059
      %v1248 = vpop.f32.mrf.mxu0
      %v1249 = vadd.f32 0.0, %v1248
      %v1250 = vpop.f32.mrf.mxu0
      %1251 = vmatprep.mubr.f32.mxu0 0.0
      %1252 = vmatmul.mubr.f32.gmra.mxu0 %v1062
      %v1253 = vpop.f32.mrf.mxu0
      %v1254 = vadd.f32 0.0, %v1253
      %v1255 = vpop.f32.mrf.mxu0
      %1256 = vmatprep.mubr.f32.mxu0 0.0
      %1257 = vmatmul.mubr.f32.gmra.mxu0 %v1065
      %v1258 = vpop.f32.mrf.mxu0
      %v1259 = vadd.f32 0.0, %v1258
      %v1260 = vpop.f32.mrf.mxu0
      %1261 = vmatprep.mubr.f32.mxu0 0.0
      %1262 = vmatmul.mubr.f32.gmra.mxu0 %v1068
      %v1263 = vpop.f32.mrf.mxu0
      %v1264 = vadd.f32 0.0, %v1263
      %v1265 = vpop.f32.mrf.mxu0
      %1266 = vmatprep.mubr.f32.mxu0 0.0
      %1267 = vmatmul.mubr.f32.gmra.mxu0 %v1071
      %v1268 = vpop.f32.mrf.mxu0
      %v1269 = vadd.f32 0.0, %v1268
      %v1270 = vpop.f32.mrf.mxu0
      %1271 = vmatprep.mubr.f32.mxu0 0.0
      %1272 = vmatmul.mubr.f32.gmra.mxu0 %v1074
      %v1273 = vpop.f32.mrf.mxu0
      %v1274 = vadd.f32 0.0, %v1273
      %v1275 = vpop.f32.mrf.mxu0
      %1276 = vmatprep.mubr.f32.mxu0 0.0
      %1277 = vmatmul.mubr.f32.gmra.mxu0 %v1077
      %v1278 = vpop.f32.mrf.mxu0
      %v1279 = vadd.f32 0.0, %v1278
      %v1280 = vpop.f32.mrf.mxu0
      %1281 = vmatprep.mubr.f32.mxu0 0.0
      %1282 = vmatmul.mubr.f32.gmra.mxu0 %v1080
      %v1283 = vpop.f32.mrf.mxu0
      %v1284 = vadd.f32 0.0, %v1283
      %v1285 = vpop.f32.mrf.mxu0
      %1286 = vmatprep.mubr.f32.mxu0 0.0
      %1287 = vmatmul.mubr.f32.gmra.mxu0 %v1083
      %v1288 = vpop.f32.mrf.mxu0
      %v1289 = vadd.f32 0.0, %v1288
      %v1290 = vpop.f32.mrf.mxu0
      %1291 = vmatprep.mubr.f32.mxu0 0.0
      %1292 = vmatmul.mubr.f32.gmra.mxu0 %v1086
      %v1293 = vpop.f32.mrf.mxu0
      %v1294 = vadd.f32 0.0, %v1293
      %v1295 = vpop.f32.mrf.mxu0
      %1296 = vmatprep.mubr.f32.mxu0 0.0
      %1297 = vmatmul.mubr.f32.gmra.mxu0 %v1089
      %v1298 = vpop.f32.mrf.mxu0
      %v1299 = vadd.f32 0.0, %v1298
      %v1300 = vpop.f32.mrf.mxu0
      %1301 = vmatprep.mubr.f32.mxu0 0.0
      %1302 = vmatmul.mubr.f32.gmra.mxu0 %v1092
      %v1303 = vpop.f32.mrf.mxu0
      %v1304 = vadd.f32 0.0, %v1303
      %v1305 = vpop.f32.mrf.mxu0
      %1306 = vmatprep.mubr.f32.mxu0 0.0
      %1307 = vmatmul.mubr.f32.gmra.mxu0 %v1095
      %v1308 = vpop.f32.mrf.mxu0
      %v1309 = vadd.f32 0.0, %v1308
      %v1310 = vpop.f32.mrf.mxu0
      %1311 = vmatprep.mubr.f32.mxu0 0.0
      %1312 = vmatmul.mubr.f32.gmra.mxu0 %v1098
      %v1313 = vpop.f32.mrf.mxu0
      %v1314 = vadd.f32 0.0, %v1313
      %v1315 = vpop.f32.mrf.mxu0
      %1316 = vmatprep.mubr.f32.mxu0 0.0
      %1317 = vmatmul.mubr.f32.gmra.mxu0 %v1101
      %v1318 = vpop.f32.mrf.mxu0
      %v1319 = vadd.f32 0.0, %v1318
      %v1320 = vpop.f32.mrf.mxu0
      %1321 = vmatprep.mubr.f32.mxu0 0.0
      %1322 = vmatmul.mubr.f32.gmra.mxu0 %v1104
      %v1323 = vpop.f32.mrf.mxu0
      %v1324 = vadd.f32 0.0, %v1323
      %v1325 = vpop.f32.mrf.mxu0
      %1326 = vmatprep.mubr.f32.mxu0 0.0
      %1327 = vmatmul.mubr.f32.gmra.mxu0 %v1107
      %v1328 = vpop.f32.mrf.mxu0
      %v1329 = vadd.f32 0.0, %v1328
      %v1330 = vpop.f32.mrf.mxu0
      %1331 = vmatprep.mubr.f32.mxu0 0.0
      %1332 = vmatmul.mubr.f32.gmra.mxu0 %v1110
      %v1333 = vpop.f32.mrf.mxu0
      %v1334 = vadd.f32 0.0, %v1333
      %v1335 = vpop.f32.mrf.mxu0
      %1336 = vdwg.mxu0
      %v1337 = vadd.f32 %v824, %v1179
      %v1338 = vadd.f32 %v829, %v1184
      %v1339 = vadd.f32 %v834, %v1189
      %v1340 = vadd.f32 %v839, %v1194
      %v1341 = vadd.f32 %v844, %v1199
      %v1342 = vadd.f32 %v849, %v1204
      %v1343 = vadd.f32 %v854, %v1209
      %v1344 = vadd.f32 %v859, %v1214
      %v1345 = vadd.f32 %v864, %v1219
      %v1346 = vadd.f32 %v869, %v1224
      %v1347 = vadd.f32 %v874, %v1229
      %v1348 = vadd.f32 %v879, %v1234
      %v1349 = vadd.f32 %v884, %v1239
      %v1350 = vadd.f32 %v889, %v1244
      %v1351 = vadd.f32 %v894, %v1249
      %v1352 = vadd.f32 %v899, %v1254
      %v1353 = vadd.f32 %v904, %v1259
      %v1354 = vadd.f32 %v909, %v1264
      %v1355 = vadd.f32 %v914, %v1269
      %v1356 = vadd.f32 %v919, %v1274
      %v1357 = vadd.f32 %v924, %v1279
      %v1358 = vadd.f32 %v929, %v1284
      %v1359 = vadd.f32 %v934, %v1289
      %v1360 = vadd.f32 %v939, %v1294
      %v1361 = vadd.f32 %v944, %v1299
      %v1362 = vadd.f32 %v949, %v1304
      %v1363 = vadd.f32 %v954, %v1309
      %v1364 = vadd.f32 %v959, %v1314
      %v1365 = vadd.f32 %v964, %v1319
      %v1366 = vadd.f32 %v969, %v1324
      %v1367 = vadd.f32 %v974, %v1329
      %v1368 = vadd.f32 %v979, %v1334
      %s1369 = scalar_lea.vmem %s261, 24
      %v1370 = vld [vmem:[%s1369] sm:$0xff]
      %v1371 = vld [vmem:[%s1369 + $0x8] sm:$0xff]
      %v1372 = vld [vmem:[%s1369 + $0x18] sm:$0xff]
      %v1373 = vld [vmem:[%s1369 + $0x20] sm:$0xff]
      %v1374 = vld [vmem:[%s1369 + $0x30] sm:$0xff]
      %v1375 = vld [vmem:[%s1369 + $0x38] sm:$0xff]
      %v1376 = vld [vmem:[%s1369 + $0x48] sm:$0xff]
      %v1377 = vld [vmem:[%s1369 + $0x50] sm:$0xff]
      %v1378 = vld [vmem:[%s1369 + $0x60] sm:$0xff]
      %v1379 = vld [vmem:[%s1369 + $0x68] sm:$0xff]
      %v1380 = vld [vmem:[%s1369 + $0x78] sm:$0xff]
      %v1381 = vld [vmem:[%s1369 + $0x80] sm:$0xff]
      %v1382 = vld [vmem:[%s1369 + $0x90] sm:$0xff]
      %v1383 = vld [vmem:[%s1369 + $0x98] sm:$0xff]
      %v1384 = vld [vmem:[%s1369 + $0xa8] sm:$0xff]
      %v1385 = vld [vmem:[%s1369 + $0xb0] sm:$0xff]
      %v1386 = vld [vmem:[%s1369 + $0xc0] sm:$0xff]
      %v1387 = vld [vmem:[%s1369 + $0xc8] sm:$0xff]
      %v1388 = vld [vmem:[%s1369 + $0xd8] sm:$0xff]
      %v1389 = vld [vmem:[%s1369 + $0xe0] sm:$0xff]
      %v1390 = vld [vmem:[%s1369 + $0xf0] sm:$0xff]
      %v1391 = vld [vmem:[%s1369 + $0xf8] sm:$0xff]
      %v1392 = vld [vmem:[%s1369 + $0x108] sm:$0xff]
      %v1393 = vld [vmem:[%s1369 + $0x110] sm:$0xff]
      %v1394 = vld [vmem:[%s1369 + $0x120] sm:$0xff]
      %v1395 = vld [vmem:[%s1369 + $0x128] sm:$0xff]
      %v1396 = vld [vmem:[%s1369 + $0x138] sm:$0xff]
      %v1397 = vld [vmem:[%s1369 + $0x140] sm:$0xff]
      %v1398 = vld [vmem:[%s1369 + $0x150] sm:$0xff]
      %v1399 = vld [vmem:[%s1369 + $0x158] sm:$0xff]
      %v1400 = vld [vmem:[%s1369 + $0x168] sm:$0xff]
      %v1401 = vld [vmem:[%s1369 + $0x170] sm:$0xff]
      %s1402 = scalar_lea.vmem %s1, 24
      %v1403 = vld [vmem:[%s1402] sm:$0xff]
      %v1405 = vsel %vm339, %v1370, 0
      %v1408 = vsel %vm339, %v1371, 0
      %v1411 = vsel %vm339, %v1372, 0
      %v1414 = vsel %vm339, %v1373, 0
      %v1417 = vsel %vm339, %v1374, 0
      %v1420 = vsel %vm339, %v1375, 0
      %v1423 = vsel %vm339, %v1376, 0
      %v1426 = vsel %vm339, %v1377, 0
      %v1429 = vsel %vm339, %v1378, 0
      %v1432 = vsel %vm339, %v1379, 0
      %v1435 = vsel %vm339, %v1380, 0
      %v1438 = vsel %vm339, %v1381, 0
      %v1441 = vsel %vm339, %v1382, 0
      %v1444 = vsel %vm339, %v1383, 0
      %v1447 = vsel %vm339, %v1384, 0
      %v1450 = vsel %vm339, %v1385, 0
      %v1453 = vsel %vm339, %v1386, 0
      %v1456 = vsel %vm339, %v1387, 0
      %v1459 = vsel %vm339, %v1388, 0
      %v1462 = vsel %vm339, %v1389, 0
      %v1465 = vsel %vm339, %v1390, 0
      %v1468 = vsel %vm339, %v1391, 0
      %v1471 = vsel %vm339, %v1392, 0
      %v1474 = vsel %vm339, %v1393, 0
      %v1477 = vsel %vm339, %v1394, 0
      %v1480 = vsel %vm339, %v1395, 0
      %v1483 = vsel %vm339, %v1396, 0
      %v1486 = vsel %vm339, %v1397, 0
      %v1489 = vsel %vm339, %v1398, 0
      %v1492 = vsel %vm339, %v1399, 0
      %v1495 = vsel %vm339, %v1400, 0
      %v1498 = vsel %vm339, %v1401, 0
      %1500 = vmatprep.subr.mxu0 0.0
      %1501 = vmatpush1.msra.mxu0 0.0
      %1502 = vmatprep.subr.mxu0 0.0
      %1503 = vmatpush1.msra.mxu0 0.0
      %1504 = vmatprep.subr.mxu0 0.0
      %1505 = vmatpush1.msra.mxu0 0.0
      %1506 = vmatprep.subr.mxu0 0.0
      %1507 = vmatpush1.msra.mxu0 0.0
      %1508 = vmatprep.subr.mxu0 0.0
      %1509 = vmatpush1.msra.mxu0 0.0
      %1510 = vmatprep.subr.mxu0 0.0
      %1511 = vmatpush1.msra.mxu0 0.0
      %1512 = vmatprep.subr.mxu0 0.0
      %1513 = vmatpush1.msra.mxu0 0.0
      %1514 = vmatprep.subr.mxu0 0.0
      %1515 = vmatpush1.msra.mxu0 0.0
      %1516 = vmatprep.subr.mxu0 0.0
      %1517 = vmatpush1.msra.mxu0 0.0
      %1518 = vmatprep.subr.mxu0 0.0
      %1519 = vmatpush1.msra.mxu0 0.0
      %1520 = vmatprep.subr.mxu0 0.0
      %1521 = vmatpush1.msra.mxu0 0.0
      %1522 = vmatprep.subr.mxu0 0.0
      %1523 = vmatpush1.msra.mxu0 0.0
      %1524 = vmatprep.subr.mxu0 0.0
      %1525 = vmatpush1.msra.mxu0 0.0
      %1526 = vmatprep.subr.mxu0 0.0
      %1527 = vmatpush1.msra.mxu0 0.0
      %1528 = vmatprep.subr.mxu0 0.0
      %1529 = vmatpush1.msra.mxu0 0.0
      %1530 = vmatprep.subr.mxu0 0.0
      %1531 = vmatpush1.msra.mxu0 %v1403
      %1532 = vmatprep.subr.mxu0 0.0
      %1533 = vmatpush2.msra.mxu0 0.0
      %1534 = vmatprep.subr.mxu0 0.0
      %1535 = vmatpush2.msra.mxu0 0.0
      %1536 = vmatprep.subr.mxu0 0.0
      %1537 = vmatpush2.msra.mxu0 0.0
      %1538 = vmatprep.subr.mxu0 0.0
      %1539 = vmatpush2.msra.mxu0 0.0
      %1540 = vmatprep.subr.mxu0 0.0
      %1541 = vmatpush2.msra.mxu0 0.0
      %1542 = vmatprep.subr.mxu0 0.0
      %1543 = vmatpush2.msra.mxu0 0.0
      %1544 = vmatprep.subr.mxu0 0.0
      %1545 = vmatpush2.msra.mxu0 0.0
      %1546 = vmatprep.subr.mxu0 0.0
      %1547 = vmatpush2.msra.mxu0 0.0
      %1548 = vmatprep.subr.mxu0 0.0
      %1549 = vmatpush2.msra.mxu0 0.0
      %1550 = vmatprep.subr.mxu0 0.0
      %1551 = vmatpush2.msra.mxu0 0.0
      %1552 = vmatprep.subr.mxu0 0.0
      %1553 = vmatpush2.msra.mxu0 0.0
      %1554 = vmatprep.subr.mxu0 0.0
      %1555 = vmatpush2.msra.mxu0 0.0
      %1556 = vmatprep.subr.mxu0 0.0
      %1557 = vmatpush2.msra.mxu0 0.0
      %1558 = vmatprep.subr.mxu0 0.0
      %1559 = vmatpush2.msra.mxu0 0.0
      %1560 = vmatprep.subr.mxu0 0.0
      %1561 = vmatpush2.msra.mxu0 0.0
      %1562 = vmatprep.subr.mxu0 0.0
      %1563 = vmatpush2.msra.mxu0 0.0
      %1564 = vmatprep.mubr.f32.mxu0 0.0
      %1565 = vmatmul.mubr.f32.gmra.mxu0 %v1405
      %v1566 = vpop.f32.mrf.mxu0
      %v1567 = vadd.f32 0.0, %v1566
      %v1568 = vpop.f32.mrf.mxu0
      %1569 = vmatprep.mubr.f32.mxu0 0.0
      %1570 = vmatmul.mubr.f32.gmra.mxu0 %v1408
      %v1571 = vpop.f32.mrf.mxu0
      %v1572 = vadd.f32 0.0, %v1571
      %v1573 = vpop.f32.mrf.mxu0
      %1574 = vmatprep.mubr.f32.mxu0 0.0
      %1575 = vmatmul.mubr.f32.gmra.mxu0 %v1411
      %v1576 = vpop.f32.mrf.mxu0
      %v1577 = vadd.f32 0.0, %v1576
      %v1578 = vpop.f32.mrf.mxu0
      %1579 = vmatprep.mubr.f32.mxu0 0.0
      %1580 = vmatmul.mubr.f32.gmra.mxu0 %v1414
      %v1581 = vpop.f32.mrf.mxu0
      %v1582 = vadd.f32 0.0, %v1581
      %v1583 = vpop.f32.mrf.mxu0
      %1584 = vmatprep.mubr.f32.mxu0 0.0
      %1585 = vmatmul.mubr.f32.gmra.mxu0 %v1417
      %v1586 = vpop.f32.mrf.mxu0
      %v1587 = vadd.f32 0.0, %v1586
      %v1588 = vpop.f32.mrf.mxu0
      %1589 = vmatprep.mubr.f32.mxu0 0.0
      %1590 = vmatmul.mubr.f32.gmra.mxu0 %v1420
      %v1591 = vpop.f32.mrf.mxu0
      %v1592 = vadd.f32 0.0, %v1591
      %v1593 = vpop.f32.mrf.mxu0
      %1594 = vmatprep.mubr.f32.mxu0 0.0
      %1595 = vmatmul.mubr.f32.gmra.mxu0 %v1423
      %v1596 = vpop.f32.mrf.mxu0
      %v1597 = vadd.f32 0.0, %v1596
      %v1598 = vpop.f32.mrf.mxu0
      %1599 = vmatprep.mubr.f32.mxu0 0.0
      %1600 = vmatmul.mubr.f32.gmra.mxu0 %v1426
      %v1601 = vpop.f32.mrf.mxu0
      %v1602 = vadd.f32 0.0, %v1601
      %v1603 = vpop.f32.mrf.mxu0
      %1604 = vmatprep.mubr.f32.mxu0 0.0
      %1605 = vmatmul.mubr.f32.gmra.mxu0 %v1429
      %v1606 = vpop.f32.mrf.mxu0
      %v1607 = vadd.f32 0.0, %v1606
      %v1608 = vpop.f32.mrf.mxu0
      %1609 = vmatprep.mubr.f32.mxu0 0.0
      %1610 = vmatmul.mubr.f32.gmra.mxu0 %v1432
      %v1611 = vpop.f32.mrf.mxu0
      %v1612 = vadd.f32 0.0, %v1611
      %v1613 = vpop.f32.mrf.mxu0
      %1614 = vmatprep.mubr.f32.mxu0 0.0
      %1615 = vmatmul.mubr.f32.gmra.mxu0 %v1435
      %v1616 = vpop.f32.mrf.mxu0
      %v1617 = vadd.f32 0.0, %v1616
      %v1618 = vpop.f32.mrf.mxu0
      %1619 = vmatprep.mubr.f32.mxu0 0.0
      %1620 = vmatmul.mubr.f32.gmra.mxu0 %v1438
      %v1621 = vpop.f32.mrf.mxu0
      %v1622 = vadd.f32 0.0, %v1621
      %v1623 = vpop.f32.mrf.mxu0
      %1624 = vmatprep.mubr.f32.mxu0 0.0
      %1625 = vmatmul.mubr.f32.gmra.mxu0 %v1441
      %v1626 = vpop.f32.mrf.mxu0
      %v1627 = vadd.f32 0.0, %v1626
      %v1628 = vpop.f32.mrf.mxu0
      %1629 = vmatprep.mubr.f32.mxu0 0.0
      %1630 = vmatmul.mubr.f32.gmra.mxu0 %v1444
      %v1631 = vpop.f32.mrf.mxu0
      %v1632 = vadd.f32 0.0, %v1631
      %v1633 = vpop.f32.mrf.mxu0
      %1634 = vmatprep.mubr.f32.mxu0 0.0
      %1635 = vmatmul.mubr.f32.gmra.mxu0 %v1447
      %v1636 = vpop.f32.mrf.mxu0
      %v1637 = vadd.f32 0.0, %v1636
      %v1638 = vpop.f32.mrf.mxu0
      %1639 = vmatprep.mubr.f32.mxu0 0.0
      %1640 = vmatmul.mubr.f32.gmra.mxu0 %v1450
      %v1641 = vpop.f32.mrf.mxu0
      %v1642 = vadd.f32 0.0, %v1641
      %v1643 = vpop.f32.mrf.mxu0
      %1644 = vmatprep.mubr.f32.mxu0 0.0
      %1645 = vmatmul.mubr.f32.gmra.mxu0 %v1453
      %v1646 = vpop.f32.mrf.mxu0
      %v1647 = vadd.f32 0.0, %v1646
      %v1648 = vpop.f32.mrf.mxu0
      %1649 = vmatprep.mubr.f32.mxu0 0.0
      %1650 = vmatmul.mubr.f32.gmra.mxu0 %v1456
      %v1651 = vpop.f32.mrf.mxu0
      %v1652 = vadd.f32 0.0, %v1651
      %v1653 = vpop.f32.mrf.mxu0
      %1654 = vmatprep.mubr.f32.mxu0 0.0
      %1655 = vmatmul.mubr.f32.gmra.mxu0 %v1459
      %v1656 = vpop.f32.mrf.mxu0
      %v1657 = vadd.f32 0.0, %v1656
      %v1658 = vpop.f32.mrf.mxu0
      %1659 = vmatprep.mubr.f32.mxu0 0.0
      %1660 = vmatmul.mubr.f32.gmra.mxu0 %v1462
      %v1661 = vpop.f32.mrf.mxu0
      %v1662 = vadd.f32 0.0, %v1661
      %v1663 = vpop.f32.mrf.mxu0
      %1664 = vmatprep.mubr.f32.mxu0 0.0
      %1665 = vmatmul.mubr.f32.gmra.mxu0 %v1465
      %v1666 = vpop.f32.mrf.mxu0
      %v1667 = vadd.f32 0.0, %v1666
      %v1668 = vpop.f32.mrf.mxu0
      %1669 = vmatprep.mubr.f32.mxu0 0.0
      %1670 = vmatmul.mubr.f32.gmra.mxu0 %v1468
      %v1671 = vpop.f32.mrf.mxu0
      %v1672 = vadd.f32 0.0, %v1671
      %v1673 = vpop.f32.mrf.mxu0
      %1674 = vmatprep.mubr.f32.mxu0 0.0
      %1675 = vmatmul.mubr.f32.gmra.mxu0 %v1471
      %v1676 = vpop.f32.mrf.mxu0
      %v1677 = vadd.f32 0.0, %v1676
      %v1678 = vpop.f32.mrf.mxu0
      %1679 = vmatprep.mubr.f32.mxu0 0.0
      %1680 = vmatmul.mubr.f32.gmra.mxu0 %v1474
      %v1681 = vpop.f32.mrf.mxu0
      %v1682 = vadd.f32 0.0, %v1681
      %v1683 = vpop.f32.mrf.mxu0
      %1684 = vmatprep.mubr.f32.mxu0 0.0
      %1685 = vmatmul.mubr.f32.gmra.mxu0 %v1477
      %v1686 = vpop.f32.mrf.mxu0
      %v1687 = vadd.f32 0.0, %v1686
      %v1688 = vpop.f32.mrf.mxu0
      %1689 = vmatprep.mubr.f32.mxu0 0.0
      %1690 = vmatmul.mubr.f32.gmra.mxu0 %v1480
      %v1691 = vpop.f32.mrf.mxu0
      %v1692 = vadd.f32 0.0, %v1691
      %v1693 = vpop.f32.mrf.mxu0
      %1694 = vmatprep.mubr.f32.mxu0 0.0
      %1695 = vmatmul.mubr.f32.gmra.mxu0 %v1483
      %v1696 = vpop.f32.mrf.mxu0
      %v1697 = vadd.f32 0.0, %v1696
      %v1698 = vpop.f32.mrf.mxu0
      %1699 = vmatprep.mubr.f32.mxu0 0.0
      %1700 = vmatmul.mubr.f32.gmra.mxu0 %v1486
      %v1701 = vpop.f32.mrf.mxu0
      %v1702 = vadd.f32 0.0, %v1701
      %v1703 = vpop.f32.mrf.mxu0
      %1704 = vmatprep.mubr.f32.mxu0 0.0
      %1705 = vmatmul.mubr.f32.gmra.mxu0 %v1489
      %v1706 = vpop.f32.mrf.mxu0
      %v1707 = vadd.f32 0.0, %v1706
      %v1708 = vpop.f32.mrf.mxu0
      %1709 = vmatprep.mubr.f32.mxu0 0.0
      %1710 = vmatmul.mubr.f32.gmra.mxu0 %v1492
      %v1711 = vpop.f32.mrf.mxu0
      %v1712 = vadd.f32 0.0, %v1711
      %v1713 = vpop.f32.mrf.mxu0
      %1714 = vmatprep.mubr.f32.mxu0 0.0
      %1715 = vmatmul.mubr.f32.gmra.mxu0 %v1495
      %v1716 = vpop.f32.mrf.mxu0
      %v1717 = vadd.f32 0.0, %v1716
      %v1718 = vpop.f32.mrf.mxu0
      %1719 = vmatprep.mubr.f32.mxu0 0.0
      %1720 = vmatmul.mubr.f32.gmra.mxu0 %v1498
      %v1721 = vpop.f32.mrf.mxu0
      %v1722 = vadd.f32 0.0, %v1721
      %v1723 = vpop.f32.mrf.mxu0
      %1724 = vdwg.mxu0
      %v1725 = vadd.f32 %v1337, %v1567
      %v1726 = vadd.f32 %v1338, %v1572
      %v1727 = vadd.f32 %v1339, %v1577
      %v1728 = vadd.f32 %v1340, %v1582
      %v1729 = vadd.f32 %v1341, %v1587
      %v1730 = vadd.f32 %v1342, %v1592
      %v1731 = vadd.f32 %v1343, %v1597
      %v1732 = vadd.f32 %v1344, %v1602
      %v1733 = vadd.f32 %v1345, %v1607
      %v1734 = vadd.f32 %v1346, %v1612
      %v1735 = vadd.f32 %v1347, %v1617
      %v1736 = vadd.f32 %v1348, %v1622
      %v1737 = vadd.f32 %v1349, %v1627
      %v1738 = vadd.f32 %v1350, %v1632
      %v1739 = vadd.f32 %v1351, %v1637
      %v1740 = vadd.f32 %v1352, %v1642
      %v1741 = vadd.f32 %v1353, %v1647
      %v1742 = vadd.f32 %v1354, %v1652
      %v1743 = vadd.f32 %v1355, %v1657
      %v1744 = vadd.f32 %v1356, %v1662
      %v1745 = vadd.f32 %v1357, %v1667
      %v1746 = vadd.f32 %v1358, %v1672
      %v1747 = vadd.f32 %v1359, %v1677
      %v1748 = vadd.f32 %v1360, %v1682
      %v1749 = vadd.f32 %v1361, %v1687
      %v1750 = vadd.f32 %v1362, %v1692
      %v1751 = vadd.f32 %v1363, %v1697
      %v1752 = vadd.f32 %v1364, %v1702
      %v1753 = vadd.f32 %v1365, %v1707
      %v1754 = vadd.f32 %v1366, %v1712
      %v1755 = vadd.f32 %v1367, %v1717
      %v1756 = vadd.f32 %v1368, %v1722
      %v1757 = vld [vmem:[%s1369 + $0x1] sm:$0xff]
      %v1758 = vld [vmem:[%s1369 + $0x9] sm:$0xff]
      %v1759 = vld [vmem:[%s1369 + $0x19] sm:$0xff]
      %v1760 = vld [vmem:[%s1369 + $0x21] sm:$0xff]
      %v1761 = vld [vmem:[%s1369 + $0x31] sm:$0xff]
      %v1762 = vld [vmem:[%s1369 + $0x39] sm:$0xff]
      %v1763 = vld [vmem:[%s1369 + $0x49] sm:$0xff]
      %v1764 = vld [vmem:[%s1369 + $0x51] sm:$0xff]
      %v1765 = vld [vmem:[%s1369 + $0x61] sm:$0xff]
      %v1766 = vld [vmem:[%s1369 + $0x69] sm:$0xff]
      %v1767 = vld [vmem:[%s1369 + $0x79] sm:$0xff]
      %v1768 = vld [vmem:[%s1369 + $0x81] sm:$0xff]
      %v1769 = vld [vmem:[%s1369 + $0x91] sm:$0xff]
      %v1770 = vld [vmem:[%s1369 + $0x99] sm:$0xff]
      %v1771 = vld [vmem:[%s1369 + $0xa9] sm:$0xff]
      %v1772 = vld [vmem:[%s1369 + $0xb1] sm:$0xff]
      %v1773 = vld [vmem:[%s1369 + $0xc1] sm:$0xff]
      %v1774 = vld [vmem:[%s1369 + $0xc9] sm:$0xff]
      %v1775 = vld [vmem:[%s1369 + $0xd9] sm:$0xff]
      %v1776 = vld [vmem:[%s1369 + $0xe1] sm:$0xff]
      %v1777 = vld [vmem:[%s1369 + $0xf1] sm:$0xff]
      %v1778 = vld [vmem:[%s1369 + $0xf9] sm:$0xff]
      %v1779 = vld [vmem:[%s1369 + $0x109] sm:$0xff]
      %v1780 = vld [vmem:[%s1369 + $0x111] sm:$0xff]
      %v1781 = vld [vmem:[%s1369 + $0x121] sm:$0xff]
      %v1782 = vld [vmem:[%s1369 + $0x129] sm:$0xff]
      %v1783 = vld [vmem:[%s1369 + $0x139] sm:$0xff]
      %v1784 = vld [vmem:[%s1369 + $0x141] sm:$0xff]
      %v1785 = vld [vmem:[%s1369 + $0x151] sm:$0xff]
      %v1786 = vld [vmem:[%s1369 + $0x159] sm:$0xff]
      %v1787 = vld [vmem:[%s1369 + $0x169] sm:$0xff]
      %v1788 = vld [vmem:[%s1369 + $0x171] sm:$0xff]
      %s1789 = scalar_lea.vmem %s1, 32
      %v1790 = vld [vmem:[%s1789] sm:$0xff]
      %v1792 = vsel %vm339, %v1757, 0
      %v1795 = vsel %vm339, %v1758, 0
      %v1798 = vsel %vm339, %v1759, 0
      %v1801 = vsel %vm339, %v1760, 0
      %v1804 = vsel %vm339, %v1761, 0
      %v1807 = vsel %vm339, %v1762, 0
      %v1810 = vsel %vm339, %v1763, 0
      %v1813 = vsel %vm339, %v1764, 0
      %v1816 = vsel %vm339, %v1765, 0
      %v1819 = vsel %vm339, %v1766, 0
      %v1822 = vsel %vm339, %v1767, 0
      %v1825 = vsel %vm339, %v1768, 0
      %v1828 = vsel %vm339, %v1769, 0
      %v1831 = vsel %vm339, %v1770, 0
      %v1834 = vsel %vm339, %v1771, 0
      %v1837 = vsel %vm339, %v1772, 0
      %v1840 = vsel %vm339, %v1773, 0
      %v1843 = vsel %vm339, %v1774, 0
      %v1846 = vsel %vm339, %v1775, 0
      %v1849 = vsel %vm339, %v1776, 0
      %v1852 = vsel %vm339, %v1777, 0
      %v1855 = vsel %vm339, %v1778, 0
      %v1858 = vsel %vm339, %v1779, 0
      %v1861 = vsel %vm339, %v1780, 0
      %v1864 = vsel %vm339, %v1781, 0
      %v1867 = vsel %vm339, %v1782, 0
      %v1870 = vsel %vm339, %v1783, 0
      %v1873 = vsel %vm339, %v1784, 0
      %v1876 = vsel %vm339, %v1785, 0
      %v1879 = vsel %vm339, %v1786, 0
      %v1882 = vsel %vm339, %v1787, 0
      %v1885 = vsel %vm339, %v1788, 0
      %1887 = vmatprep.subr.mxu0 0.0
      %1888 = vmatpush1.msra.mxu0 0.0
      %1889 = vmatprep.subr.mxu0 0.0
      %1890 = vmatpush1.msra.mxu0 0.0
      %1891 = vmatprep.subr.mxu0 0.0
      %1892 = vmatpush1.msra.mxu0 0.0
      %1893 = vmatprep.subr.mxu0 0.0
      %1894 = vmatpush1.msra.mxu0 0.0
      %1895 = vmatprep.subr.mxu0 0.0
      %1896 = vmatpush1.msra.mxu0 0.0
      %1897 = vmatprep.subr.mxu0 0.0
      %1898 = vmatpush1.msra.mxu0 0.0
      %1899 = vmatprep.subr.mxu0 0.0
      %1900 = vmatpush1.msra.mxu0 0.0
      %1901 = vmatprep.subr.mxu0 0.0
      %1902 = vmatpush1.msra.mxu0 0.0
      %1903 = vmatprep.subr.mxu0 0.0
      %1904 = vmatpush1.msra.mxu0 0.0
      %1905 = vmatprep.subr.mxu0 0.0
      %1906 = vmatpush1.msra.mxu0 0.0
      %1907 = vmatprep.subr.mxu0 0.0
      %1908 = vmatpush1.msra.mxu0 0.0
      %1909 = vmatprep.subr.mxu0 0.0
      %1910 = vmatpush1.msra.mxu0 0.0
      %1911 = vmatprep.subr.mxu0 0.0
      %1912 = vmatpush1.msra.mxu0 0.0
      %1913 = vmatprep.subr.mxu0 0.0
      %1914 = vmatpush1.msra.mxu0 0.0
      %1915 = vmatprep.subr.mxu0 0.0
      %1916 = vmatpush1.msra.mxu0 0.0
      %1917 = vmatprep.subr.mxu0 0.0
      %1918 = vmatpush1.msra.mxu0 %v1790
      %1919 = vmatprep.subr.mxu0 0.0
      %1920 = vmatpush2.msra.mxu0 0.0
      %1921 = vmatprep.subr.mxu0 0.0
      %1922 = vmatpush2.msra.mxu0 0.0
      %1923 = vmatprep.subr.mxu0 0.0
      %1924 = vmatpush2.msra.mxu0 0.0
      %1925 = vmatprep.subr.mxu0 0.0
      %1926 = vmatpush2.msra.mxu0 0.0
      %1927 = vmatprep.subr.mxu0 0.0
      %1928 = vmatpush2.msra.mxu0 0.0
      %1929 = vmatprep.subr.mxu0 0.0
      %1930 = vmatpush2.msra.mxu0 0.0
      %1931 = vmatprep.subr.mxu0 0.0
      %1932 = vmatpush2.msra.mxu0 0.0
      %1933 = vmatprep.subr.mxu0 0.0
      %1934 = vmatpush2.msra.mxu0 0.0
      %1935 = vmatprep.subr.mxu0 0.0
      %1936 = vmatpush2.msra.mxu0 0.0
      %1937 = vmatprep.subr.mxu0 0.0
      %1938 = vmatpush2.msra.mxu0 0.0
      %1939 = vmatprep.subr.mxu0 0.0
      %1940 = vmatpush2.msra.mxu0 0.0
      %1941 = vmatprep.subr.mxu0 0.0
      %1942 = vmatpush2.msra.mxu0 0.0
      %1943 = vmatprep.subr.mxu0 0.0
      %1944 = vmatpush2.msra.mxu0 0.0
      %1945 = vmatprep.subr.mxu0 0.0
      %1946 = vmatpush2.msra.mxu0 0.0
      %1947 = vmatprep.subr.mxu0 0.0
      %1948 = vmatpush2.msra.mxu0 0.0
      %1949 = vmatprep.subr.mxu0 0.0
      %1950 = vmatpush2.msra.mxu0 0.0
      %1951 = vmatprep.mubr.f32.mxu0 0.0
      %1952 = vmatmul.mubr.f32.gmra.mxu0 %v1792
      %v1953 = vpop.f32.mrf.mxu0
      %v1954 = vadd.f32 0.0, %v1953
      %v1955 = vpop.f32.mrf.mxu0
      %1956 = vmatprep.mubr.f32.mxu0 0.0
      %1957 = vmatmul.mubr.f32.gmra.mxu0 %v1795
      %v1958 = vpop.f32.mrf.mxu0
      %v1959 = vadd.f32 0.0, %v1958
      %v1960 = vpop.f32.mrf.mxu0
      %1961 = vmatprep.mubr.f32.mxu0 0.0
      %1962 = vmatmul.mubr.f32.gmra.mxu0 %v1798
      %v1963 = vpop.f32.mrf.mxu0
      %v1964 = vadd.f32 0.0, %v1963
      %v1965 = vpop.f32.mrf.mxu0
      %1966 = vmatprep.mubr.f32.mxu0 0.0
      %1967 = vmatmul.mubr.f32.gmra.mxu0 %v1801
      %v1968 = vpop.f32.mrf.mxu0
      %v1969 = vadd.f32 0.0, %v1968
      %v1970 = vpop.f32.mrf.mxu0
      %1971 = vmatprep.mubr.f32.mxu0 0.0
      %1972 = vmatmul.mubr.f32.gmra.mxu0 %v1804
      %v1973 = vpop.f32.mrf.mxu0
      %v1974 = vadd.f32 0.0, %v1973
      %v1975 = vpop.f32.mrf.mxu0
      %1976 = vmatprep.mubr.f32.mxu0 0.0
      %1977 = vmatmul.mubr.f32.gmra.mxu0 %v1807
      %v1978 = vpop.f32.mrf.mxu0
      %v1979 = vadd.f32 0.0, %v1978
      %v1980 = vpop.f32.mrf.mxu0
      %1981 = vmatprep.mubr.f32.mxu0 0.0
      %1982 = vmatmul.mubr.f32.gmra.mxu0 %v1810
      %v1983 = vpop.f32.mrf.mxu0
      %v1984 = vadd.f32 0.0, %v1983
      %v1985 = vpop.f32.mrf.mxu0
      %1986 = vmatprep.mubr.f32.mxu0 0.0
      %1987 = vmatmul.mubr.f32.gmra.mxu0 %v1813
      %v1988 = vpop.f32.mrf.mxu0
      %v1989 = vadd.f32 0.0, %v1988
      %v1990 = vpop.f32.mrf.mxu0
      %1991 = vmatprep.mubr.f32.mxu0 0.0
      %1992 = vmatmul.mubr.f32.gmra.mxu0 %v1816
      %v1993 = vpop.f32.mrf.mxu0
      %v1994 = vadd.f32 0.0, %v1993
      %v1995 = vpop.f32.mrf.mxu0
      %1996 = vmatprep.mubr.f32.mxu0 0.0
      %1997 = vmatmul.mubr.f32.gmra.mxu0 %v1819
      %v1998 = vpop.f32.mrf.mxu0
      %v1999 = vadd.f32 0.0, %v1998
      %v2000 = vpop.f32.mrf.mxu0
      %2001 = vmatprep.mubr.f32.mxu0 0.0
      %2002 = vmatmul.mubr.f32.gmra.mxu0 %v1822
      %v2003 = vpop.f32.mrf.mxu0
      %v2004 = vadd.f32 0.0, %v2003
      %v2005 = vpop.f32.mrf.mxu0
      %2006 = vmatprep.mubr.f32.mxu0 0.0
      %2007 = vmatmul.mubr.f32.gmra.mxu0 %v1825
      %v2008 = vpop.f32.mrf.mxu0
      %v2009 = vadd.f32 0.0, %v2008
      %v2010 = vpop.f32.mrf.mxu0
      %2011 = vmatprep.mubr.f32.mxu0 0.0
      %2012 = vmatmul.mubr.f32.gmra.mxu0 %v1828
      %v2013 = vpop.f32.mrf.mxu0
      %v2014 = vadd.f32 0.0, %v2013
      %v2015 = vpop.f32.mrf.mxu0
      %2016 = vmatprep.mubr.f32.mxu0 0.0
      %2017 = vmatmul.mubr.f32.gmra.mxu0 %v1831
      %v2018 = vpop.f32.mrf.mxu0
      %v2019 = vadd.f32 0.0, %v2018
      %v2020 = vpop.f32.mrf.mxu0
      %2021 = vmatprep.mubr.f32.mxu0 0.0
      %2022 = vmatmul.mubr.f32.gmra.mxu0 %v1834
      %v2023 = vpop.f32.mrf.mxu0
      %v2024 = vadd.f32 0.0, %v2023
      %v2025 = vpop.f32.mrf.mxu0
      %2026 = vmatprep.mubr.f32.mxu0 0.0
      %2027 = vmatmul.mubr.f32.gmra.mxu0 %v1837
      %v2028 = vpop.f32.mrf.mxu0
      %v2029 = vadd.f32 0.0, %v2028
      %v2030 = vpop.f32.mrf.mxu0
      %2031 = vmatprep.mubr.f32.mxu0 0.0
      %2032 = vmatmul.mubr.f32.gmra.mxu0 %v1840
      %v2033 = vpop.f32.mrf.mxu0
      %v2034 = vadd.f32 0.0, %v2033
      %v2035 = vpop.f32.mrf.mxu0
      %2036 = vmatprep.mubr.f32.mxu0 0.0
      %2037 = vmatmul.mubr.f32.gmra.mxu0 %v1843
      %v2038 = vpop.f32.mrf.mxu0
      %v2039 = vadd.f32 0.0, %v2038
      %v2040 = vpop.f32.mrf.mxu0
      %2041 = vmatprep.mubr.f32.mxu0 0.0
      %2042 = vmatmul.mubr.f32.gmra.mxu0 %v1846
      %v2043 = vpop.f32.mrf.mxu0
      %v2044 = vadd.f32 0.0, %v2043
      %v2045 = vpop.f32.mrf.mxu0
      %2046 = vmatprep.mubr.f32.mxu0 0.0
      %2047 = vmatmul.mubr.f32.gmra.mxu0 %v1849
      %v2048 = vpop.f32.mrf.mxu0
      %v2049 = vadd.f32 0.0, %v2048
      %v2050 = vpop.f32.mrf.mxu0
      %2051 = vmatprep.mubr.f32.mxu0 0.0
      %2052 = vmatmul.mubr.f32.gmra.mxu0 %v1852
      %v2053 = vpop.f32.mrf.mxu0
      %v2054 = vadd.f32 0.0, %v2053
      %v2055 = vpop.f32.mrf.mxu0
      %2056 = vmatprep.mubr.f32.mxu0 0.0
      %2057 = vmatmul.mubr.f32.gmra.mxu0 %v1855
      %v2058 = vpop.f32.mrf.mxu0
      %v2059 = vadd.f32 0.0, %v2058
      %v2060 = vpop.f32.mrf.mxu0
      %2061 = vmatprep.mubr.f32.mxu0 0.0
      %2062 = vmatmul.mubr.f32.gmra.mxu0 %v1858
      %v2063 = vpop.f32.mrf.mxu0
      %v2064 = vadd.f32 0.0, %v2063
      %v2065 = vpop.f32.mrf.mxu0
      %2066 = vmatprep.mubr.f32.mxu0 0.0
      %2067 = vmatmul.mubr.f32.gmra.mxu0 %v1861
      %v2068 = vpop.f32.mrf.mxu0
      %v2069 = vadd.f32 0.0, %v2068
      %v2070 = vpop.f32.mrf.mxu0
      %2071 = vmatprep.mubr.f32.mxu0 0.0
      %2072 = vmatmul.mubr.f32.gmra.mxu0 %v1864
      %v2073 = vpop.f32.mrf.mxu0
      %v2074 = vadd.f32 0.0, %v2073
      %v2075 = vpop.f32.mrf.mxu0
      %2076 = vmatprep.mubr.f32.mxu0 0.0
      %2077 = vmatmul.mubr.f32.gmra.mxu0 %v1867
      %v2078 = vpop.f32.mrf.mxu0
      %v2079 = vadd.f32 0.0, %v2078
      %v2080 = vpop.f32.mrf.mxu0
      %2081 = vmatprep.mubr.f32.mxu0 0.0
      %2082 = vmatmul.mubr.f32.gmra.mxu0 %v1870
      %v2083 = vpop.f32.mrf.mxu0
      %v2084 = vadd.f32 0.0, %v2083
      %v2085 = vpop.f32.mrf.mxu0
      %2086 = vmatprep.mubr.f32.mxu0 0.0
      %2087 = vmatmul.mubr.f32.gmra.mxu0 %v1873
      %v2088 = vpop.f32.mrf.mxu0
      %v2089 = vadd.f32 0.0, %v2088
      %v2090 = vpop.f32.mrf.mxu0
      %2091 = vmatprep.mubr.f32.mxu0 0.0
      %2092 = vmatmul.mubr.f32.gmra.mxu0 %v1876
      %v2093 = vpop.f32.mrf.mxu0
      %v2094 = vadd.f32 0.0, %v2093
      %v2095 = vpop.f32.mrf.mxu0
      %2096 = vmatprep.mubr.f32.mxu0 0.0
      %2097 = vmatmul.mubr.f32.gmra.mxu0 %v1879
      %v2098 = vpop.f32.mrf.mxu0
      %v2099 = vadd.f32 0.0, %v2098
      %v2100 = vpop.f32.mrf.mxu0
      %2101 = vmatprep.mubr.f32.mxu0 0.0
      %2102 = vmatmul.mubr.f32.gmra.mxu0 %v1882
      %v2103 = vpop.f32.mrf.mxu0
      %v2104 = vadd.f32 0.0, %v2103
      %v2105 = vpop.f32.mrf.mxu0
      %2106 = vmatprep.mubr.f32.mxu0 0.0
      %2107 = vmatmul.mubr.f32.gmra.mxu0 %v1885
      %v2108 = vpop.f32.mrf.mxu0
      %v2109 = vadd.f32 0.0, %v2108
      %v2110 = vpop.f32.mrf.mxu0
      %2111 = vdwg.mxu0
      %v2112 = vadd.f32 %v1725, %v1954
      %v2113 = vadd.f32 %v1726, %v1959
      %v2114 = vadd.f32 %v1727, %v1964
      %v2115 = vadd.f32 %v1728, %v1969
      %v2116 = vadd.f32 %v1729, %v1974
      %v2117 = vadd.f32 %v1730, %v1979
      %v2118 = vadd.f32 %v1731, %v1984
      %v2119 = vadd.f32 %v1732, %v1989
      %v2120 = vadd.f32 %v1733, %v1994
      %v2121 = vadd.f32 %v1734, %v1999
      %v2122 = vadd.f32 %v1735, %v2004
      %v2123 = vadd.f32 %v1736, %v2009
      %v2124 = vadd.f32 %v1737, %v2014
      %v2125 = vadd.f32 %v1738, %v2019
      %v2126 = vadd.f32 %v1739, %v2024
      %v2127 = vadd.f32 %v1740, %v2029
      %v2128 = vadd.f32 %v1741, %v2034
      %v2129 = vadd.f32 %v1742, %v2039
      %v2130 = vadd.f32 %v1743, %v2044
      %v2131 = vadd.f32 %v1744, %v2049
      %v2132 = vadd.f32 %v1745, %v2054
      %v2133 = vadd.f32 %v1746, %v2059
      %v2134 = vadd.f32 %v1747, %v2064
      %v2135 = vadd.f32 %v1748, %v2069
      %v2136 = vadd.f32 %v1749, %v2074
      %v2137 = vadd.f32 %v1750, %v2079
      %v2138 = vadd.f32 %v1751, %v2084
      %v2139 = vadd.f32 %v1752, %v2089
      %v2140 = vadd.f32 %v1753, %v2094
      %v2141 = vadd.f32 %v1754, %v2099
      %v2142 = vadd.f32 %v1755, %v2104
      %v2143 = vadd.f32 %v1756, %v2109
      %v2144 = vld [vmem:[%s1369 + $0x2] sm:$0xff]
      %v2145 = vld [vmem:[%s1369 + $0xa] sm:$0xff]
      %v2146 = vld [vmem:[%s1369 + $0x1a] sm:$0xff]
      %v2147 = vld [vmem:[%s1369 + $0x22] sm:$0xff]
      %v2148 = vld [vmem:[%s1369 + $0x32] sm:$0xff]
      %v2149 = vld [vmem:[%s1369 + $0x3a] sm:$0xff]
      %v2150 = vld [vmem:[%s1369 + $0x4a] sm:$0xff]
      %v2151 = vld [vmem:[%s1369 + $0x52] sm:$0xff]
      %v2152 = vld [vmem:[%s1369 + $0x62] sm:$0xff]
      %v2153 = vld [vmem:[%s1369 + $0x6a] sm:$0xff]
      %v2154 = vld [vmem:[%s1369 + $0x7a] sm:$0xff]
      %v2155 = vld [vmem:[%s1369 + $0x82] sm:$0xff]
      %v2156 = vld [vmem:[%s1369 + $0x92] sm:$0xff]
      %v2157 = vld [vmem:[%s1369 + $0x9a] sm:$0xff]
      %v2158 = vld [vmem:[%s1369 + $0xaa] sm:$0xff]
      %v2159 = vld [vmem:[%s1369 + $0xb2] sm:$0xff]
      %v2160 = vld [vmem:[%s1369 + $0xc2] sm:$0xff]
      %v2161 = vld [vmem:[%s1369 + $0xca] sm:$0xff]
      %v2162 = vld [vmem:[%s1369 + $0xda] sm:$0xff]
      %v2163 = vld [vmem:[%s1369 + $0xe2] sm:$0xff]
      %v2164 = vld [vmem:[%s1369 + $0xf2] sm:$0xff]
      %v2165 = vld [vmem:[%s1369 + $0xfa] sm:$0xff]
      %v2166 = vld [vmem:[%s1369 + $0x10a] sm:$0xff]
      %v2167 = vld [vmem:[%s1369 + $0x112] sm:$0xff]
      %v2168 = vld [vmem:[%s1369 + $0x122] sm:$0xff]
      %v2169 = vld [vmem:[%s1369 + $0x12a] sm:$0xff]
      %v2170 = vld [vmem:[%s1369 + $0x13a] sm:$0xff]
      %v2171 = vld [vmem:[%s1369 + $0x142] sm:$0xff]
      %v2172 = vld [vmem:[%s1369 + $0x152] sm:$0xff]
      %v2173 = vld [vmem:[%s1369 + $0x15a] sm:$0xff]
      %v2174 = vld [vmem:[%s1369 + $0x16a] sm:$0xff]
      %v2175 = vld [vmem:[%s1369 + $0x172] sm:$0xff]
      %s2176 = scalar_lea.vmem %s1, 40
      %v2177 = vld [vmem:[%s2176] sm:$0xff]
      %v2179 = vsel %vm339, %v2144, 0
      %v2182 = vsel %vm339, %v2145, 0
      %v2185 = vsel %vm339, %v2146, 0
      %v2188 = vsel %vm339, %v2147, 0
      %v2191 = vsel %vm339, %v2148, 0
      %v2194 = vsel %vm339, %v2149, 0
      %v2197 = vsel %vm339, %v2150, 0
      %v2200 = vsel %vm339, %v2151, 0
      %v2203 = vsel %vm339, %v2152, 0
      %v2206 = vsel %vm339, %v2153, 0
      %v2209 = vsel %vm339, %v2154, 0
      %v2212 = vsel %vm339, %v2155, 0
      %v2215 = vsel %vm339, %v2156, 0
      %v2218 = vsel %vm339, %v2157, 0
      %v2221 = vsel %vm339, %v2158, 0
      %v2224 = vsel %vm339, %v2159, 0
      %v2227 = vsel %vm339, %v2160, 0
      %v2230 = vsel %vm339, %v2161, 0
      %v2233 = vsel %vm339, %v2162, 0
      %v2236 = vsel %vm339, %v2163, 0
      %v2239 = vsel %vm339, %v2164, 0
      %v2242 = vsel %vm339, %v2165, 0
      %v2245 = vsel %vm339, %v2166, 0
      %v2248 = vsel %vm339, %v2167, 0
      %v2251 = vsel %vm339, %v2168, 0
      %v2254 = vsel %vm339, %v2169, 0
      %v2257 = vsel %vm339, %v2170, 0
      %v2260 = vsel %vm339, %v2171, 0
      %v2263 = vsel %vm339, %v2172, 0
      %v2266 = vsel %vm339, %v2173, 0
      %v2269 = vsel %vm339, %v2174, 0
      %v2272 = vsel %vm339, %v2175, 0
      %2274 = vmatprep.subr.mxu0 0.0
      %2275 = vmatpush1.msra.mxu0 0.0
      %2276 = vmatprep.subr.mxu0 0.0
      %2277 = vmatpush1.msra.mxu0 0.0
      %2278 = vmatprep.subr.mxu0 0.0
      %2279 = vmatpush1.msra.mxu0 0.0
      %2280 = vmatprep.subr.mxu0 0.0
      %2281 = vmatpush1.msra.mxu0 0.0
      %2282 = vmatprep.subr.mxu0 0.0
      %2283 = vmatpush1.msra.mxu0 0.0
      %2284 = vmatprep.subr.mxu0 0.0
      %2285 = vmatpush1.msra.mxu0 0.0
      %2286 = vmatprep.subr.mxu0 0.0
      %2287 = vmatpush1.msra.mxu0 0.0
      %2288 = vmatprep.subr.mxu0 0.0
      %2289 = vmatpush1.msra.mxu0 0.0
      %2290 = vmatprep.subr.mxu0 0.0
      %2291 = vmatpush1.msra.mxu0 0.0
      %2292 = vmatprep.subr.mxu0 0.0
      %2293 = vmatpush1.msra.mxu0 0.0
      %2294 = vmatprep.subr.mxu0 0.0
      %2295 = vmatpush1.msra.mxu0 0.0
      %2296 = vmatprep.subr.mxu0 0.0
      %2297 = vmatpush1.msra.mxu0 0.0
      %2298 = vmatprep.subr.mxu0 0.0
      %2299 = vmatpush1.msra.mxu0 0.0
      %2300 = vmatprep.subr.mxu0 0.0
      %2301 = vmatpush1.msra.mxu0 0.0
      %2302 = vmatprep.subr.mxu0 0.0
      %2303 = vmatpush1.msra.mxu0 0.0
      %2304 = vmatprep.subr.mxu0 0.0
      %2305 = vmatpush1.msra.mxu0 %v2177
      %2306 = vmatprep.subr.mxu0 0.0
      %2307 = vmatpush2.msra.mxu0 0.0
      %2308 = vmatprep.subr.mxu0 0.0
      %2309 = vmatpush2.msra.mxu0 0.0
      %2310 = vmatprep.subr.mxu0 0.0
      %2311 = vmatpush2.msra.mxu0 0.0
      %2312 = vmatprep.subr.mxu0 0.0
      %2313 = vmatpush2.msra.mxu0 0.0
      %2314 = vmatprep.subr.mxu0 0.0
      %2315 = vmatpush2.msra.mxu0 0.0
      %2316 = vmatprep.subr.mxu0 0.0
      %2317 = vmatpush2.msra.mxu0 0.0
      %2318 = vmatprep.subr.mxu0 0.0
      %2319 = vmatpush2.msra.mxu0 0.0
      %2320 = vmatprep.subr.mxu0 0.0
      %2321 = vmatpush2.msra.mxu0 0.0
      %2322 = vmatprep.subr.mxu0 0.0
      %2323 = vmatpush2.msra.mxu0 0.0
      %2324 = vmatprep.subr.mxu0 0.0
      %2325 = vmatpush2.msra.mxu0 0.0
      %2326 = vmatprep.subr.mxu0 0.0
      %2327 = vmatpush2.msra.mxu0 0.0
      %2328 = vmatprep.subr.mxu0 0.0
      %2329 = vmatpush2.msra.mxu0 0.0
      %2330 = vmatprep.subr.mxu0 0.0
      %2331 = vmatpush2.msra.mxu0 0.0
      %2332 = vmatprep.subr.mxu0 0.0
      %2333 = vmatpush2.msra.mxu0 0.0
      %2334 = vmatprep.subr.mxu0 0.0
      %2335 = vmatpush2.msra.mxu0 0.0
      %2336 = vmatprep.subr.mxu0 0.0
      %2337 = vmatpush2.msra.mxu0 0.0
      %2338 = vmatprep.mubr.f32.mxu0 0.0
      %2339 = vmatmul.mubr.f32.gmra.mxu0 %v2179
      %v2340 = vpop.f32.mrf.mxu0
      %v2341 = vadd.f32 0.0, %v2340
      %v2342 = vpop.f32.mrf.mxu0
      %2343 = vmatprep.mubr.f32.mxu0 0.0
      %2344 = vmatmul.mubr.f32.gmra.mxu0 %v2182
      %v2345 = vpop.f32.mrf.mxu0
      %v2346 = vadd.f32 0.0, %v2345
      %v2347 = vpop.f32.mrf.mxu0
      %2348 = vmatprep.mubr.f32.mxu0 0.0
      %2349 = vmatmul.mubr.f32.gmra.mxu0 %v2185
      %v2350 = vpop.f32.mrf.mxu0
      %v2351 = vadd.f32 0.0, %v2350
      %v2352 = vpop.f32.mrf.mxu0
      %2353 = vmatprep.mubr.f32.mxu0 0.0
      %2354 = vmatmul.mubr.f32.gmra.mxu0 %v2188
      %v2355 = vpop.f32.mrf.mxu0
      %v2356 = vadd.f32 0.0, %v2355
      %v2357 = vpop.f32.mrf.mxu0
      %2358 = vmatprep.mubr.f32.mxu0 0.0
      %2359 = vmatmul.mubr.f32.gmra.mxu0 %v2191
      %v2360 = vpop.f32.mrf.mxu0
      %v2361 = vadd.f32 0.0, %v2360
      %v2362 = vpop.f32.mrf.mxu0
      %2363 = vmatprep.mubr.f32.mxu0 0.0
      %2364 = vmatmul.mubr.f32.gmra.mxu0 %v2194
      %v2365 = vpop.f32.mrf.mxu0
      %v2366 = vadd.f32 0.0, %v2365
      %v2367 = vpop.f32.mrf.mxu0
      %2368 = vmatprep.mubr.f32.mxu0 0.0
      %2369 = vmatmul.mubr.f32.gmra.mxu0 %v2197
      %v2370 = vpop.f32.mrf.mxu0
      %v2371 = vadd.f32 0.0, %v2370
      %v2372 = vpop.f32.mrf.mxu0
      %2373 = vmatprep.mubr.f32.mxu0 0.0
      %2374 = vmatmul.mubr.f32.gmra.mxu0 %v2200
      %v2375 = vpop.f32.mrf.mxu0
      %v2376 = vadd.f32 0.0, %v2375
      %v2377 = vpop.f32.mrf.mxu0
      %2378 = vmatprep.mubr.f32.mxu0 0.0
      %2379 = vmatmul.mubr.f32.gmra.mxu0 %v2203
      %v2380 = vpop.f32.mrf.mxu0
      %v2381 = vadd.f32 0.0, %v2380
      %v2382 = vpop.f32.mrf.mxu0
      %2383 = vmatprep.mubr.f32.mxu0 0.0
      %2384 = vmatmul.mubr.f32.gmra.mxu0 %v2206
      %v2385 = vpop.f32.mrf.mxu0
      %v2386 = vadd.f32 0.0, %v2385
      %v2387 = vpop.f32.mrf.mxu0
      %2388 = vmatprep.mubr.f32.mxu0 0.0
      %2389 = vmatmul.mubr.f32.gmra.mxu0 %v2209
      %v2390 = vpop.f32.mrf.mxu0
      %v2391 = vadd.f32 0.0, %v2390
      %v2392 = vpop.f32.mrf.mxu0
      %2393 = vmatprep.mubr.f32.mxu0 0.0
      %2394 = vmatmul.mubr.f32.gmra.mxu0 %v2212
      %v2395 = vpop.f32.mrf.mxu0
      %v2396 = vadd.f32 0.0, %v2395
      %v2397 = vpop.f32.mrf.mxu0
      %2398 = vmatprep.mubr.f32.mxu0 0.0
      %2399 = vmatmul.mubr.f32.gmra.mxu0 %v2215
      %v2400 = vpop.f32.mrf.mxu0
      %v2401 = vadd.f32 0.0, %v2400
      %v2402 = vpop.f32.mrf.mxu0
      %2403 = vmatprep.mubr.f32.mxu0 0.0
      %2404 = vmatmul.mubr.f32.gmra.mxu0 %v2218
      %v2405 = vpop.f32.mrf.mxu0
      %v2406 = vadd.f32 0.0, %v2405
      %v2407 = vpop.f32.mrf.mxu0
      %2408 = vmatprep.mubr.f32.mxu0 0.0
      %2409 = vmatmul.mubr.f32.gmra.mxu0 %v2221
      %v2410 = vpop.f32.mrf.mxu0
      %v2411 = vadd.f32 0.0, %v2410
      %v2412 = vpop.f32.mrf.mxu0
      %2413 = vmatprep.mubr.f32.mxu0 0.0
      %2414 = vmatmul.mubr.f32.gmra.mxu0 %v2224
      %v2415 = vpop.f32.mrf.mxu0
      %v2416 = vadd.f32 0.0, %v2415
      %v2417 = vpop.f32.mrf.mxu0
      %2418 = vmatprep.mubr.f32.mxu0 0.0
      %2419 = vmatmul.mubr.f32.gmra.mxu0 %v2227
      %v2420 = vpop.f32.mrf.mxu0
      %v2421 = vadd.f32 0.0, %v2420
      %v2422 = vpop.f32.mrf.mxu0
      %2423 = vmatprep.mubr.f32.mxu0 0.0
      %2424 = vmatmul.mubr.f32.gmra.mxu0 %v2230
      %v2425 = vpop.f32.mrf.mxu0
      %v2426 = vadd.f32 0.0, %v2425
      %v2427 = vpop.f32.mrf.mxu0
      %2428 = vmatprep.mubr.f32.mxu0 0.0
      %2429 = vmatmul.mubr.f32.gmra.mxu0 %v2233
      %v2430 = vpop.f32.mrf.mxu0
      %v2431 = vadd.f32 0.0, %v2430
      %v2432 = vpop.f32.mrf.mxu0
      %2433 = vmatprep.mubr.f32.mxu0 0.0
      %2434 = vmatmul.mubr.f32.gmra.mxu0 %v2236
      %v2435 = vpop.f32.mrf.mxu0
      %v2436 = vadd.f32 0.0, %v2435
      %v2437 = vpop.f32.mrf.mxu0
      %2438 = vmatprep.mubr.f32.mxu0 0.0
      %2439 = vmatmul.mubr.f32.gmra.mxu0 %v2239
      %v2440 = vpop.f32.mrf.mxu0
      %v2441 = vadd.f32 0.0, %v2440
      %v2442 = vpop.f32.mrf.mxu0
      %2443 = vmatprep.mubr.f32.mxu0 0.0
      %2444 = vmatmul.mubr.f32.gmra.mxu0 %v2242
      %v2445 = vpop.f32.mrf.mxu0
      %v2446 = vadd.f32 0.0, %v2445
      %v2447 = vpop.f32.mrf.mxu0
      %2448 = vmatprep.mubr.f32.mxu0 0.0
      %2449 = vmatmul.mubr.f32.gmra.mxu0 %v2245
      %v2450 = vpop.f32.mrf.mxu0
      %v2451 = vadd.f32 0.0, %v2450
      %v2452 = vpop.f32.mrf.mxu0
      %2453 = vmatprep.mubr.f32.mxu0 0.0
      %2454 = vmatmul.mubr.f32.gmra.mxu0 %v2248
      %v2455 = vpop.f32.mrf.mxu0
      %v2456 = vadd.f32 0.0, %v2455
      %v2457 = vpop.f32.mrf.mxu0
      %2458 = vmatprep.mubr.f32.mxu0 0.0
      %2459 = vmatmul.mubr.f32.gmra.mxu0 %v2251
      %v2460 = vpop.f32.mrf.mxu0
      %v2461 = vadd.f32 0.0, %v2460
      %v2462 = vpop.f32.mrf.mxu0
      %2463 = vmatprep.mubr.f32.mxu0 0.0
      %2464 = vmatmul.mubr.f32.gmra.mxu0 %v2254
      %v2465 = vpop.f32.mrf.mxu0
      %v2466 = vadd.f32 0.0, %v2465
      %v2467 = vpop.f32.mrf.mxu0
      %2468 = vmatprep.mubr.f32.mxu0 0.0
      %2469 = vmatmul.mubr.f32.gmra.mxu0 %v2257
      %v2470 = vpop.f32.mrf.mxu0
      %v2471 = vadd.f32 0.0, %v2470
      %v2472 = vpop.f32.mrf.mxu0
      %2473 = vmatprep.mubr.f32.mxu0 0.0
      %2474 = vmatmul.mubr.f32.gmra.mxu0 %v2260
      %v2475 = vpop.f32.mrf.mxu0
      %v2476 = vadd.f32 0.0, %v2475
      %v2477 = vpop.f32.mrf.mxu0
      %2478 = vmatprep.mubr.f32.mxu0 0.0
      %2479 = vmatmul.mubr.f32.gmra.mxu0 %v2263
      %v2480 = vpop.f32.mrf.mxu0
      %v2481 = vadd.f32 0.0, %v2480
      %v2482 = vpop.f32.mrf.mxu0
      %2483 = vmatprep.mubr.f32.mxu0 0.0
      %2484 = vmatmul.mubr.f32.gmra.mxu0 %v2266
      %v2485 = vpop.f32.mrf.mxu0
      %v2486 = vadd.f32 0.0, %v2485
      %v2487 = vpop.f32.mrf.mxu0
      %2488 = vmatprep.mubr.f32.mxu0 0.0
      %2489 = vmatmul.mubr.f32.gmra.mxu0 %v2269
      %v2490 = vpop.f32.mrf.mxu0
      %v2491 = vadd.f32 0.0, %v2490
      %v2492 = vpop.f32.mrf.mxu0
      %2493 = vmatprep.mubr.f32.mxu0 0.0
      %2494 = vmatmul.mubr.f32.gmra.mxu0 %v2272
      %v2495 = vpop.f32.mrf.mxu0
      %v2496 = vadd.f32 0.0, %v2495
      %v2497 = vpop.f32.mrf.mxu0
      %2498 = vdwg.mxu0
      %v2499 = vadd.f32 %v2112, %v2341
      %v2500 = vadd.f32 %v2113, %v2346
      %v2501 = vadd.f32 %v2114, %v2351
      %v2502 = vadd.f32 %v2115, %v2356
      %v2503 = vadd.f32 %v2116, %v2361
      %v2504 = vadd.f32 %v2117, %v2366
      %v2505 = vadd.f32 %v2118, %v2371
      %v2506 = vadd.f32 %v2119, %v2376
      %v2507 = vadd.f32 %v2120, %v2381
      %v2508 = vadd.f32 %v2121, %v2386
      %v2509 = vadd.f32 %v2122, %v2391
      %v2510 = vadd.f32 %v2123, %v2396
      %v2511 = vadd.f32 %v2124, %v2401
      %v2512 = vadd.f32 %v2125, %v2406
      %v2513 = vadd.f32 %v2126, %v2411
      %v2514 = vadd.f32 %v2127, %v2416
      %v2515 = vadd.f32 %v2128, %v2421
      %v2516 = vadd.f32 %v2129, %v2426
      %v2517 = vadd.f32 %v2130, %v2431
      %v2518 = vadd.f32 %v2131, %v2436
      %v2519 = vadd.f32 %v2132, %v2441
      %v2520 = vadd.f32 %v2133, %v2446
      %v2521 = vadd.f32 %v2134, %v2451
      %v2522 = vadd.f32 %v2135, %v2456
      %v2523 = vadd.f32 %v2136, %v2461
      %v2524 = vadd.f32 %v2137, %v2466
      %v2525 = vadd.f32 %v2138, %v2471
      %v2526 = vadd.f32 %v2139, %v2476
      %v2527 = vadd.f32 %v2140, %v2481
      %v2528 = vadd.f32 %v2141, %v2486
      %v2529 = vadd.f32 %v2142, %v2491
      %v2530 = vadd.f32 %v2143, %v2496
      %s2531 = scalar_lea.vmem %s261, 48
      %v2532 = vld [vmem:[%s2531] sm:$0xff]
      %v2533 = vld [vmem:[%s2531 + $0x8] sm:$0xff]
      %v2534 = vld [vmem:[%s2531 + $0x18] sm:$0xff]
      %v2535 = vld [vmem:[%s2531 + $0x20] sm:$0xff]
      %v2536 = vld [vmem:[%s2531 + $0x30] sm:$0xff]
      %v2537 = vld [vmem:[%s2531 + $0x38] sm:$0xff]
      %v2538 = vld [vmem:[%s2531 + $0x48] sm:$0xff]
      %v2539 = vld [vmem:[%s2531 + $0x50] sm:$0xff]
      %v2540 = vld [vmem:[%s2531 + $0x60] sm:$0xff]
      %v2541 = vld [vmem:[%s2531 + $0x68] sm:$0xff]
      %v2542 = vld [vmem:[%s2531 + $0x78] sm:$0xff]
      %v2543 = vld [vmem:[%s2531 + $0x80] sm:$0xff]
      %v2544 = vld [vmem:[%s2531 + $0x90] sm:$0xff]
      %v2545 = vld [vmem:[%s2531 + $0x98] sm:$0xff]
      %v2546 = vld [vmem:[%s2531 + $0xa8] sm:$0xff]
      %v2547 = vld [vmem:[%s2531 + $0xb0] sm:$0xff]
      %v2548 = vld [vmem:[%s2531 + $0xc0] sm:$0xff]
      %v2549 = vld [vmem:[%s2531 + $0xc8] sm:$0xff]
      %v2550 = vld [vmem:[%s2531 + $0xd8] sm:$0xff]
      %v2551 = vld [vmem:[%s2531 + $0xe0] sm:$0xff]
      %v2552 = vld [vmem:[%s2531 + $0xf0] sm:$0xff]
      %v2553 = vld [vmem:[%s2531 + $0xf8] sm:$0xff]
      %v2554 = vld [vmem:[%s2531 + $0x108] sm:$0xff]
      %v2555 = vld [vmem:[%s2531 + $0x110] sm:$0xff]
      %v2556 = vld [vmem:[%s2531 + $0x120] sm:$0xff]
      %v2557 = vld [vmem:[%s2531 + $0x128] sm:$0xff]
      %v2558 = vld [vmem:[%s2531 + $0x138] sm:$0xff]
      %v2559 = vld [vmem:[%s2531 + $0x140] sm:$0xff]
      %v2560 = vld [vmem:[%s2531 + $0x150] sm:$0xff]
      %v2561 = vld [vmem:[%s2531 + $0x158] sm:$0xff]
      %v2562 = vld [vmem:[%s2531 + $0x168] sm:$0xff]
      %v2563 = vld [vmem:[%s2531 + $0x170] sm:$0xff]
      %s2564 = scalar_lea.vmem %s1, 48
      %v2565 = vld [vmem:[%s2564] sm:$0xff]
      %v2567 = vsel %vm339, %v2532, 0
      %v2570 = vsel %vm339, %v2533, 0
      %v2573 = vsel %vm339, %v2534, 0
      %v2576 = vsel %vm339, %v2535, 0
      %v2579 = vsel %vm339, %v2536, 0
      %v2582 = vsel %vm339, %v2537, 0
      %v2585 = vsel %vm339, %v2538, 0
      %v2588 = vsel %vm339, %v2539, 0
      %v2591 = vsel %vm339, %v2540, 0
      %v2594 = vsel %vm339, %v2541, 0
      %v2597 = vsel %vm339, %v2542, 0
      %v2600 = vsel %vm339, %v2543, 0
      %v2603 = vsel %vm339, %v2544, 0
      %v2606 = vsel %vm339, %v2545, 0
      %v2609 = vsel %vm339, %v2546, 0
      %v2612 = vsel %vm339, %v2547, 0
      %v2615 = vsel %vm339, %v2548, 0
      %v2618 = vsel %vm339, %v2549, 0
      %v2621 = vsel %vm339, %v2550, 0
      %v2624 = vsel %vm339, %v2551, 0
      %v2627 = vsel %vm339, %v2552, 0
      %v2630 = vsel %vm339, %v2553, 0
      %v2633 = vsel %vm339, %v2554, 0
      %v2636 = vsel %vm339, %v2555, 0
      %v2639 = vsel %vm339, %v2556, 0
      %v2642 = vsel %vm339, %v2557, 0
      %v2645 = vsel %vm339, %v2558, 0
      %v2648 = vsel %vm339, %v2559, 0
      %v2651 = vsel %vm339, %v2560, 0
      %v2654 = vsel %vm339, %v2561, 0
      %v2657 = vsel %vm339, %v2562, 0
      %v2660 = vsel %vm339, %v2563, 0
      %2662 = vmatprep.subr.mxu0 0.0
      %2663 = vmatpush1.msra.mxu0 0.0
      %2664 = vmatprep.subr.mxu0 0.0
      %2665 = vmatpush1.msra.mxu0 0.0
      %2666 = vmatprep.subr.mxu0 0.0
      %2667 = vmatpush1.msra.mxu0 0.0
      %2668 = vmatprep.subr.mxu0 0.0
      %2669 = vmatpush1.msra.mxu0 0.0
      %2670 = vmatprep.subr.mxu0 0.0
      %2671 = vmatpush1.msra.mxu0 0.0
      %2672 = vmatprep.subr.mxu0 0.0
      %2673 = vmatpush1.msra.mxu0 0.0
      %2674 = vmatprep.subr.mxu0 0.0
      %2675 = vmatpush1.msra.mxu0 0.0
      %2676 = vmatprep.subr.mxu0 0.0
      %2677 = vmatpush1.msra.mxu0 0.0
      %2678 = vmatprep.subr.mxu0 0.0
      %2679 = vmatpush1.msra.mxu0 0.0
      %2680 = vmatprep.subr.mxu0 0.0
      %2681 = vmatpush1.msra.mxu0 0.0
      %2682 = vmatprep.subr.mxu0 0.0
      %2683 = vmatpush1.msra.mxu0 0.0
      %2684 = vmatprep.subr.mxu0 0.0
      %2685 = vmatpush1.msra.mxu0 0.0
      %2686 = vmatprep.subr.mxu0 0.0
      %2687 = vmatpush1.msra.mxu0 0.0
      %2688 = vmatprep.subr.mxu0 0.0
      %2689 = vmatpush1.msra.mxu0 0.0
      %2690 = vmatprep.subr.mxu0 0.0
      %2691 = vmatpush1.msra.mxu0 0.0
      %2692 = vmatprep.subr.mxu0 0.0
      %2693 = vmatpush1.msra.mxu0 %v2565
      %2694 = vmatprep.subr.mxu0 0.0
      %2695 = vmatpush2.msra.mxu0 0.0
      %2696 = vmatprep.subr.mxu0 0.0
      %2697 = vmatpush2.msra.mxu0 0.0
      %2698 = vmatprep.subr.mxu0 0.0
      %2699 = vmatpush2.msra.mxu0 0.0
      %2700 = vmatprep.subr.mxu0 0.0
      %2701 = vmatpush2.msra.mxu0 0.0
      %2702 = vmatprep.subr.mxu0 0.0
      %2703 = vmatpush2.msra.mxu0 0.0
      %2704 = vmatprep.subr.mxu0 0.0
      %2705 = vmatpush2.msra.mxu0 0.0
      %2706 = vmatprep.subr.mxu0 0.0
      %2707 = vmatpush2.msra.mxu0 0.0
      %2708 = vmatprep.subr.mxu0 0.0
      %2709 = vmatpush2.msra.mxu0 0.0
      %2710 = vmatprep.subr.mxu0 0.0
      %2711 = vmatpush2.msra.mxu0 0.0
      %2712 = vmatprep.subr.mxu0 0.0
      %2713 = vmatpush2.msra.mxu0 0.0
      %2714 = vmatprep.subr.mxu0 0.0
      %2715 = vmatpush2.msra.mxu0 0.0
      %2716 = vmatprep.subr.mxu0 0.0
      %2717 = vmatpush2.msra.mxu0 0.0
      %2718 = vmatprep.subr.mxu0 0.0
      %2719 = vmatpush2.msra.mxu0 0.0
      %2720 = vmatprep.subr.mxu0 0.0
      %2721 = vmatpush2.msra.mxu0 0.0
      %2722 = vmatprep.subr.mxu0 0.0
      %2723 = vmatpush2.msra.mxu0 0.0
      %2724 = vmatprep.subr.mxu0 0.0
      %2725 = vmatpush2.msra.mxu0 0.0
      %2726 = vmatprep.mubr.f32.mxu0 0.0
      %2727 = vmatmul.mubr.f32.gmra.mxu0 %v2567
      %v2728 = vpop.f32.mrf.mxu0
      %v2729 = vadd.f32 0.0, %v2728
      %v2730 = vpop.f32.mrf.mxu0
      %2731 = vmatprep.mubr.f32.mxu0 0.0
      %2732 = vmatmul.mubr.f32.gmra.mxu0 %v2570
      %v2733 = vpop.f32.mrf.mxu0
      %v2734 = vadd.f32 0.0, %v2733
      %v2735 = vpop.f32.mrf.mxu0
      %2736 = vmatprep.mubr.f32.mxu0 0.0
      %2737 = vmatmul.mubr.f32.gmra.mxu0 %v2573
      %v2738 = vpop.f32.mrf.mxu0
      %v2739 = vadd.f32 0.0, %v2738
      %v2740 = vpop.f32.mrf.mxu0
      %2741 = vmatprep.mubr.f32.mxu0 0.0
      %2742 = vmatmul.mubr.f32.gmra.mxu0 %v2576
      %v2743 = vpop.f32.mrf.mxu0
      %v2744 = vadd.f32 0.0, %v2743
      %v2745 = vpop.f32.mrf.mxu0
      %2746 = vmatprep.mubr.f32.mxu0 0.0
      %2747 = vmatmul.mubr.f32.gmra.mxu0 %v2579
      %v2748 = vpop.f32.mrf.mxu0
      %v2749 = vadd.f32 0.0, %v2748
      %v2750 = vpop.f32.mrf.mxu0
      %2751 = vmatprep.mubr.f32.mxu0 0.0
      %2752 = vmatmul.mubr.f32.gmra.mxu0 %v2582
      %v2753 = vpop.f32.mrf.mxu0
      %v2754 = vadd.f32 0.0, %v2753
      %v2755 = vpop.f32.mrf.mxu0
      %2756 = vmatprep.mubr.f32.mxu0 0.0
      %2757 = vmatmul.mubr.f32.gmra.mxu0 %v2585
      %v2758 = vpop.f32.mrf.mxu0
      %v2759 = vadd.f32 0.0, %v2758
      %v2760 = vpop.f32.mrf.mxu0
      %2761 = vmatprep.mubr.f32.mxu0 0.0
      %2762 = vmatmul.mubr.f32.gmra.mxu0 %v2588
      %v2763 = vpop.f32.mrf.mxu0
      %v2764 = vadd.f32 0.0, %v2763
      %v2765 = vpop.f32.mrf.mxu0
      %2766 = vmatprep.mubr.f32.mxu0 0.0
      %2767 = vmatmul.mubr.f32.gmra.mxu0 %v2591
      %v2768 = vpop.f32.mrf.mxu0
      %v2769 = vadd.f32 0.0, %v2768
      %v2770 = vpop.f32.mrf.mxu0
      %2771 = vmatprep.mubr.f32.mxu0 0.0
      %2772 = vmatmul.mubr.f32.gmra.mxu0 %v2594
      %v2773 = vpop.f32.mrf.mxu0
      %v2774 = vadd.f32 0.0, %v2773
      %v2775 = vpop.f32.mrf.mxu0
      %2776 = vmatprep.mubr.f32.mxu0 0.0
      %2777 = vmatmul.mubr.f32.gmra.mxu0 %v2597
      %v2778 = vpop.f32.mrf.mxu0
      %v2779 = vadd.f32 0.0, %v2778
      %v2780 = vpop.f32.mrf.mxu0
      %2781 = vmatprep.mubr.f32.mxu0 0.0
      %2782 = vmatmul.mubr.f32.gmra.mxu0 %v2600
      %v2783 = vpop.f32.mrf.mxu0
      %v2784 = vadd.f32 0.0, %v2783
      %v2785 = vpop.f32.mrf.mxu0
      %2786 = vmatprep.mubr.f32.mxu0 0.0
      %2787 = vmatmul.mubr.f32.gmra.mxu0 %v2603
      %v2788 = vpop.f32.mrf.mxu0
      %v2789 = vadd.f32 0.0, %v2788
      %v2790 = vpop.f32.mrf.mxu0
      %2791 = vmatprep.mubr.f32.mxu0 0.0
      %2792 = vmatmul.mubr.f32.gmra.mxu0 %v2606
      %v2793 = vpop.f32.mrf.mxu0
      %v2794 = vadd.f32 0.0, %v2793
      %v2795 = vpop.f32.mrf.mxu0
      %2796 = vmatprep.mubr.f32.mxu0 0.0
      %2797 = vmatmul.mubr.f32.gmra.mxu0 %v2609
      %v2798 = vpop.f32.mrf.mxu0
      %v2799 = vadd.f32 0.0, %v2798
      %v2800 = vpop.f32.mrf.mxu0
      %2801 = vmatprep.mubr.f32.mxu0 0.0
      %2802 = vmatmul.mubr.f32.gmra.mxu0 %v2612
      %v2803 = vpop.f32.mrf.mxu0
      %v2804 = vadd.f32 0.0, %v2803
      %v2805 = vpop.f32.mrf.mxu0
      %2806 = vmatprep.mubr.f32.mxu0 0.0
      %2807 = vmatmul.mubr.f32.gmra.mxu0 %v2615
      %v2808 = vpop.f32.mrf.mxu0
      %v2809 = vadd.f32 0.0, %v2808
      %v2810 = vpop.f32.mrf.mxu0
      %2811 = vmatprep.mubr.f32.mxu0 0.0
      %2812 = vmatmul.mubr.f32.gmra.mxu0 %v2618
      %v2813 = vpop.f32.mrf.mxu0
      %v2814 = vadd.f32 0.0, %v2813
      %v2815 = vpop.f32.mrf.mxu0
      %2816 = vmatprep.mubr.f32.mxu0 0.0
      %2817 = vmatmul.mubr.f32.gmra.mxu0 %v2621
      %v2818 = vpop.f32.mrf.mxu0
      %v2819 = vadd.f32 0.0, %v2818
      %v2820 = vpop.f32.mrf.mxu0
      %2821 = vmatprep.mubr.f32.mxu0 0.0
      %2822 = vmatmul.mubr.f32.gmra.mxu0 %v2624
      %v2823 = vpop.f32.mrf.mxu0
      %v2824 = vadd.f32 0.0, %v2823
      %v2825 = vpop.f32.mrf.mxu0
      %2826 = vmatprep.mubr.f32.mxu0 0.0
      %2827 = vmatmul.mubr.f32.gmra.mxu0 %v2627
      %v2828 = vpop.f32.mrf.mxu0
      %v2829 = vadd.f32 0.0, %v2828
      %v2830 = vpop.f32.mrf.mxu0
      %2831 = vmatprep.mubr.f32.mxu0 0.0
      %2832 = vmatmul.mubr.f32.gmra.mxu0 %v2630
      %v2833 = vpop.f32.mrf.mxu0
      %v2834 = vadd.f32 0.0, %v2833
      %v2835 = vpop.f32.mrf.mxu0
      %2836 = vmatprep.mubr.f32.mxu0 0.0
      %2837 = vmatmul.mubr.f32.gmra.mxu0 %v2633
      %v2838 = vpop.f32.mrf.mxu0
      %v2839 = vadd.f32 0.0, %v2838
      %v2840 = vpop.f32.mrf.mxu0
      %2841 = vmatprep.mubr.f32.mxu0 0.0
      %2842 = vmatmul.mubr.f32.gmra.mxu0 %v2636
      %v2843 = vpop.f32.mrf.mxu0
      %v2844 = vadd.f32 0.0, %v2843
      %v2845 = vpop.f32.mrf.mxu0
      %2846 = vmatprep.mubr.f32.mxu0 0.0
      %2847 = vmatmul.mubr.f32.gmra.mxu0 %v2639
      %v2848 = vpop.f32.mrf.mxu0
      %v2849 = vadd.f32 0.0, %v2848
      %v2850 = vpop.f32.mrf.mxu0
      %2851 = vmatprep.mubr.f32.mxu0 0.0
      %2852 = vmatmul.mubr.f32.gmra.mxu0 %v2642
      %v2853 = vpop.f32.mrf.mxu0
      %v2854 = vadd.f32 0.0, %v2853
      %v2855 = vpop.f32.mrf.mxu0
      %2856 = vmatprep.mubr.f32.mxu0 0.0
      %2857 = vmatmul.mubr.f32.gmra.mxu0 %v2645
      %v2858 = vpop.f32.mrf.mxu0
      %v2859 = vadd.f32 0.0, %v2858
      %v2860 = vpop.f32.mrf.mxu0
      %2861 = vmatprep.mubr.f32.mxu0 0.0
      %2862 = vmatmul.mubr.f32.gmra.mxu0 %v2648
      %v2863 = vpop.f32.mrf.mxu0
      %v2864 = vadd.f32 0.0, %v2863
      %v2865 = vpop.f32.mrf.mxu0
      %2866 = vmatprep.mubr.f32.mxu0 0.0
      %2867 = vmatmul.mubr.f32.gmra.mxu0 %v2651
      %v2868 = vpop.f32.mrf.mxu0
      %v2869 = vadd.f32 0.0, %v2868
      %v2870 = vpop.f32.mrf.mxu0
      %2871 = vmatprep.mubr.f32.mxu0 0.0
      %2872 = vmatmul.mubr.f32.gmra.mxu0 %v2654
      %v2873 = vpop.f32.mrf.mxu0
      %v2874 = vadd.f32 0.0, %v2873
      %v2875 = vpop.f32.mrf.mxu0
      %2876 = vmatprep.mubr.f32.mxu0 0.0
      %2877 = vmatmul.mubr.f32.gmra.mxu0 %v2657
      %v2878 = vpop.f32.mrf.mxu0
      %v2879 = vadd.f32 0.0, %v2878
      %v2880 = vpop.f32.mrf.mxu0
      %2881 = vmatprep.mubr.f32.mxu0 0.0
      %2882 = vmatmul.mubr.f32.gmra.mxu0 %v2660
      %v2883 = vpop.f32.mrf.mxu0
      %v2884 = vadd.f32 0.0, %v2883
      %v2885 = vpop.f32.mrf.mxu0
      %2886 = vdwg.mxu0
      %v2887 = vadd.f32 %v2499, %v2729
      %v2888 = vadd.f32 %v2500, %v2734
      %v2889 = vadd.f32 %v2501, %v2739
      %v2890 = vadd.f32 %v2502, %v2744
      %v2891 = vadd.f32 %v2503, %v2749
      %v2892 = vadd.f32 %v2504, %v2754
      %v2893 = vadd.f32 %v2505, %v2759
      %v2894 = vadd.f32 %v2506, %v2764
      %v2895 = vadd.f32 %v2507, %v2769
      %v2896 = vadd.f32 %v2508, %v2774
      %v2897 = vadd.f32 %v2509, %v2779
      %v2898 = vadd.f32 %v2510, %v2784
      %v2899 = vadd.f32 %v2511, %v2789
      %v2900 = vadd.f32 %v2512, %v2794
      %v2901 = vadd.f32 %v2513, %v2799
      %v2902 = vadd.f32 %v2514, %v2804
      %v2903 = vadd.f32 %v2515, %v2809
      %v2904 = vadd.f32 %v2516, %v2814
      %v2905 = vadd.f32 %v2517, %v2819
      %v2906 = vadd.f32 %v2518, %v2824
      %v2907 = vadd.f32 %v2519, %v2829
      %v2908 = vadd.f32 %v2520, %v2834
      %v2909 = vadd.f32 %v2521, %v2839
      %v2910 = vadd.f32 %v2522, %v2844
      %v2911 = vadd.f32 %v2523, %v2849
      %v2912 = vadd.f32 %v2524, %v2854
      %v2913 = vadd.f32 %v2525, %v2859
      %v2914 = vadd.f32 %v2526, %v2864
      %v2915 = vadd.f32 %v2527, %v2869
      %v2916 = vadd.f32 %v2528, %v2874
      %v2917 = vadd.f32 %v2529, %v2879
      %v2918 = vadd.f32 %v2530, %v2884
      %v2919 = vld [vmem:[%s2531 + $0x1] sm:$0xff]
      %v2920 = vld [vmem:[%s2531 + $0x9] sm:$0xff]
      %v2921 = vld [vmem:[%s2531 + $0x19] sm:$0xff]
      %v2922 = vld [vmem:[%s2531 + $0x21] sm:$0xff]
      %v2923 = vld [vmem:[%s2531 + $0x31] sm:$0xff]
      %v2924 = vld [vmem:[%s2531 + $0x39] sm:$0xff]
      %v2925 = vld [vmem:[%s2531 + $0x49] sm:$0xff]
      %v2926 = vld [vmem:[%s2531 + $0x51] sm:$0xff]
      %v2927 = vld [vmem:[%s2531 + $0x61] sm:$0xff]
      %v2928 = vld [vmem:[%s2531 + $0x69] sm:$0xff]
      %v2929 = vld [vmem:[%s2531 + $0x79] sm:$0xff]
      %v2930 = vld [vmem:[%s2531 + $0x81] sm:$0xff]
      %v2931 = vld [vmem:[%s2531 + $0x91] sm:$0xff]
      %v2932 = vld [vmem:[%s2531 + $0x99] sm:$0xff]
      %v2933 = vld [vmem:[%s2531 + $0xa9] sm:$0xff]
      %v2934 = vld [vmem:[%s2531 + $0xb1] sm:$0xff]
      %v2935 = vld [vmem:[%s2531 + $0xc1] sm:$0xff]
      %v2936 = vld [vmem:[%s2531 + $0xc9] sm:$0xff]
      %v2937 = vld [vmem:[%s2531 + $0xd9] sm:$0xff]
      %v2938 = vld [vmem:[%s2531 + $0xe1] sm:$0xff]
      %v2939 = vld [vmem:[%s2531 + $0xf1] sm:$0xff]
      %v2940 = vld [vmem:[%s2531 + $0xf9] sm:$0xff]
      %v2941 = vld [vmem:[%s2531 + $0x109] sm:$0xff]
      %v2942 = vld [vmem:[%s2531 + $0x111] sm:$0xff]
      %v2943 = vld [vmem:[%s2531 + $0x121] sm:$0xff]
      %v2944 = vld [vmem:[%s2531 + $0x129] sm:$0xff]
      %v2945 = vld [vmem:[%s2531 + $0x139] sm:$0xff]
      %v2946 = vld [vmem:[%s2531 + $0x141] sm:$0xff]
      %v2947 = vld [vmem:[%s2531 + $0x151] sm:$0xff]
      %v2948 = vld [vmem:[%s2531 + $0x159] sm:$0xff]
      %v2949 = vld [vmem:[%s2531 + $0x169] sm:$0xff]
      %v2950 = vld [vmem:[%s2531 + $0x171] sm:$0xff]
      %s2951 = scalar_lea.vmem %s1, 56
      %v2952 = vld [vmem:[%s2951] sm:$0xff]
      %v2954 = vsel %vm339, %v2919, 0
      %v2957 = vsel %vm339, %v2920, 0
      %v2960 = vsel %vm339, %v2921, 0
      %v2963 = vsel %vm339, %v2922, 0
      %v2966 = vsel %vm339, %v2923, 0
      %v2969 = vsel %vm339, %v2924, 0
      %v2972 = vsel %vm339, %v2925, 0
      %v2975 = vsel %vm339, %v2926, 0
      %v2978 = vsel %vm339, %v2927, 0
      %v2981 = vsel %vm339, %v2928, 0
      %v2984 = vsel %vm339, %v2929, 0
      %v2987 = vsel %vm339, %v2930, 0
      %v2990 = vsel %vm339, %v2931, 0
      %v2993 = vsel %vm339, %v2932, 0
      %v2996 = vsel %vm339, %v2933, 0
      %v2999 = vsel %vm339, %v2934, 0
      %v3002 = vsel %vm339, %v2935, 0
      %v3005 = vsel %vm339, %v2936, 0
      %v3008 = vsel %vm339, %v2937, 0
      %v3011 = vsel %vm339, %v2938, 0
      %v3014 = vsel %vm339, %v2939, 0
      %v3017 = vsel %vm339, %v2940, 0
      %v3020 = vsel %vm339, %v2941, 0
      %v3023 = vsel %vm339, %v2942, 0
      %v3026 = vsel %vm339, %v2943, 0
      %v3029 = vsel %vm339, %v2944, 0
      %v3032 = vsel %vm339, %v2945, 0
      %v3035 = vsel %vm339, %v2946, 0
      %v3038 = vsel %vm339, %v2947, 0
      %v3041 = vsel %vm339, %v2948, 0
      %v3044 = vsel %vm339, %v2949, 0
      %v3047 = vsel %vm339, %v2950, 0
      %3049 = vmatprep.subr.mxu0 0.0
      %3050 = vmatpush1.msra.mxu0 0.0
      %3051 = vmatprep.subr.mxu0 0.0
      %3052 = vmatpush1.msra.mxu0 0.0
      %3053 = vmatprep.subr.mxu0 0.0
      %3054 = vmatpush1.msra.mxu0 0.0
      %3055 = vmatprep.subr.mxu0 0.0
      %3056 = vmatpush1.msra.mxu0 0.0
      %3057 = vmatprep.subr.mxu0 0.0
      %3058 = vmatpush1.msra.mxu0 0.0
      %3059 = vmatprep.subr.mxu0 0.0
      %3060 = vmatpush1.msra.mxu0 0.0
      %3061 = vmatprep.subr.mxu0 0.0
      %3062 = vmatpush1.msra.mxu0 0.0
      %3063 = vmatprep.subr.mxu0 0.0
      %3064 = vmatpush1.msra.mxu0 0.0
      %3065 = vmatprep.subr.mxu0 0.0
      %3066 = vmatpush1.msra.mxu0 0.0
      %3067 = vmatprep.subr.mxu0 0.0
      %3068 = vmatpush1.msra.mxu0 0.0
      %3069 = vmatprep.subr.mxu0 0.0
      %3070 = vmatpush1.msra.mxu0 0.0
      %3071 = vmatprep.subr.mxu0 0.0
      %3072 = vmatpush1.msra.mxu0 0.0
      %3073 = vmatprep.subr.mxu0 0.0
      %3074 = vmatpush1.msra.mxu0 0.0
      %3075 = vmatprep.subr.mxu0 0.0
      %3076 = vmatpush1.msra.mxu0 0.0
      %3077 = vmatprep.subr.mxu0 0.0
      %3078 = vmatpush1.msra.mxu0 0.0
      %3079 = vmatprep.subr.mxu0 0.0
      %3080 = vmatpush1.msra.mxu0 %v2952
      %3081 = vmatprep.subr.mxu0 0.0
      %3082 = vmatpush2.msra.mxu0 0.0
      %3083 = vmatprep.subr.mxu0 0.0
      %3084 = vmatpush2.msra.mxu0 0.0
      %3085 = vmatprep.subr.mxu0 0.0
      %3086 = vmatpush2.msra.mxu0 0.0
      %3087 = vmatprep.subr.mxu0 0.0
      %3088 = vmatpush2.msra.mxu0 0.0
      %3089 = vmatprep.subr.mxu0 0.0
      %3090 = vmatpush2.msra.mxu0 0.0
      %3091 = vmatprep.subr.mxu0 0.0
      %3092 = vmatpush2.msra.mxu0 0.0
      %3093 = vmatprep.subr.mxu0 0.0
      %3094 = vmatpush2.msra.mxu0 0.0
      %3095 = vmatprep.subr.mxu0 0.0
      %3096 = vmatpush2.msra.mxu0 0.0
      %3097 = vmatprep.subr.mxu0 0.0
      %3098 = vmatpush2.msra.mxu0 0.0
      %3099 = vmatprep.subr.mxu0 0.0
      %3100 = vmatpush2.msra.mxu0 0.0
      %3101 = vmatprep.subr.mxu0 0.0
      %3102 = vmatpush2.msra.mxu0 0.0
      %3103 = vmatprep.subr.mxu0 0.0
      %3104 = vmatpush2.msra.mxu0 0.0
      %3105 = vmatprep.subr.mxu0 0.0
      %3106 = vmatpush2.msra.mxu0 0.0
      %3107 = vmatprep.subr.mxu0 0.0
      %3108 = vmatpush2.msra.mxu0 0.0
      %3109 = vmatprep.subr.mxu0 0.0
      %3110 = vmatpush2.msra.mxu0 0.0
      %3111 = vmatprep.subr.mxu0 0.0
      %3112 = vmatpush2.msra.mxu0 0.0
      %3113 = vmatprep.mubr.f32.mxu0 0.0
      %3114 = vmatmul.mubr.f32.gmra.mxu0 %v2954
      %v3115 = vpop.f32.mrf.mxu0
      %v3116 = vadd.f32 0.0, %v3115
      %v3117 = vpop.f32.mrf.mxu0
      %3118 = vmatprep.mubr.f32.mxu0 0.0
      %3119 = vmatmul.mubr.f32.gmra.mxu0 %v2957
      %v3120 = vpop.f32.mrf.mxu0
      %v3121 = vadd.f32 0.0, %v3120
      %v3122 = vpop.f32.mrf.mxu0
      %3123 = vmatprep.mubr.f32.mxu0 0.0
      %3124 = vmatmul.mubr.f32.gmra.mxu0 %v2960
      %v3125 = vpop.f32.mrf.mxu0
      %v3126 = vadd.f32 0.0, %v3125
      %v3127 = vpop.f32.mrf.mxu0
      %3128 = vmatprep.mubr.f32.mxu0 0.0
      %3129 = vmatmul.mubr.f32.gmra.mxu0 %v2963
      %v3130 = vpop.f32.mrf.mxu0
      %v3131 = vadd.f32 0.0, %v3130
      %v3132 = vpop.f32.mrf.mxu0
      %3133 = vmatprep.mubr.f32.mxu0 0.0
      %3134 = vmatmul.mubr.f32.gmra.mxu0 %v2966
      %v3135 = vpop.f32.mrf.mxu0
      %v3136 = vadd.f32 0.0, %v3135
      %v3137 = vpop.f32.mrf.mxu0
      %3138 = vmatprep.mubr.f32.mxu0 0.0
      %3139 = vmatmul.mubr.f32.gmra.mxu0 %v2969
      %v3140 = vpop.f32.mrf.mxu0
      %v3141 = vadd.f32 0.0, %v3140
      %v3142 = vpop.f32.mrf.mxu0
      %3143 = vmatprep.mubr.f32.mxu0 0.0
      %3144 = vmatmul.mubr.f32.gmra.mxu0 %v2972
      %v3145 = vpop.f32.mrf.mxu0
      %v3146 = vadd.f32 0.0, %v3145
      %v3147 = vpop.f32.mrf.mxu0
      %3148 = vmatprep.mubr.f32.mxu0 0.0
      %3149 = vmatmul.mubr.f32.gmra.mxu0 %v2975
      %v3150 = vpop.f32.mrf.mxu0
      %v3151 = vadd.f32 0.0, %v3150
      %v3152 = vpop.f32.mrf.mxu0
      %3153 = vmatprep.mubr.f32.mxu0 0.0
      %3154 = vmatmul.mubr.f32.gmra.mxu0 %v2978
      %v3155 = vpop.f32.mrf.mxu0
      %v3156 = vadd.f32 0.0, %v3155
      %v3157 = vpop.f32.mrf.mxu0
      %3158 = vmatprep.mubr.f32.mxu0 0.0
      %3159 = vmatmul.mubr.f32.gmra.mxu0 %v2981
      %v3160 = vpop.f32.mrf.mxu0
      %v3161 = vadd.f32 0.0, %v3160
      %v3162 = vpop.f32.mrf.mxu0
      %3163 = vmatprep.mubr.f32.mxu0 0.0
      %3164 = vmatmul.mubr.f32.gmra.mxu0 %v2984
      %v3165 = vpop.f32.mrf.mxu0
      %v3166 = vadd.f32 0.0, %v3165
      %v3167 = vpop.f32.mrf.mxu0
      %3168 = vmatprep.mubr.f32.mxu0 0.0
      %3169 = vmatmul.mubr.f32.gmra.mxu0 %v2987
      %v3170 = vpop.f32.mrf.mxu0
      %v3171 = vadd.f32 0.0, %v3170
      %v3172 = vpop.f32.mrf.mxu0
      %3173 = vmatprep.mubr.f32.mxu0 0.0
      %3174 = vmatmul.mubr.f32.gmra.mxu0 %v2990
      %v3175 = vpop.f32.mrf.mxu0
      %v3176 = vadd.f32 0.0, %v3175
      %v3177 = vpop.f32.mrf.mxu0
      %3178 = vmatprep.mubr.f32.mxu0 0.0
      %3179 = vmatmul.mubr.f32.gmra.mxu0 %v2993
      %v3180 = vpop.f32.mrf.mxu0
      %v3181 = vadd.f32 0.0, %v3180
      %v3182 = vpop.f32.mrf.mxu0
      %3183 = vmatprep.mubr.f32.mxu0 0.0
      %3184 = vmatmul.mubr.f32.gmra.mxu0 %v2996
      %v3185 = vpop.f32.mrf.mxu0
      %v3186 = vadd.f32 0.0, %v3185
      %v3187 = vpop.f32.mrf.mxu0
      %3188 = vmatprep.mubr.f32.mxu0 0.0
      %3189 = vmatmul.mubr.f32.gmra.mxu0 %v2999
      %v3190 = vpop.f32.mrf.mxu0
      %v3191 = vadd.f32 0.0, %v3190
      %v3192 = vpop.f32.mrf.mxu0
      %3193 = vmatprep.mubr.f32.mxu0 0.0
      %3194 = vmatmul.mubr.f32.gmra.mxu0 %v3002
      %v3195 = vpop.f32.mrf.mxu0
      %v3196 = vadd.f32 0.0, %v3195
      %v3197 = vpop.f32.mrf.mxu0
      %3198 = vmatprep.mubr.f32.mxu0 0.0
      %3199 = vmatmul.mubr.f32.gmra.mxu0 %v3005
      %v3200 = vpop.f32.mrf.mxu0
      %v3201 = vadd.f32 0.0, %v3200
      %v3202 = vpop.f32.mrf.mxu0
      %3203 = vmatprep.mubr.f32.mxu0 0.0
      %3204 = vmatmul.mubr.f32.gmra.mxu0 %v3008
      %v3205 = vpop.f32.mrf.mxu0
      %v3206 = vadd.f32 0.0, %v3205
      %v3207 = vpop.f32.mrf.mxu0
      %3208 = vmatprep.mubr.f32.mxu0 0.0
      %3209 = vmatmul.mubr.f32.gmra.mxu0 %v3011
      %v3210 = vpop.f32.mrf.mxu0
      %v3211 = vadd.f32 0.0, %v3210
      %v3212 = vpop.f32.mrf.mxu0
      %3213 = vmatprep.mubr.f32.mxu0 0.0
      %3214 = vmatmul.mubr.f32.gmra.mxu0 %v3014
      %v3215 = vpop.f32.mrf.mxu0
      %v3216 = vadd.f32 0.0, %v3215
      %v3217 = vpop.f32.mrf.mxu0
      %3218 = vmatprep.mubr.f32.mxu0 0.0
      %3219 = vmatmul.mubr.f32.gmra.mxu0 %v3017
      %v3220 = vpop.f32.mrf.mxu0
      %v3221 = vadd.f32 0.0, %v3220
      %v3222 = vpop.f32.mrf.mxu0
      %3223 = vmatprep.mubr.f32.mxu0 0.0
      %3224 = vmatmul.mubr.f32.gmra.mxu0 %v3020
      %v3225 = vpop.f32.mrf.mxu0
      %v3226 = vadd.f32 0.0, %v3225
      %v3227 = vpop.f32.mrf.mxu0
      %3228 = vmatprep.mubr.f32.mxu0 0.0
      %3229 = vmatmul.mubr.f32.gmra.mxu0 %v3023
      %v3230 = vpop.f32.mrf.mxu0
      %v3231 = vadd.f32 0.0, %v3230
      %v3232 = vpop.f32.mrf.mxu0
      %3233 = vmatprep.mubr.f32.mxu0 0.0
      %3234 = vmatmul.mubr.f32.gmra.mxu0 %v3026
      %v3235 = vpop.f32.mrf.mxu0
      %v3236 = vadd.f32 0.0, %v3235
      %v3237 = vpop.f32.mrf.mxu0
      %3238 = vmatprep.mubr.f32.mxu0 0.0
      %3239 = vmatmul.mubr.f32.gmra.mxu0 %v3029
      %v3240 = vpop.f32.mrf.mxu0
      %v3241 = vadd.f32 0.0, %v3240
      %v3242 = vpop.f32.mrf.mxu0
      %3243 = vmatprep.mubr.f32.mxu0 0.0
      %3244 = vmatmul.mubr.f32.gmra.mxu0 %v3032
      %v3245 = vpop.f32.mrf.mxu0
      %v3246 = vadd.f32 0.0, %v3245
      %v3247 = vpop.f32.mrf.mxu0
      %3248 = vmatprep.mubr.f32.mxu0 0.0
      %3249 = vmatmul.mubr.f32.gmra.mxu0 %v3035
      %v3250 = vpop.f32.mrf.mxu0
      %v3251 = vadd.f32 0.0, %v3250
      %v3252 = vpop.f32.mrf.mxu0
      %3253 = vmatprep.mubr.f32.mxu0 0.0
      %3254 = vmatmul.mubr.f32.gmra.mxu0 %v3038
      %v3255 = vpop.f32.mrf.mxu0
      %v3256 = vadd.f32 0.0, %v3255
      %v3257 = vpop.f32.mrf.mxu0
      %3258 = vmatprep.mubr.f32.mxu0 0.0
      %3259 = vmatmul.mubr.f32.gmra.mxu0 %v3041
      %v3260 = vpop.f32.mrf.mxu0
      %v3261 = vadd.f32 0.0, %v3260
      %v3262 = vpop.f32.mrf.mxu0
      %3263 = vmatprep.mubr.f32.mxu0 0.0
      %3264 = vmatmul.mubr.f32.gmra.mxu0 %v3044
      %v3265 = vpop.f32.mrf.mxu0
      %v3266 = vadd.f32 0.0, %v3265
      %v3267 = vpop.f32.mrf.mxu0
      %3268 = vmatprep.mubr.f32.mxu0 0.0
      %3269 = vmatmul.mubr.f32.gmra.mxu0 %v3047
      %v3270 = vpop.f32.mrf.mxu0
      %v3271 = vadd.f32 0.0, %v3270
      %v3272 = vpop.f32.mrf.mxu0
      %3273 = vdwg.mxu0
      %v3274 = vadd.f32 %v2887, %v3116
      %v3275 = vadd.f32 %v2888, %v3121
      %v3276 = vadd.f32 %v2889, %v3126
      %v3277 = vadd.f32 %v2890, %v3131
      %v3278 = vadd.f32 %v2891, %v3136
      %v3279 = vadd.f32 %v2892, %v3141
      %v3280 = vadd.f32 %v2893, %v3146
      %v3281 = vadd.f32 %v2894, %v3151
      %v3282 = vadd.f32 %v2895, %v3156
      %v3283 = vadd.f32 %v2896, %v3161
      %v3284 = vadd.f32 %v2897, %v3166
      %v3285 = vadd.f32 %v2898, %v3171
      %v3286 = vadd.f32 %v2899, %v3176
      %v3287 = vadd.f32 %v2900, %v3181
      %v3288 = vadd.f32 %v2901, %v3186
      %v3289 = vadd.f32 %v2902, %v3191
      %v3290 = vadd.f32 %v2903, %v3196
      %v3291 = vadd.f32 %v2904, %v3201
      %v3292 = vadd.f32 %v2905, %v3206
      %v3293 = vadd.f32 %v2906, %v3211
      %v3294 = vadd.f32 %v2907, %v3216
      %v3295 = vadd.f32 %v2908, %v3221
      %v3296 = vadd.f32 %v2909, %v3226
      %v3297 = vadd.f32 %v2910, %v3231
      %v3298 = vadd.f32 %v2911, %v3236
      %v3299 = vadd.f32 %v2912, %v3241
      %v3300 = vadd.f32 %v2913, %v3246
      %v3301 = vadd.f32 %v2914, %v3251
      %v3302 = vadd.f32 %v2915, %v3256
      %v3303 = vadd.f32 %v2916, %v3261
      %v3304 = vadd.f32 %v2917, %v3266
      %v3305 = vadd.f32 %v2918, %v3271
      %v3306 = vld [vmem:[%s2531 + $0x2] sm:$0xff]
      %v3307 = vld [vmem:[%s2531 + $0xa] sm:$0xff]
      %v3308 = vld [vmem:[%s2531 + $0x1a] sm:$0xff]
      %v3309 = vld [vmem:[%s2531 + $0x22] sm:$0xff]
      %v3310 = vld [vmem:[%s2531 + $0x32] sm:$0xff]
      %v3311 = vld [vmem:[%s2531 + $0x3a] sm:$0xff]
      %v3312 = vld [vmem:[%s2531 + $0x4a] sm:$0xff]
      %v3313 = vld [vmem:[%s2531 + $0x52] sm:$0xff]
      %v3314 = vld [vmem:[%s2531 + $0x62] sm:$0xff]
      %v3315 = vld [vmem:[%s2531 + $0x6a] sm:$0xff]
      %v3316 = vld [vmem:[%s2531 + $0x7a] sm:$0xff]
      %v3317 = vld [vmem:[%s2531 + $0x82] sm:$0xff]
      %v3318 = vld [vmem:[%s2531 + $0x92] sm:$0xff]
      %v3319 = vld [vmem:[%s2531 + $0x9a] sm:$0xff]
      %v3320 = vld [vmem:[%s2531 + $0xaa] sm:$0xff]
      %v3321 = vld [vmem:[%s2531 + $0xb2] sm:$0xff]
      %v3322 = vld [vmem:[%s2531 + $0xc2] sm:$0xff]
      %v3323 = vld [vmem:[%s2531 + $0xca] sm:$0xff]
      %v3324 = vld [vmem:[%s2531 + $0xda] sm:$0xff]
      %v3325 = vld [vmem:[%s2531 + $0xe2] sm:$0xff]
      %v3326 = vld [vmem:[%s2531 + $0xf2] sm:$0xff]
      %v3327 = vld [vmem:[%s2531 + $0xfa] sm:$0xff]
      %v3328 = vld [vmem:[%s2531 + $0x10a] sm:$0xff]
      %v3329 = vld [vmem:[%s2531 + $0x112] sm:$0xff]
      %v3330 = vld [vmem:[%s2531 + $0x122] sm:$0xff]
      %v3331 = vld [vmem:[%s2531 + $0x12a] sm:$0xff]
      %v3332 = vld [vmem:[%s2531 + $0x13a] sm:$0xff]
      %v3333 = vld [vmem:[%s2531 + $0x142] sm:$0xff]
      %v3334 = vld [vmem:[%s2531 + $0x152] sm:$0xff]
      %v3335 = vld [vmem:[%s2531 + $0x15a] sm:$0xff]
      %v3336 = vld [vmem:[%s2531 + $0x16a] sm:$0xff]
      %v3337 = vld [vmem:[%s2531 + $0x172] sm:$0xff]
      %s3338 = scalar_lea.vmem %s1, 64
      %v3339 = vld [vmem:[%s3338] sm:$0xff]
      %v3341 = vsel %vm339, %v3306, 0
      %v3344 = vsel %vm339, %v3307, 0
      %v3347 = vsel %vm339, %v3308, 0
      %v3350 = vsel %vm339, %v3309, 0
      %v3353 = vsel %vm339, %v3310, 0
      %v3356 = vsel %vm339, %v3311, 0
      %v3359 = vsel %vm339, %v3312, 0
      %v3362 = vsel %vm339, %v3313, 0
      %v3365 = vsel %vm339, %v3314, 0
      %v3368 = vsel %vm339, %v3315, 0
      %v3371 = vsel %vm339, %v3316, 0
      %v3374 = vsel %vm339, %v3317, 0
      %v3377 = vsel %vm339, %v3318, 0
      %v3380 = vsel %vm339, %v3319, 0
      %v3383 = vsel %vm339, %v3320, 0
      %v3386 = vsel %vm339, %v3321, 0
      %v3389 = vsel %vm339, %v3322, 0
      %v3392 = vsel %vm339, %v3323, 0
      %v3395 = vsel %vm339, %v3324, 0
      %v3398 = vsel %vm339, %v3325, 0
      %v3401 = vsel %vm339, %v3326, 0
      %v3404 = vsel %vm339, %v3327, 0
      %v3407 = vsel %vm339, %v3328, 0
      %v3410 = vsel %vm339, %v3329, 0
      %v3413 = vsel %vm339, %v3330, 0
      %v3416 = vsel %vm339, %v3331, 0
      %v3419 = vsel %vm339, %v3332, 0
      %v3422 = vsel %vm339, %v3333, 0
      %v3425 = vsel %vm339, %v3334, 0
      %v3428 = vsel %vm339, %v3335, 0
      %v3431 = vsel %vm339, %v3336, 0
      %v3434 = vsel %vm339, %v3337, 0
      %3436 = vmatprep.subr.mxu0 0.0
      %3437 = vmatpush1.msra.mxu0 0.0
      %3438 = vmatprep.subr.mxu0 0.0
      %3439 = vmatpush1.msra.mxu0 0.0
      %3440 = vmatprep.subr.mxu0 0.0
      %3441 = vmatpush1.msra.mxu0 0.0
      %3442 = vmatprep.subr.mxu0 0.0
      %3443 = vmatpush1.msra.mxu0 0.0
      %3444 = vmatprep.subr.mxu0 0.0
      %3445 = vmatpush1.msra.mxu0 0.0
      %3446 = vmatprep.subr.mxu0 0.0
      %3447 = vmatpush1.msra.mxu0 0.0
      %3448 = vmatprep.subr.mxu0 0.0
      %3449 = vmatpush1.msra.mxu0 0.0
      %3450 = vmatprep.subr.mxu0 0.0
      %3451 = vmatpush1.msra.mxu0 0.0
      %3452 = vmatprep.subr.mxu0 0.0
      %3453 = vmatpush1.msra.mxu0 0.0
      %3454 = vmatprep.subr.mxu0 0.0
      %3455 = vmatpush1.msra.mxu0 0.0
      %3456 = vmatprep.subr.mxu0 0.0
      %3457 = vmatpush1.msra.mxu0 0.0
      %3458 = vmatprep.subr.mxu0 0.0
      %3459 = vmatpush1.msra.mxu0 0.0
      %3460 = vmatprep.subr.mxu0 0.0
      %3461 = vmatpush1.msra.mxu0 0.0
      %3462 = vmatprep.subr.mxu0 0.0
      %3463 = vmatpush1.msra.mxu0 0.0
      %3464 = vmatprep.subr.mxu0 0.0
      %3465 = vmatpush1.msra.mxu0 0.0
      %3466 = vmatprep.subr.mxu0 0.0
      %3467 = vmatpush1.msra.mxu0 %v3339
      %3468 = vmatprep.subr.mxu0 0.0
      %3469 = vmatpush2.msra.mxu0 0.0
      %3470 = vmatprep.subr.mxu0 0.0
      %3471 = vmatpush2.msra.mxu0 0.0
      %3472 = vmatprep.subr.mxu0 0.0
      %3473 = vmatpush2.msra.mxu0 0.0
      %3474 = vmatprep.subr.mxu0 0.0
      %3475 = vmatpush2.msra.mxu0 0.0
      %3476 = vmatprep.subr.mxu0 0.0
      %3477 = vmatpush2.msra.mxu0 0.0
      %3478 = vmatprep.subr.mxu0 0.0
      %3479 = vmatpush2.msra.mxu0 0.0
      %3480 = vmatprep.subr.mxu0 0.0
      %3481 = vmatpush2.msra.mxu0 0.0
      %3482 = vmatprep.subr.mxu0 0.0
      %3483 = vmatpush2.msra.mxu0 0.0
      %3484 = vmatprep.subr.mxu0 0.0
      %3485 = vmatpush2.msra.mxu0 0.0
      %3486 = vmatprep.subr.mxu0 0.0
      %3487 = vmatpush2.msra.mxu0 0.0
      %3488 = vmatprep.subr.mxu0 0.0
      %3489 = vmatpush2.msra.mxu0 0.0
      %3490 = vmatprep.subr.mxu0 0.0
      %3491 = vmatpush2.msra.mxu0 0.0
      %3492 = vmatprep.subr.mxu0 0.0
      %3493 = vmatpush2.msra.mxu0 0.0
      %3494 = vmatprep.subr.mxu0 0.0
      %3495 = vmatpush2.msra.mxu0 0.0
      %3496 = vmatprep.subr.mxu0 0.0
      %3497 = vmatpush2.msra.mxu0 0.0
      %3498 = vmatprep.subr.mxu0 0.0
      %3499 = vmatpush2.msra.mxu0 0.0
      %3500 = vmatprep.mubr.f32.mxu0 0.0
      %3501 = vmatmul.mubr.f32.gmra.mxu0 %v3341
      %v3502 = vpop.f32.mrf.mxu0
      %v3503 = vadd.f32 0.0, %v3502
      %v3504 = vpop.f32.mrf.mxu0
      %3505 = vmatprep.mubr.f32.mxu0 0.0
      %3506 = vmatmul.mubr.f32.gmra.mxu0 %v3344
      %v3507 = vpop.f32.mrf.mxu0
      %v3508 = vadd.f32 0.0, %v3507
      %v3509 = vpop.f32.mrf.mxu0
      %3510 = vmatprep.mubr.f32.mxu0 0.0
      %3511 = vmatmul.mubr.f32.gmra.mxu0 %v3347
      %v3512 = vpop.f32.mrf.mxu0
      %v3513 = vadd.f32 0.0, %v3512
      %v3514 = vpop.f32.mrf.mxu0
      %3515 = vmatprep.mubr.f32.mxu0 0.0
      %3516 = vmatmul.mubr.f32.gmra.mxu0 %v3350
      %v3517 = vpop.f32.mrf.mxu0
      %v3518 = vadd.f32 0.0, %v3517
      %v3519 = vpop.f32.mrf.mxu0
      %3520 = vmatprep.mubr.f32.mxu0 0.0
      %3521 = vmatmul.mubr.f32.gmra.mxu0 %v3353
      %v3522 = vpop.f32.mrf.mxu0
      %v3523 = vadd.f32 0.0, %v3522
      %v3524 = vpop.f32.mrf.mxu0
      %3525 = vmatprep.mubr.f32.mxu0 0.0
      %3526 = vmatmul.mubr.f32.gmra.mxu0 %v3356
      %v3527 = vpop.f32.mrf.mxu0
      %v3528 = vadd.f32 0.0, %v3527
      %v3529 = vpop.f32.mrf.mxu0
      %3530 = vmatprep.mubr.f32.mxu0 0.0
      %3531 = vmatmul.mubr.f32.gmra.mxu0 %v3359
      %v3532 = vpop.f32.mrf.mxu0
      %v3533 = vadd.f32 0.0, %v3532
      %v3534 = vpop.f32.mrf.mxu0
      %3535 = vmatprep.mubr.f32.mxu0 0.0
      %3536 = vmatmul.mubr.f32.gmra.mxu0 %v3362
      %v3537 = vpop.f32.mrf.mxu0
      %v3538 = vadd.f32 0.0, %v3537
      %v3539 = vpop.f32.mrf.mxu0
      %3540 = vmatprep.mubr.f32.mxu0 0.0
      %3541 = vmatmul.mubr.f32.gmra.mxu0 %v3365
      %v3542 = vpop.f32.mrf.mxu0
      %v3543 = vadd.f32 0.0, %v3542
      %v3544 = vpop.f32.mrf.mxu0
      %3545 = vmatprep.mubr.f32.mxu0 0.0
      %3546 = vmatmul.mubr.f32.gmra.mxu0 %v3368
      %v3547 = vpop.f32.mrf.mxu0
      %v3548 = vadd.f32 0.0, %v3547
      %v3549 = vpop.f32.mrf.mxu0
      %3550 = vmatprep.mubr.f32.mxu0 0.0
      %3551 = vmatmul.mubr.f32.gmra.mxu0 %v3371
      %v3552 = vpop.f32.mrf.mxu0
      %v3553 = vadd.f32 0.0, %v3552
      %v3554 = vpop.f32.mrf.mxu0
      %3555 = vmatprep.mubr.f32.mxu0 0.0
      %3556 = vmatmul.mubr.f32.gmra.mxu0 %v3374
      %v3557 = vpop.f32.mrf.mxu0
      %v3558 = vadd.f32 0.0, %v3557
      %v3559 = vpop.f32.mrf.mxu0
      %3560 = vmatprep.mubr.f32.mxu0 0.0
      %3561 = vmatmul.mubr.f32.gmra.mxu0 %v3377
      %v3562 = vpop.f32.mrf.mxu0
      %v3563 = vadd.f32 0.0, %v3562
      %v3564 = vpop.f32.mrf.mxu0
      %3565 = vmatprep.mubr.f32.mxu0 0.0
      %3566 = vmatmul.mubr.f32.gmra.mxu0 %v3380
      %v3567 = vpop.f32.mrf.mxu0
      %v3568 = vadd.f32 0.0, %v3567
      %v3569 = vpop.f32.mrf.mxu0
      %3570 = vmatprep.mubr.f32.mxu0 0.0
      %3571 = vmatmul.mubr.f32.gmra.mxu0 %v3383
      %v3572 = vpop.f32.mrf.mxu0
      %v3573 = vadd.f32 0.0, %v3572
      %v3574 = vpop.f32.mrf.mxu0
      %3575 = vmatprep.mubr.f32.mxu0 0.0
      %3576 = vmatmul.mubr.f32.gmra.mxu0 %v3386
      %v3577 = vpop.f32.mrf.mxu0
      %v3578 = vadd.f32 0.0, %v3577
      %v3579 = vpop.f32.mrf.mxu0
      %3580 = vmatprep.mubr.f32.mxu0 0.0
      %3581 = vmatmul.mubr.f32.gmra.mxu0 %v3389
      %v3582 = vpop.f32.mrf.mxu0
      %v3583 = vadd.f32 0.0, %v3582
      %v3584 = vpop.f32.mrf.mxu0
      %3585 = vmatprep.mubr.f32.mxu0 0.0
      %3586 = vmatmul.mubr.f32.gmra.mxu0 %v3392
      %v3587 = vpop.f32.mrf.mxu0
      %v3588 = vadd.f32 0.0, %v3587
      %v3589 = vpop.f32.mrf.mxu0
      %3590 = vmatprep.mubr.f32.mxu0 0.0
      %3591 = vmatmul.mubr.f32.gmra.mxu0 %v3395
      %v3592 = vpop.f32.mrf.mxu0
      %v3593 = vadd.f32 0.0, %v3592
      %v3594 = vpop.f32.mrf.mxu0
      %3595 = vmatprep.mubr.f32.mxu0 0.0
      %3596 = vmatmul.mubr.f32.gmra.mxu0 %v3398
      %v3597 = vpop.f32.mrf.mxu0
      %v3598 = vadd.f32 0.0, %v3597
      %v3599 = vpop.f32.mrf.mxu0
      %3600 = vmatprep.mubr.f32.mxu0 0.0
      %3601 = vmatmul.mubr.f32.gmra.mxu0 %v3401
      %v3602 = vpop.f32.mrf.mxu0
      %v3603 = vadd.f32 0.0, %v3602
      %v3604 = vpop.f32.mrf.mxu0
      %3605 = vmatprep.mubr.f32.mxu0 0.0
      %3606 = vmatmul.mubr.f32.gmra.mxu0 %v3404
      %v3607 = vpop.f32.mrf.mxu0
      %v3608 = vadd.f32 0.0, %v3607
      %v3609 = vpop.f32.mrf.mxu0
      %3610 = vmatprep.mubr.f32.mxu0 0.0
      %3611 = vmatmul.mubr.f32.gmra.mxu0 %v3407
      %v3612 = vpop.f32.mrf.mxu0
      %v3613 = vadd.f32 0.0, %v3612
      %v3614 = vpop.f32.mrf.mxu0
      %3615 = vmatprep.mubr.f32.mxu0 0.0
      %3616 = vmatmul.mubr.f32.gmra.mxu0 %v3410
      %v3617 = vpop.f32.mrf.mxu0
      %v3618 = vadd.f32 0.0, %v3617
      %v3619 = vpop.f32.mrf.mxu0
      %3620 = vmatprep.mubr.f32.mxu0 0.0
      %3621 = vmatmul.mubr.f32.gmra.mxu0 %v3413
      %v3622 = vpop.f32.mrf.mxu0
      %v3623 = vadd.f32 0.0, %v3622
      %v3624 = vpop.f32.mrf.mxu0
      %3625 = vmatprep.mubr.f32.mxu0 0.0
      %3626 = vmatmul.mubr.f32.gmra.mxu0 %v3416
      %v3627 = vpop.f32.mrf.mxu0
      %v3628 = vadd.f32 0.0, %v3627
      %v3629 = vpop.f32.mrf.mxu0
      %3630 = vmatprep.mubr.f32.mxu0 0.0
      %3631 = vmatmul.mubr.f32.gmra.mxu0 %v3419
      %v3632 = vpop.f32.mrf.mxu0
      %v3633 = vadd.f32 0.0, %v3632
      %v3634 = vpop.f32.mrf.mxu0
      %3635 = vmatprep.mubr.f32.mxu0 0.0
      %3636 = vmatmul.mubr.f32.gmra.mxu0 %v3422
      %v3637 = vpop.f32.mrf.mxu0
      %v3638 = vadd.f32 0.0, %v3637
      %v3639 = vpop.f32.mrf.mxu0
      %3640 = vmatprep.mubr.f32.mxu0 0.0
      %3641 = vmatmul.mubr.f32.gmra.mxu0 %v3425
      %v3642 = vpop.f32.mrf.mxu0
      %v3643 = vadd.f32 0.0, %v3642
      %v3644 = vpop.f32.mrf.mxu0
      %3645 = vmatprep.mubr.f32.mxu0 0.0
      %3646 = vmatmul.mubr.f32.gmra.mxu0 %v3428
      %v3647 = vpop.f32.mrf.mxu0
      %v3648 = vadd.f32 0.0, %v3647
      %v3649 = vpop.f32.mrf.mxu0
      %3650 = vmatprep.mubr.f32.mxu0 0.0
      %3651 = vmatmul.mubr.f32.gmra.mxu0 %v3431
      %v3652 = vpop.f32.mrf.mxu0
      %v3653 = vadd.f32 0.0, %v3652
      %v3654 = vpop.f32.mrf.mxu0
      %3655 = vmatprep.mubr.f32.mxu0 0.0
      %3656 = vmatmul.mubr.f32.gmra.mxu0 %v3434
      %v3657 = vpop.f32.mrf.mxu0
      %v3658 = vadd.f32 0.0, %v3657
      %v3659 = vpop.f32.mrf.mxu0
      %3660 = vdwg.mxu0
      %v3661 = vadd.f32 %v3274, %v3503
      %v3662 = vadd.f32 %v3275, %v3508
      %v3663 = vadd.f32 %v3276, %v3513
      %v3664 = vadd.f32 %v3277, %v3518
      %v3665 = vadd.f32 %v3278, %v3523
      %v3666 = vadd.f32 %v3279, %v3528
      %v3667 = vadd.f32 %v3280, %v3533
      %v3668 = vadd.f32 %v3281, %v3538
      %v3669 = vadd.f32 %v3282, %v3543
      %v3670 = vadd.f32 %v3283, %v3548
      %v3671 = vadd.f32 %v3284, %v3553
      %v3672 = vadd.f32 %v3285, %v3558
      %v3673 = vadd.f32 %v3286, %v3563
      %v3674 = vadd.f32 %v3287, %v3568
      %v3675 = vadd.f32 %v3288, %v3573
      %v3676 = vadd.f32 %v3289, %v3578
      %v3677 = vadd.f32 %v3290, %v3583
      %v3678 = vadd.f32 %v3291, %v3588
      %v3679 = vadd.f32 %v3292, %v3593
      %v3680 = vadd.f32 %v3293, %v3598
      %v3681 = vadd.f32 %v3294, %v3603
      %v3682 = vadd.f32 %v3295, %v3608
      %v3683 = vadd.f32 %v3296, %v3613
      %v3684 = vadd.f32 %v3297, %v3618
      %v3685 = vadd.f32 %v3298, %v3623
      %v3686 = vadd.f32 %v3299, %v3628
      %v3687 = vadd.f32 %v3300, %v3633
      %v3688 = vadd.f32 %v3301, %v3638
      %v3689 = vadd.f32 %v3302, %v3643
      %v3690 = vadd.f32 %v3303, %v3648
      %v3691 = vadd.f32 %v3304, %v3653
      %v3692 = vadd.f32 %v3305, %v3658
      %3693 = vxpose.xlu0.b32.start [1/16] %v3661, 128
      %3694 = vxpose.xlu0.b32.cont [2/16] %v3662, 128
      %3695 = vxpose.xlu0.b32.cont [3/16] %v3663, 128
      %3696 = vxpose.xlu0.b32.cont [4/16] %v3664, 128
      %3697 = vxpose.xlu0.b32.cont [5/16] %v3665, 128
      %3698 = vxpose.xlu0.b32.cont [6/16] %v3666, 128
      %3699 = vxpose.xlu0.b32.cont [7/16] %v3667, 128
      %3700 = vxpose.xlu0.b32.cont [8/16] %v3668, 128
      %3701 = vxpose.xlu0.b32.cont [9/16] %v3669, 128
      %3702 = vxpose.xlu0.b32.cont [10/16] %v3670, 128
      %3703 = vxpose.xlu0.b32.cont [11/16] %v3671, 128
      %3704 = vxpose.xlu0.b32.cont [12/16] %v3672, 128
      %3705 = vxpose.xlu0.b32.cont [13/16] %v3673, 128
      %3706 = vxpose.xlu0.b32.cont [14/16] %v3674, 128
      %3707 = vxpose.xlu0.b32.cont [15/16] %v3675, 128
      %3708 = vxpose.xlu0.b32.end [16/16] %v3676, 128
      %v3709 = vpop.trf.xlu0
      %v3710 = vpop.trf.xlu0
      %v3711 = vpop.trf.xlu0
      %v3712 = vpop.trf.xlu0
      %v3713 = vpop.trf.xlu0
      %v3714 = vpop.trf.xlu0
      %v3715 = vpop.trf.xlu0
      %v3716 = vpop.trf.xlu0
      %v3717 = vpop.trf.xlu0
      %v3718 = vpop.trf.xlu0
      %v3719 = vpop.trf.xlu0
      %v3720 = vpop.trf.xlu0
      %v3721 = vpop.trf.xlu0
      %v3722 = vpop.trf.xlu0
      %v3723 = vpop.trf.xlu0
      %v3724 = vpop.trf.xlu0
      %3725 = vxpose.xlu0.b32.start [1/16] %v3677, 128
      %3726 = vxpose.xlu0.b32.cont [2/16] %v3678, 128
      %3727 = vxpose.xlu0.b32.cont [3/16] %v3679, 128
      %3728 = vxpose.xlu0.b32.cont [4/16] %v3680, 128
      %3729 = vxpose.xlu0.b32.cont [5/16] %v3681, 128
      %3730 = vxpose.xlu0.b32.cont [6/16] %v3682, 128
      %3731 = vxpose.xlu0.b32.cont [7/16] %v3683, 128
      %3732 = vxpose.xlu0.b32.cont [8/16] %v3684, 128
      %3733 = vxpose.xlu0.b32.cont [9/16] %v3685, 128
      %3734 = vxpose.xlu0.b32.cont [10/16] %v3686, 128
      %3735 = vxpose.xlu0.b32.cont [11/16] %v3687, 128
      %3736 = vxpose.xlu0.b32.cont [12/16] %v3688, 128
      %3737 = vxpose.xlu0.b32.cont [13/16] %v3689, 128
      %3738 = vxpose.xlu0.b32.cont [14/16] %v3690, 128
      %3739 = vxpose.xlu0.b32.cont [15/16] %v3691, 128
      %3740 = vxpose.xlu0.b32.end [16/16] %v3692, 128
      %v3741 = vpop.trf.xlu0
      %v3742 = vpop.trf.xlu0
      %v3743 = vpop.trf.xlu0
      %v3744 = vpop.trf.xlu0
      %v3745 = vpop.trf.xlu0
      %v3746 = vpop.trf.xlu0
      %v3747 = vpop.trf.xlu0
      %v3748 = vpop.trf.xlu0
      %v3749 = vpop.trf.xlu0
      %v3750 = vpop.trf.xlu0
      %v3751 = vpop.trf.xlu0
      %v3752 = vpop.trf.xlu0
      %v3753 = vpop.trf.xlu0
      %v3754 = vpop.trf.xlu0
      %v3755 = vpop.trf.xlu0
      %v3756 = vpop.trf.xlu0
      %v3757 = vld [vmem:[%s2] sm:$0xff]
      %v3758 = vld [vmem:[%s2 + $0x8] sm:$0xff]
      %3760 = vset.pattern.permute.xlu0 0
      %3761 = vperm.xlu0 %3760, %v3757
      %v3762 = vpop.permute.xlu0 %3761
      %3765 = vset.pattern.permute.xlu0 0
      %3766 = vperm.xlu0 %3765, %v3758
      %v3767 = vpop.permute.xlu0 %3766
      %v3769 = vadd.f32 %v3709, %v3762
      %v3770 = vadd.f32 %v3741, %v3762
      %v3771 = vadd.f32 %v3710, %v3767
      %v3772 = vadd.f32 %v3742, %v3767
      %v3773 = vld [vmem:[%s4] sm:$0xff]
      %v3774 = vld [vmem:[%s4 + $0x8] sm:$0xff]
      %v3775 = vld [vmem:[%s266] sm:$0xff]
      %v3776 = vld [vmem:[%s266 + $0x8] sm:$0xff]
      %v3777 = vld [vmem:[%s266 + $0x10] sm:$0xff]
      %v3778 = vld [vmem:[%s266 + $0x18] sm:$0xff]
      %v3779 = vld [vmem:[%s5] sm:$0xff]
      %v3780 = vld [vmem:[%s5 + $0x8] sm:$0xff]
      %3782 = vset.pattern.permute.xlu0 0
      %3783 = vperm.xlu0 %3782, %v3779
      %v3784 = vpop.permute.xlu0 %3783
      %3787 = vset.pattern.permute.xlu0 0
      %3788 = vperm.xlu0 %3787, %v3780
      %v3789 = vpop.permute.xlu0 %3788
      %vm3791 = vcmask 130048
      %v3793 = vsel %vm3791, %v3773, 0
      %v3796 = vsel %vm3791, %v3774, 0
      %3798 = vmatprep.subr.mxu0 0.0
      %3799 = vmatpush1.msra.mxu0 0.0
      %3800 = vmatprep.subr.mxu0 0.0
      %3801 = vmatpush1.msra.mxu0 0.0
      %3802 = vmatprep.subr.mxu0 0.0
      %3803 = vmatpush1.msra.mxu0 0.0
      %3804 = vmatprep.subr.mxu0 0.0
      %3805 = vmatpush1.msra.mxu0 0.0
      %3806 = vmatprep.subr.mxu0 0.0
      %3807 = vmatpush1.msra.mxu0 0.0
      %3808 = vmatprep.subr.mxu0 0.0
      %3809 = vmatpush1.msra.mxu0 0.0
      %3810 = vmatprep.subr.mxu0 0.0
      %3811 = vmatpush1.msra.mxu0 0.0
      %3812 = vmatprep.subr.mxu0 0.0
      %3813 = vmatpush1.msra.mxu0 0.0
      %3814 = vmatprep.subr.mxu0 0.0
      %3815 = vmatpush1.msra.mxu0 0.0
      %3816 = vmatprep.subr.mxu0 0.0
      %3817 = vmatpush1.msra.mxu0 0.0
      %3818 = vmatprep.subr.mxu0 0.0
      %3819 = vmatpush1.msra.mxu0 0.0
      %3820 = vmatprep.subr.mxu0 0.0
      %3821 = vmatpush1.msra.mxu0 0.0
      %3822 = vmatprep.subr.mxu0 0.0
      %3823 = vmatpush1.msra.mxu0 0.0
      %3824 = vmatprep.subr.mxu0 0.0
      %3825 = vmatpush1.msra.mxu0 0.0
      %3826 = vmatprep.subr.mxu0 %v3778
      %3827 = vmatpush1.msra.mxu0 %v3777
      %3828 = vmatprep.subr.mxu0 %v3776
      %3829 = vmatpush1.msra.mxu0 %v3775
      %3830 = vmatprep.subr.mxu0 0.0
      %3831 = vmatpush2.msra.mxu0 0.0
      %3832 = vmatprep.subr.mxu0 0.0
      %3833 = vmatpush2.msra.mxu0 0.0
      %3834 = vmatprep.subr.mxu0 0.0
      %3835 = vmatpush2.msra.mxu0 0.0
      %3836 = vmatprep.subr.mxu0 0.0
      %3837 = vmatpush2.msra.mxu0 0.0
      %3838 = vmatprep.subr.mxu0 0.0
      %3839 = vmatpush2.msra.mxu0 0.0
      %3840 = vmatprep.subr.mxu0 0.0
      %3841 = vmatpush2.msra.mxu0 0.0
      %3842 = vmatprep.subr.mxu0 0.0
      %3843 = vmatpush2.msra.mxu0 0.0
      %3844 = vmatprep.subr.mxu0 0.0
      %3845 = vmatpush2.msra.mxu0 0.0
      %3846 = vmatprep.subr.mxu0 0.0
      %3847 = vmatpush2.msra.mxu0 0.0
      %3848 = vmatprep.subr.mxu0 0.0
      %3849 = vmatpush2.msra.mxu0 0.0
      %3850 = vmatprep.subr.mxu0 0.0
      %3851 = vmatpush2.msra.mxu0 0.0
      %3852 = vmatprep.subr.mxu0 0.0
      %3853 = vmatpush2.msra.mxu0 0.0
      %3854 = vmatprep.subr.mxu0 0.0
      %3855 = vmatpush2.msra.mxu0 0.0
      %3856 = vmatprep.subr.mxu0 0.0
      %3857 = vmatpush2.msra.mxu0 0.0
      %3858 = vmatprep.subr.mxu0 0.0
      %3859 = vmatpush2.msra.mxu0 0.0
      %3860 = vmatprep.subr.mxu0 0.0
      %3861 = vmatpush2.msra.mxu0 0.0
      %3862 = vmatprep.mubr.f32.mxu0 0.0
      %3863 = vmatmul.mubr.f32.gmra.mxu0 %v3793
      %v3864 = vpop.f32.mrf.mxu0
      %v3865 = vadd.f32 %v3784, %v3864
      %v3866 = vpop.f32.mrf.mxu0
      %v3867 = vadd.f32 %v3784, %v3866
      %3868 = vmatprep.mubr.f32.mxu0 0.0
      %3869 = vmatmul.mubr.f32.gmra.mxu0 %v3796
      %v3870 = vpop.f32.mrf.mxu0
      %v3871 = vadd.f32 %v3789, %v3870
      %v3872 = vpop.f32.mrf.mxu0
      %v3873 = vadd.f32 %v3789, %v3872
      %3874 = vdwg.mxu0
      %3875 = vst [vmem:[%s271] sm:$0xff] %v3769
      %3876 = vst [vmem:[%s271 + $0x8] sm:$0xff] %v3770
      %3877 = vst [vmem:[%s271 + $0x10] sm:$0xff] %v3771
      %3878 = vst [vmem:[%s271 + $0x18] sm:$0xff] %v3772
      %3879 = vst [vmem:[%s271 + $0x20] sm:$0xff] %v3865
      %3880 = vst [vmem:[%s271 + $0x28] sm:$0xff] %v3867
      %3881 = vst [vmem:[%s271 + $0x30] sm:$0xff] %v3871
      %3882 = vst [vmem:[%s271 + $0x38] sm:$0xff] %v3873
      %p3883 = scmp.lt.s32.totalorder %s17, 1
      %s3884 = scalar_select %p3883, %s17, 1
      %s3885 = smul.addr %s3884, 8
      %s3886 = smul.addr %s3885, 8
      %s3887 = scalar_lea.vmem %s6, %s3886
      // Predicated region
      $region45: #{augmented_conv_forward.3} parent=43 // pred_check
        %p3888 = pneg %p171
      $region46: #{augmented_conv_forward.3} parent=43 // pred_check_branch
        %3890 = sbr.rel (%p3888) target = $region48
      $region47: #{augmented_conv_forward.3} parent=43 // pred_region
        _
      $region48: #{augmented_conv_forward.3} parent=43 // pred_fallthru
        _
    $region44: #{augmented_conv_forward.3} parent=5 // pred_fallthru
      _
    %p3891 = scmp.le.s32.totalorder 2, %s12
    // Predicated region
    $region49: #{augmented_conv_forward.3} parent=5 // pred_check
      %p3892 = pneg %p3891
    $region50: #{augmented_conv_forward.3} parent=5 // pred_check_branch
      %3894 = sbr.rel (%p3892) target = $region52
    $region51: #{augmented_conv_forward.3} parent=5 // pred_region
      %s3895 = ssub.s32 %s12, 2
      // Predicated region
      $region53: #{augmented_conv_forward.3} parent=51 // pred_check
        %p3896 = pneg %p177
      $region54: #{augmented_conv_forward.3} parent=51 // pred_check_branch
        %3898 = sbr.rel (%p3896) target = $region56
      $region55: #{augmented_conv_forward.3} parent=51 // pred_region
        %p3899 = scmp.lt.s32.totalorder %s18, 1
        %s3900 = scalar_select %p3899, %s18, 1
        %s3901 = smul.addr %s3900, 8
        %s3902 = smul.addr %s3901, 8
        %s3903 = scalar_lea.vmem %s6, %s3902
      $region56: #{augmented_conv_forward.3} parent=51 // pred_fallthru
        _
    $region52: #{augmented_conv_forward.3} parent=5 // pred_fallthru
      _
  $region6: #{augmented_conv_forward.3} parent=0 // loop_footer
    %s16 = sadd.s32 1, %s12
  $region7: #{augmented_conv_forward.3} parent=0 // loop_footer_branch
    %11 = sbr.rel target = $region3
  $region8: #{augmented_conv_forward.3} parent=0 // loop_exit
    _

</llo_original>
